<compile_context>
chip_gen: v6e
topology: v6e:2x2x1
jax: 0.10.0
libtpu: 0.0.40
codegen_flags: <defaults>
</compile_context>

<pallas_src>
import jax
import jax.numpy as jnp
from jax.experimental import pallas as pl
from jax.experimental.pallas import tpu as pltpu
import numpy as np

# ---------------- config (small, consistent with the module) ----------------
B = 2            # batch_size
T = 8            # sequence length
E = 32           # word_emb_size
H = 32           # word_lstm_units
K = 8            # num_tags = len(ner_labels_vocab)
H2 = 2 * H       # 64
H4 = 4 * H       # 128
H6 = 6 * H       # 192
H8 = 8 * H       # 256
USE_WORD_SELF_ATTENTION = True
DROPOUT_P = 0.0  # config dropout = 0.0 -> nn.Dropout is an exact identity
# TODO(synk): nn.Dropout with p>0 in training mode (RNG masking) is not modeled;
#             with p=0.0 the identity is exact.

F32 = jnp.float32
VMEM = pl.BlockSpec(memory_space=pltpu.MemorySpace.VMEM)


# =========================== fused forward kernel ============================
def _bilstm_crf_kernel(x2_ref, wih_ref, whh_ref, bias_ref,
                       wfc_ref, bfc_ref,
                       trans_ref, start_ref, end_ref,
                       maskf_ref, goldoh_ref, numstat_ref,
                       loss_ref, sw_ref,
                       z_ref):
    # x2: (B,T,2E) = [X | X time-reversed]; wih: (2E,8H) gate-major packed;
    # whh: (2H,8H) block structure (h_fwd rows feed fwd cols, h_bwd rows feed
    # bwd cols); bias: (1,8H); wfc: (2H,K); bfc/start/end: (1,K); trans: (K,K);
    # maskf: (B,T,1) f32; goldoh: (B,T,K) one-hot(y)*mask; numstat: (B,1)
    # outputs: loss (1,1), sw (B,T,T); scratch: z (B,T,2H) hidden states.

    # ------------------ BiLSTM: hoisted input projection ---------------------
    # One flattened matmul; row s already combines fwd gates (from X[s]) and
    # bwd gates (from X[T-1-s]) in gate-major column order
    # [i_f i_b | f_f f_b | o_f o_b | g_f g_b].
    g = (jnp.dot(x2_ref[...].reshape(B * T, 2 * E), wih_ref[...],
                 preferred_element_type=F32) + bias_ref[...])       # (B*T, 8H)
    g3 = g.reshape(B, T, H8)                                        # free reshape

    whh = whh_ref[...]                                              # (2H, 8H)

    # -------------- serial recurrence (fwd + bwd fused, unrolled) ------------
    h = jnp.zeros((B, H2), F32)                                     # [h_f | h_b]
    c = jnp.zeros((B, H2), F32)
    for s in range(T):                                              # static indices
        gates = g3[:, s, :] + jnp.dot(h, whh, preferred_element_type=F32)
        sig = jax.nn.sigmoid(gates[:, :H6])                         # i | f | o
        g_act = jnp.tanh(gates[:, H6:])                             # g (cell input)
        i_g = sig[:, 0:H2]
        f_g = sig[:, H2:2 * H2]
        o_g = sig[:, 2 * H2:3 * H2]
        c = f_g * c + i_g * g_act
        h = o_g * jnp.tanh(c)
        z_ref[:, s, 0:H] = h[:, 0:H]                                # fwd -> time s
        z_ref[:, T - 1 - s, H:H2] = h[:, H:H2]                      # bwd -> time T-1-s

    # -------------- self-attention (batched) + mask + FC ---------------------
    z = z_ref[...]                                                  # (B, T, 2H)
    maskv = maskf_ref[...]                                          # (B, T, 1)
    att = jnp.einsum('btd,bsd->bts', z, z,
                     preferred_element_type=F32)                    # z @ z^T
    att = att - jnp.max(att, axis=-1, keepdims=True)
    ea = jnp.exp(att)
    sw = ea / jnp.sum(ea, axis=-1, keepdims=True)                   # softmax(-1)
    sw_ref[...] = sw                                                # single store
    z_att = jnp.einsum('bts,bsd->btd', sw, z,
                       preferred_element_type=F32)                  # (B, T, 2H)
    z_sel = z_att if USE_WORD_SELF_ATTENTION else z
    zm = z_sel * maskv                                              # mask broadcast
    # dropout (p = 0.0) -> identity
    emis = (jnp.dot(zm.reshape(B * T, H2), wfc_ref[...],
                    preferred_element_type=F32)
            + bfc_ref[...]).reshape(B, T, K)                        # (B, T, K)

    # --------------------------------- CRF -----------------------------------
    trans_b = trans_ref[...].reshape(1, K, K)                       # hoisted
    start_v = start_ref[...]                                        # (1, K)
    end_v = end_ref[...]                                            # (1, K)

    # log-partition (denominator): forward algorithm, unrolled over time.
    # Requires mask[:, 0] == 1 (same contract as torchcrf).
    score = start_v + emis[:, 0, :]                                 # (B, K)
    for i in range(1, T):
        emis_i = emis[:, i, :]                                      # (B, K)
        nxt = score.reshape(B, K, 1) + trans_b + emis_i.reshape(B, 1, K)
        m = jnp.max(nxt, axis=1, keepdims=True)                     # (B, 1, K)
        lse = jnp.log(jnp.sum(jnp.exp(nxt - m), axis=1)) + m.reshape(B, K)
        score = jnp.where(maskv[:, i, :] > 0, lse, score)           # (B, K)
    score_fin = score + end_v
    mfin = jnp.max(score_fin, axis=-1, keepdims=True)
    denom = (jnp.log(jnp.sum(jnp.exp(score_fin - mfin), axis=-1, keepdims=True))
             + mfin)                                                # (B, 1)

    # gold-path numerator: masked emission-at-gold-tag + precomputed static part
    num_emit = jnp.sum(jnp.sum(goldoh_ref[...] * emis, axis=2),
                       axis=1, keepdims=True)                       # (B, 1)
    numerator = numstat_ref[...] + num_emit                         # (B, 1)

    llh = denom - numerator                                         # (B, 1)
    loss_ref[...] = jnp.reshape(jnp.mean(llh), (1, 1))              # reduction='mean'


# =============================== full forward ================================
def bilstm_crf_forward(X, y, mask, params):
    # X: (B, T, E) f32; y: (B, T) int tags; mask: (B, T) {0,1} with mask[:,0]==1
    y = y.astype(jnp.int32)
    mask_f = mask.astype(F32)                                       # (B, T)
    maskf3 = mask_f[:, :, None]                                     # (B, T, 1)

    # layout plumbing only: the time-reversed copy of X feeds the backward gates
    x2 = jnp.concatenate([X, X[:, ::-1, :]], axis=-1)               # (B, T, 2E)

    # gold-path numerator pieces = pure gathers on (y, mask, CRF params)
    start_sc = params['start'][0, y[:, 0]]                                    # (B,)
    trans_sc = jnp.sum(params['trans'][y[:, :-1], y[:, 1:]] * mask_f[:, 1:],
                       axis=1)                                                # (B,)
    last_idx = jnp.sum(mask.astype(jnp.int32), axis=1) - 1                    # (B,)
    last_tag = jnp.take_along_axis(y, last_idx[:, None], axis=1)[:, 0]        # (B,)
    end_sc = params['end'][0, last_tag]                                       # (B,)
    num_static = (start_sc + trans_sc + end_sc)[:, None]                      # (B, 1)
    gold_oh = jax.nn.one_hot(y, K, dtype=F32) * maskf3                        # (B, T, K)

    loss, sw = pl.pallas_call(
        _bilstm_crf_kernel,
        out_shape=(jax.ShapeDtypeStruct((1, 1), F32),
                   jax.ShapeDtypeStruct((B, T, T), F32)),
        in_specs=[VMEM] * 12,
        out_specs=(VMEM, VMEM),
        scratch_shapes=[pltpu.VMEM((B, T, H2), F32)],   # bidirectional hidden states
    )(x2, params['wih2'], params['whh_blk'], params['b_all'],
      params['wfc'], params['bfc'],
      params['trans'], params['start'], params['end'],
      maskf3, gold_oh, num_static)
    return loss[0, 0], sw


# ============================ deterministic init =============================
def make_params(key):
    ks = jax.random.split(key, 13)
    k_lstm = 1.0 / np.sqrt(H)
    k_fc = 1.0 / np.sqrt(2 * H)

    def u(k, shape, lo, hi):
        return jax.random.uniform(k, shape, F32, lo, hi)

    # raw per-direction LSTM params (pre-transposed), PyTorch gate order i,f,g,o
    wih_f = u(ks[0], (E, H4), -k_lstm, k_lstm)
    whh_f = u(ks[1], (H, H4), -k_lstm, k_lstm)
    b_f = (u(ks[2], (1, H4), -k_lstm, k_lstm)
           + u(ks[3], (1, H4), -k_lstm, k_lstm))          # b_ih + b_hh folded
    wih_b = u(ks[4], (E, H4), -k_lstm, k_lstm)
    whh_b = u(ks[5], (H, H4), -k_lstm, k_lstm)
    b_b = (u(ks[6], (1, H4), -k_lstm, k_lstm)
           + u(ks[7], (1, H4), -k_lstm, k_lstm))

    def gate(w, g):                                        # PyTorch order: i,f,g,o
        return w[:, g * H:(g + 1) * H]

    gate_order = (0, 1, 3, 2)                              # pack as i, f, o, g
    zE = jnp.zeros((E, H), F32)
    zH = jnp.zeros((H, H), F32)

    # gate-major packed columns [i_f i_b | f_f f_b | o_f o_b | g_f g_b];
    # wih2 rows [0:E] multiply X (forward gates), rows [E:2E] multiply the
    # time-reversed X (backward gates); whh rows [0:H]=h_fwd, [H:2H]=h_bwd.
    wih2_cols, whh_cols, b_cols = [], [], []
    for g in gate_order:
        wih2_cols.append(jnp.concatenate([gate(wih_f, g), zE], axis=0))
        wih2_cols.append(jnp.concatenate([zE, gate(wih_b, g)], axis=0))
        whh_cols.append(jnp.concatenate([gate(whh_f, g), zH], axis=0))
        whh_cols.append(jnp.concatenate([zH, gate(whh_b, g)], axis=0))
        b_cols.append(gate(b_f, g))
        b_cols.append(gate(b_b, g))

    params = {
        'wih2':    jnp.concatenate(wih2_cols, axis=1),     # (2E, 8H)
        'whh_blk': jnp.concatenate(whh_cols, axis=1),      # (2H, 8H) block structure
        'b_all':   jnp.concatenate(b_cols, axis=1),        # (1, 8H)
        # fc: Linear(2H -> K), stored transposed (2H, K)
        'wfc': u(ks[8], (H2, K), -k_fc, k_fc),
        'bfc': u(ks[9], (1, K), -k_fc, k_fc),
        # CRF parameters, uniform(-0.1, 0.1) as in reset_parameters()
        'trans': u(ks[10], (K, K), -0.1, 0.1),
        'start': u(ks[11], (1, K), -0.1, 0.1),
        'end':   u(ks[12], (1, K), -0.1, 0.1),
    }
    return params


if __name__ == "__main__":
    key = jax.random.PRNGKey(0)
    k_x, k_y, k_p = jax.random.split(key, 3)

    X = jax.random.normal(k_x, (B, T, E), F32)
    y = jax.random.randint(k_y, (B, T), 0, K, jnp.int32)
    lengths = jnp.array([T, T - 2], jnp.int32)             # first timestep all on
    mask = (jnp.arange(T)[None, :] < lengths[:, None]).astype(jnp.int32)

    params = make_params(k_p)

    loss, z_att = jax.jit(bilstm_crf_forward)(X, y, mask, params)
    jax.block_until_ready((loss, z_att))

    assert loss.shape == () and bool(jnp.isfinite(loss))
    assert z_att.shape == (B, T, T) and bool(jnp.all(jnp.isfinite(z_att)))
    print("KERNEL_OK")
</pallas_src>

<mosaic_0001>
module attributes {stable_mosaic.version = 11 : i64} {
  func.func @_bilstm_crf_kernel(%arg0: memref<2x8x64xf32, #tpu.memory_space<vmem>>, %arg1: memref<64x256xf32, #tpu.memory_space<vmem>>, %arg2: memref<64x256xf32, #tpu.memory_space<vmem>>, %arg3: memref<1x256xf32, #tpu.memory_space<vmem>>, %arg4: memref<64x8xf32, #tpu.memory_space<vmem>>, %arg5: memref<1x8xf32, #tpu.memory_space<vmem>>, %arg6: memref<8x8xf32, #tpu.memory_space<vmem>>, %arg7: memref<1x8xf32, #tpu.memory_space<vmem>>, %arg8: memref<1x8xf32, #tpu.memory_space<vmem>>, %arg9: memref<2x8x1xf32, #tpu.memory_space<vmem>>, %arg10: memref<2x8x8xf32, #tpu.memory_space<vmem>>, %arg11: memref<2x1xf32, #tpu.memory_space<vmem>>, %arg12: memref<1x1xf32, #tpu.memory_space<vmem>>, %arg13: memref<2x8x8xf32, #tpu.memory_space<vmem>>, %arg14: memref<2x8x64xf32, #tpu.memory_space<vmem>>) attributes {dimension_semantics = [], scalar_prefetch = 0 : i64, scratch_operands = 1 : i64, tpu.core_type = #tpu.core_type<tc>} {
    %c0 = arith.constant 0 : index
    %c0_0 = arith.constant 0 : index
    %c0_1 = arith.constant 0 : index
    %0 = vector.load %arg0[%c0, %c0_0, %c0_1] : memref<2x8x64xf32, #tpu.memory_space<vmem>>, vector<2x8x64xf32>
    %1 = vector.shape_cast %0 : vector<2x8x64xf32> to vector<16x64xf32>
    %c0_2 = arith.constant 0 : index
    %c0_3 = arith.constant 0 : index
    %2 = vector.load %arg1[%c0_2, %c0_3] : memref<64x256xf32, #tpu.memory_space<vmem>>, vector<64x256xf32>
    %cst = arith.constant dense<0.000000e+00> : vector<16x256xf32>
    %3 = tpu.matmul %1, %2, %cst {dimension_numbers = #tpu.dot_dimension_numbers<[1], [0], [0], [1], [0, 0, 1, 1], [], []>} : vector<16x64xf32>, vector<64x256xf32>, vector<16x256xf32> -> vector<16x256xf32>
    %c0_4 = arith.constant 0 : index
    %c0_5 = arith.constant 0 : index
    %4 = vector.load %arg3[%c0_4, %c0_5] : memref<1x256xf32, #tpu.memory_space<vmem>>, vector<1x256xf32>
    %5 = vector.broadcast %4 : vector<1x256xf32> to vector<16x256xf32>
    %6 = arith.addf %3, %5 : vector<16x256xf32>
    %7 = vector.shape_cast %6 : vector<16x256xf32> to vector<2x8x256xf32>
    %c0_6 = arith.constant 0 : index
    %c0_7 = arith.constant 0 : index
    %8 = vector.load %arg2[%c0_6, %c0_7] : memref<64x256xf32, #tpu.memory_space<vmem>>, vector<64x256xf32>
    %cst_8 = arith.constant 0.000000e+00 : f32
    %9 = vector.broadcast %cst_8 : f32 to vector<2x64xf32>
    %cst_9 = arith.constant 0.000000e+00 : f32
    %10 = vector.broadcast %cst_9 : f32 to vector<2x64xf32>
    %11 = vector.extract_strided_slice %7 {offsets = [0, 0, 0], sizes = [2, 1, 256], strides = [1, 1, 1]} : vector<2x8x256xf32> to vector<2x1x256xf32>
    %12 = vector.shape_cast %11 : vector<2x1x256xf32> to vector<2x256xf32>
    %cst_10 = arith.constant dense<0.000000e+00> : vector<2x256xf32>
    %13 = tpu.matmul %9, %8, %cst_10 {dimension_numbers = #tpu.dot_dimension_numbers<[1], [0], [0], [1], [0, 0, 1, 1], [], []>} : vector<2x64xf32>, vector<64x256xf32>, vector<2x256xf32> -> vector<2x256xf32>
    %14 = arith.addf %12, %13 : vector<2x256xf32>
    %15 = vector.extract_strided_slice %14 {offsets = [0, 0], sizes = [2, 192], strides = [1, 1]} : vector<2x256xf32> to vector<2x192xf32>
    %16 = arith.negf %15 : vector<2x192xf32>
    %17 = math.exp %16 : vector<2x192xf32>
    %cst_11 = arith.constant 1.000000e+00 : f32
    %18 = vector.broadcast %cst_11 : f32 to vector<2x192xf32>
    %19 = arith.addf %18, %17 : vector<2x192xf32>
    %20 = arith.divf %18, %19 : vector<2x192xf32>
    %21 = vector.extract_strided_slice %14 {offsets = [0, 192], sizes = [2, 64], strides = [1, 1]} : vector<2x256xf32> to vector<2x64xf32>
    %22 = math.tanh %21 : vector<2x64xf32>
    %23 = vector.extract_strided_slice %20 {offsets = [0, 0], sizes = [2, 64], strides = [1, 1]} : vector<2x192xf32> to vector<2x64xf32>
    %24 = vector.extract_strided_slice %20 {offsets = [0, 64], sizes = [2, 64], strides = [1, 1]} : vector<2x192xf32> to vector<2x64xf32>
    %25 = vector.extract_strided_slice %20 {offsets = [0, 128], sizes = [2, 64], strides = [1, 1]} : vector<2x192xf32> to vector<2x64xf32>
    %26 = arith.mulf %24, %10 : vector<2x64xf32>
    %27 = arith.mulf %23, %22 : vector<2x64xf32>
    %28 = arith.addf %26, %27 : vector<2x64xf32>
    %29 = math.tanh %28 : vector<2x64xf32>
    %30 = arith.mulf %25, %29 : vector<2x64xf32>
    %31 = vector.extract_strided_slice %30 {offsets = [0, 0], sizes = [2, 32], strides = [1, 1]} : vector<2x64xf32> to vector<2x32xf32>
    %c0_12 = arith.constant 0 : index
    %c0_13 = arith.constant 0 : index
    %c0_14 = arith.constant 0 : index
    %32 = vector.load %arg14[%c0_12, %c0_13, %c0_14] : memref<2x8x64xf32, #tpu.memory_space<vmem>>, vector<2x1x32xf32>
    %33 = vector.shape_cast %32 : vector<2x1x32xf32> to vector<2x32xf32>
    %34 = vector.shape_cast %31 : vector<2x32xf32> to vector<2x1x32xf32>
    tpu.vector_store %arg14[%c0_12, %c0_13, %c0_14], %34 {strides = array<i32>} : memref<2x8x64xf32, #tpu.memory_space<vmem>>, vector<2x1x32xf32>,
    %35 = vector.extract_strided_slice %30 {offsets = [0, 32], sizes = [2, 32], strides = [1, 1]} : vector<2x64xf32> to vector<2x32xf32>
    %c0_15 = arith.constant 0 : index
    %c7 = arith.constant 7 : index
    %c32 = arith.constant 32 : index
    %36 = vector.load %arg14[%c0_15, %c7, %c32] : memref<2x8x64xf32, #tpu.memory_space<vmem>>, vector<2x1x32xf32>
    %37 = vector.shape_cast %36 : vector<2x1x32xf32> to vector<2x32xf32>
    %38 = vector.shape_cast %35 : vector<2x32xf32> to vector<2x1x32xf32>
    tpu.vector_store %arg14[%c0_15, %c7, %c32], %38 {strides = array<i32>} : memref<2x8x64xf32, #tpu.memory_space<vmem>>, vector<2x1x32xf32>,
    %39 = vector.extract_strided_slice %7 {offsets = [0, 1, 0], sizes = [2, 1, 256], strides = [1, 1, 1]} : vector<2x8x256xf32> to vector<2x1x256xf32>
    %40 = vector.shape_cast %39 : vector<2x1x256xf32> to vector<2x256xf32>
    %cst_16 = arith.constant dense<0.000000e+00> : vector<2x256xf32>
    %41 = tpu.matmul %30, %8, %cst_16 {dimension_numbers = #tpu.dot_dimension_numbers<[1], [0], [0], [1], [0, 0, 1, 1], [], []>} : vector<2x64xf32>, vector<64x256xf32>, vector<2x256xf32> -> vector<2x256xf32>
    %42 = arith.addf %40, %41 : vector<2x256xf32>
    %43 = vector.extract_strided_slice %42 {offsets = [0, 0], sizes = [2, 192], strides = [1, 1]} : vector<2x256xf32> to vector<2x192xf32>
    %44 = arith.negf %43 : vector<2x192xf32>
    %45 = math.exp %44 : vector<2x192xf32>
    %cst_17 = arith.constant 1.000000e+00 : f32
    %46 = vector.broadcast %cst_17 : f32 to vector<2x192xf32>
    %47 = arith.addf %46, %45 : vector<2x192xf32>
    %48 = arith.divf %46, %47 : vector<2x192xf32>
    %49 = vector.extract_strided_slice %42 {offsets = [0, 192], sizes = [2, 64], strides = [1, 1]} : vector<2x256xf32> to vector<2x64xf32>
    %50 = math.tanh %49 : vector<2x64xf32>
    %51 = vector.extract_strided_slice %48 {offsets = [0, 0], sizes = [2, 64], strides = [1, 1]} : vector<2x192xf32> to vector<2x64xf32>
    %52 = vector.extract_strided_slice %48 {offsets = [0, 64], sizes = [2, 64], strides = [1, 1]} : vector<2x192xf32> to vector<2x64xf32>
    %53 = vector.extract_strided_slice %48 {offsets = [0, 128], sizes = [2, 64], strides = [1, 1]} : vector<2x192xf32> to vector<2x64xf32>
    %54 = arith.mulf %52, %28 : vector<2x64xf32>
    %55 = arith.mulf %51, %50 : vector<2x64xf32>
    %56 = arith.addf %54, %55 : vector<2x64xf32>
    %57 = math.tanh %56 : vector<2x64xf32>
    %58 = arith.mulf %53, %57 : vector<2x64xf32>
    %59 = vector.extract_strided_slice %58 {offsets = [0, 0], sizes = [2, 32], strides = [1, 1]} : vector<2x64xf32> to vector<2x32xf32>
    %c0_18 = arith.constant 0 : index
    %c1 = arith.constant 1 : index
    %c0_19 = arith.constant 0 : index
    %60 = vector.load %arg14[%c0_18, %c1, %c0_19] : memref<2x8x64xf32, #tpu.memory_space<vmem>>, vector<2x1x32xf32>
    %61 = vector.shape_cast %60 : vector<2x1x32xf32> to vector<2x32xf32>
    %62 = vector.shape_cast %59 : vector<2x32xf32> to vector<2x1x32xf32>
    tpu.vector_store %arg14[%c0_18, %c1, %c0_19], %62 {strides = array<i32>} : memref<2x8x64xf32, #tpu.memory_space<vmem>>, vector<2x1x32xf32>,
    %63 = vector.extract_strided_slice %58 {offsets = [0, 32], sizes = [2, 32], strides = [1, 1]} : vector<2x64xf32> to vector<2x32xf32>
    %c0_20 = arith.constant 0 : index
    %c6 = arith.constant 6 : index
    %c32_21 = arith.constant 32 : index
    %64 = vector.load %arg14[%c0_20, %c6, %c32_21] : memref<2x8x64xf32, #tpu.memory_space<vmem>>, vector<2x1x32xf32>
    %65 = vector.shape_cast %64 : vector<2x1x32xf32> to vector<2x32xf32>
    %66 = vector.shape_cast %63 : vector<2x32xf32> to vector<2x1x32xf32>
    tpu.vector_store %arg14[%c0_20, %c6, %c32_21], %66 {strides = array<i32>} : memref<2x8x64xf32, #tpu.memory_space<vmem>>, vector<2x1x32xf32>,
    %67 = vector.extract_strided_slice %7 {offsets = [0, 2, 0], sizes = [2, 1, 256], strides = [1, 1, 1]} : vector<2x8x256xf32> to vector<2x1x256xf32>
    %68 = vector.shape_cast %67 : vector<2x1x256xf32> to vector<2x256xf32>
    %cst_22 = arith.constant dense<0.000000e+00> : vector<2x256xf32>
    %69 = tpu.matmul %58, %8, %cst_22 {dimension_numbers = #tpu.dot_dimension_numbers<[1], [0], [0], [1], [0, 0, 1, 1], [], []>} : vector<2x64xf32>, vector<64x256xf32>, vector<2x256xf32> -> vector<2x256xf32>
    %70 = arith.addf %68, %69 : vector<2x256xf32>
    %71 = vector.extract_strided_slice %70 {offsets = [0, 0], sizes = [2, 192], strides = [1, 1]} : vector<2x256xf32> to vector<2x192xf32>
    %72 = arith.negf %71 : vector<2x192xf32>
    %73 = math.exp %72 : vector<2x192xf32>
    %cst_23 = arith.constant 1.000000e+00 : f32
    %74 = vector.broadcast %cst_23 : f32 to vector<2x192xf32>
    %75 = arith.addf %74, %73 : vector<2x192xf32>
    %76 = arith.divf %74, %75 : vector<2x192xf32>
    %77 = vector.extract_strided_slice %70 {offsets = [0, 192], sizes = [2, 64], strides = [1, 1]} : vector<2x256xf32> to vector<2x64xf32>
    %78 = math.tanh %77 : vector<2x64xf32>
    %79 = vector.extract_strided_slice %76 {offsets = [0, 0], sizes = [2, 64], strides = [1, 1]} : vector<2x192xf32> to vector<2x64xf32>
    %80 = vector.extract_strided_slice %76 {offsets = [0, 64], sizes = [2, 64], strides = [1, 1]} : vector<2x192xf32> to vector<2x64xf32>
    %81 = vector.extract_strided_slice %76 {offsets = [0, 128], sizes = [2, 64], strides = [1, 1]} : vector<2x192xf32> to vector<2x64xf32>
    %82 = arith.mulf %80, %56 : vector<2x64xf32>
    %83 = arith.mulf %79, %78 : vector<2x64xf32>
    %84 = arith.addf %82, %83 : vector<2x64xf32>
    %85 = math.tanh %84 : vector<2x64xf32>
    %86 = arith.mulf %81, %85 : vector<2x64xf32>
    %87 = vector.extract_strided_slice %86 {offsets = [0, 0], sizes = [2, 32], strides = [1, 1]} : vector<2x64xf32> to vector<2x32xf32>
    %c0_24 = arith.constant 0 : index
    %c2 = arith.constant 2 : index
    %c0_25 = arith.constant 0 : index
    %88 = vector.load %arg14[%c0_24, %c2, %c0_25] : memref<2x8x64xf32, #tpu.memory_space<vmem>>, vector<2x1x32xf32>
    %89 = vector.shape_cast %88 : vector<2x1x32xf32> to vector<2x32xf32>
    %90 = vector.shape_cast %87 : vector<2x32xf32> to vector<2x1x32xf32>
    tpu.vector_store %arg14[%c0_24, %c2, %c0_25], %90 {strides = array<i32>} : memref<2x8x64xf32, #tpu.memory_space<vmem>>, vector<2x1x32xf32>,
    %91 = vector.extract_strided_slice %86 {offsets = [0, 32], sizes = [2, 32], strides = [1, 1]} : vector<2x64xf32> to vector<2x32xf32>
    %c0_26 = arith.constant 0 : index
    %c5 = arith.constant 5 : index
    %c32_27 = arith.constant 32 : index
    %92 = vector.load %arg14[%c0_26, %c5, %c32_27] : memref<2x8x64xf32, #tpu.memory_space<vmem>>, vector<2x1x32xf32>
    %93 = vector.shape_cast %92 : vector<2x1x32xf32> to vector<2x32xf32>
    %94 = vector.shape_cast %91 : vector<2x32xf32> to vector<2x1x32xf32>
    tpu.vector_store %arg14[%c0_26, %c5, %c32_27], %94 {strides = array<i32>} : memref<2x8x64xf32, #tpu.memory_space<vmem>>, vector<2x1x32xf32>,
    %95 = vector.extract_strided_slice %7 {offsets = [0, 3, 0], sizes = [2, 1, 256], strides = [1, 1, 1]} : vector<2x8x256xf32> to vector<2x1x256xf32>
    %96 = vector.shape_cast %95 : vector<2x1x256xf32> to vector<2x256xf32>
    %cst_28 = arith.constant dense<0.000000e+00> : vector<2x256xf32>
    %97 = tpu.matmul %86, %8, %cst_28 {dimension_numbers = #tpu.dot_dimension_numbers<[1], [0], [0], [1], [0, 0, 1, 1], [], []>} : vector<2x64xf32>, vector<64x256xf32>, vector<2x256xf32> -> vector<2x256xf32>
    %98 = arith.addf %96, %97 : vector<2x256xf32>
    %99 = vector.extract_strided_slice %98 {offsets = [0, 0], sizes = [2, 192], strides = [1, 1]} : vector<2x256xf32> to vector<2x192xf32>
    %100 = arith.negf %99 : vector<2x192xf32>
    %101 = math.exp %100 : vector<2x192xf32>
    %cst_29 = arith.constant 1.000000e+00 : f32
    %102 = vector.broadcast %cst_29 : f32 to vector<2x192xf32>
    %103 = arith.addf %102, %101 : vector<2x192xf32>
    %104 = arith.divf %102, %103 : vector<2x192xf32>
    %105 = vector.extract_strided_slice %98 {offsets = [0, 192], sizes = [2, 64], strides = [1, 1]} : vector<2x256xf32> to vector<2x64xf32>
    %106 = math.tanh %105 : vector<2x64xf32>
    %107 = vector.extract_strided_slice %104 {offsets = [0, 0], sizes = [2, 64], strides = [1, 1]} : vector<2x192xf32> to vector<2x64xf32>
    %108 = vector.extract_strided_slice %104 {offsets = [0, 64], sizes = [2, 64], strides = [1, 1]} : vector<2x192xf32> to vector<2x64xf32>
    %109 = vector.extract_strided_slice %104 {offsets = [0, 128], sizes = [2, 64], strides = [1, 1]} : vector<2x192xf32> to vector<2x64xf32>
    %110 = arith.mulf %108, %84 : vector<2x64xf32>
    %111 = arith.mulf %107, %106 : vector<2x64xf32>
    %112 = arith.addf %110, %111 : vector<2x64xf32>
    %113 = math.tanh %112 : vector<2x64xf32>
    %114 = arith.mulf %109, %113 : vector<2x64xf32>
    %115 = vector.extract_strided_slice %114 {offsets = [0, 0], sizes = [2, 32], strides = [1, 1]} : vector<2x64xf32> to vector<2x32xf32>
    %c0_30 = arith.constant 0 : index
    %c3 = arith.constant 3 : index
    %c0_31 = arith.constant 0 : index
    %116 = vector.load %arg14[%c0_30, %c3, %c0_31] : memref<2x8x64xf32, #tpu.memory_space<vmem>>, vector<2x1x32xf32>
    %117 = vector.shape_cast %116 : vector<2x1x32xf32> to vector<2x32xf32>
    %118 = vector.shape_cast %115 : vector<2x32xf32> to vector<2x1x32xf32>
    tpu.vector_store %arg14[%c0_30, %c3, %c0_31], %118 {strides = array<i32>} : memref<2x8x64xf32, #tpu.memory_space<vmem>>, vector<2x1x32xf32>,
    %119 = vector.extract_strided_slice %114 {offsets = [0, 32], sizes = [2, 32], strides = [1, 1]} : vector<2x64xf32> to vector<2x32xf32>
    %c0_32 = arith.constant 0 : index
    %c4 = arith.constant 4 : index
    %c32_33 = arith.constant 32 : index
    %120 = vector.load %arg14[%c0_32, %c4, %c32_33] : memref<2x8x64xf32, #tpu.memory_space<vmem>>, vector<2x1x32xf32>
    %121 = vector.shape_cast %120 : vector<2x1x32xf32> to vector<2x32xf32>
    %122 = vector.shape_cast %119 : vector<2x32xf32> to vector<2x1x32xf32>
    tpu.vector_store %arg14[%c0_32, %c4, %c32_33], %122 {strides = array<i32>} : memref<2x8x64xf32, #tpu.memory_space<vmem>>, vector<2x1x32xf32>,
    %123 = vector.extract_strided_slice %7 {offsets = [0, 4, 0], sizes = [2, 1, 256], strides = [1, 1, 1]} : vector<2x8x256xf32> to vector<2x1x256xf32>
    %124 = vector.shape_cast %123 : vector<2x1x256xf32> to vector<2x256xf32>
    %cst_34 = arith.constant dense<0.000000e+00> : vector<2x256xf32>
    %125 = tpu.matmul %114, %8, %cst_34 {dimension_numbers = #tpu.dot_dimension_numbers<[1], [0], [0], [1], [0, 0, 1, 1], [], []>} : vector<2x64xf32>, vector<64x256xf32>, vector<2x256xf32> -> vector<2x256xf32>
    %126 = arith.addf %124, %125 : vector<2x256xf32>
    %127 = vector.extract_strided_slice %126 {offsets = [0, 0], sizes = [2, 192], strides = [1, 1]} : vector<2x256xf32> to vector<2x192xf32>
    %128 = arith.negf %127 : vector<2x192xf32>
    %129 = math.exp %128 : vector<2x192xf32>
    %cst_35 = arith.constant 1.000000e+00 : f32
    %130 = vector.broadcast %cst_35 : f32 to vector<2x192xf32>
    %131 = arith.addf %130, %129 : vector<2x192xf32>
    %132 = arith.divf %130, %131 : vector<2x192xf32>
    %133 = vector.extract_strided_slice %126 {offsets = [0, 192], sizes = [2, 64], strides = [1, 1]} : vector<2x256xf32> to vector<2x64xf32>
    %134 = math.tanh %133 : vector<2x64xf32>
    %135 = vector.extract_strided_slice %132 {offsets = [0, 0], sizes = [2, 64], strides = [1, 1]} : vector<2x192xf32> to vector<2x64xf32>
    %136 = vector.extract_strided_slice %132 {offsets = [0, 64], sizes = [2, 64], strides = [1, 1]} : vector<2x192xf32> to vector<2x64xf32>
    %137 = vector.extract_strided_slice %132 {offsets = [0, 128], sizes = [2, 64], strides = [1, 1]} : vector<2x192xf32> to vector<2x64xf32>
    %138 = arith.mulf %136, %112 : vector<2x64xf32>
    %139 = arith.mulf %135, %134 : vector<2x64xf32>
    %140 = arith.addf %138, %139 : vector<2x64xf32>
    %141 = math.tanh %140 : vector<2x64xf32>
    %142 = arith.mulf %137, %141 : vector<2x64xf32>
    %143 = vector.extract_strided_slice %142 {offsets = [0, 0], sizes = [2, 32], strides = [1, 1]} : vector<2x64xf32> to vector<2x32xf32>
    %c0_36 = arith.constant 0 : index
    %c4_37 = arith.constant 4 : index
    %c0_38 = arith.constant 0 : index
    %144 = vector.load %arg14[%c0_36, %c4_37, %c0_38] : memref<2x8x64xf32, #tpu.memory_space<vmem>>, vector<2x1x32xf32>
    %145 = vector.shape_cast %144 : vector<2x1x32xf32> to vector<2x32xf32>
    %146 = vector.shape_cast %143 : vector<2x32xf32> to vector<2x1x32xf32>
    tpu.vector_store %arg14[%c0_36, %c4_37, %c0_38], %146 {strides = array<i32>} : memref<2x8x64xf32, #tpu.memory_space<vmem>>, vector<2x1x32xf32>,
    %147 = vector.extract_strided_slice %142 {offsets = [0, 32], sizes = [2, 32], strides = [1, 1]} : vector<2x64xf32> to vector<2x32xf32>
    %c0_39 = arith.constant 0 : index
    %c3_40 = arith.constant 3 : index
    %c32_41 = arith.constant 32 : index
    %148 = vector.load %arg14[%c0_39, %c3_40, %c32_41] : memref<2x8x64xf32, #tpu.memory_space<vmem>>, vector<2x1x32xf32>
    %149 = vector.shape_cast %148 : vector<2x1x32xf32> to vector<2x32xf32>
    %150 = vector.shape_cast %147 : vector<2x32xf32> to vector<2x1x32xf32>
    tpu.vector_store %arg14[%c0_39, %c3_40, %c32_41], %150 {strides = array<i32>} : memref<2x8x64xf32, #tpu.memory_space<vmem>>, vector<2x1x32xf32>,
    %151 = vector.extract_strided_slice %7 {offsets = [0, 5, 0], sizes = [2, 1, 256], strides = [1, 1, 1]} : vector<2x8x256xf32> to vector<2x1x256xf32>
    %152 = vector.shape_cast %151 : vector<2x1x256xf32> to vector<2x256xf32>
    %cst_42 = arith.constant dense<0.000000e+00> : vector<2x256xf32>
    %153 = tpu.matmul %142, %8, %cst_42 {dimension_numbers = #tpu.dot_dimension_numbers<[1], [0], [0], [1], [0, 0, 1, 1], [], []>} : vector<2x64xf32>, vector<64x256xf32>, vector<2x256xf32> -> vector<2x256xf32>
    %154 = arith.addf %152, %153 : vector<2x256xf32>
    %155 = vector.extract_strided_slice %154 {offsets = [0, 0], sizes = [2, 192], strides = [1, 1]} : vector<2x256xf32> to vector<2x192xf32>
    %156 = arith.negf %155 : vector<2x192xf32>
    %157 = math.exp %156 : vector<2x192xf32>
    %cst_43 = arith.constant 1.000000e+00 : f32
    %158 = vector.broadcast %cst_43 : f32 to vector<2x192xf32>
    %159 = arith.addf %158, %157 : vector<2x192xf32>
    %160 = arith.divf %158, %159 : vector<2x192xf32>
    %161 = vector.extract_strided_slice %154 {offsets = [0, 192], sizes = [2, 64], strides = [1, 1]} : vector<2x256xf32> to vector<2x64xf32>
    %162 = math.tanh %161 : vector<2x64xf32>
    %163 = vector.extract_strided_slice %160 {offsets = [0, 0], sizes = [2, 64], strides = [1, 1]} : vector<2x192xf32> to vector<2x64xf32>
    %164 = vector.extract_strided_slice %160 {offsets = [0, 64], sizes = [2, 64], strides = [1, 1]} : vector<2x192xf32> to vector<2x64xf32>
    %165 = vector.extract_strided_slice %160 {offsets = [0, 128], sizes = [2, 64], strides = [1, 1]} : vector<2x192xf32> to vector<2x64xf32>
    %166 = arith.mulf %164, %140 : vector<2x64xf32>
    %167 = arith.mulf %163, %162 : vector<2x64xf32>
    %168 = arith.addf %166, %167 : vector<2x64xf32>
    %169 = math.tanh %168 : vector<2x64xf32>
    %170 = arith.mulf %165, %169 : vector<2x64xf32>
    %171 = vector.extract_strided_slice %170 {offsets = [0, 0], sizes = [2, 32], strides = [1, 1]} : vector<2x64xf32> to vector<2x32xf32>
    %c0_44 = arith.constant 0 : index
    %c5_45 = arith.constant 5 : index
    %c0_46 = arith.constant 0 : index
    %172 = vector.load %arg14[%c0_44, %c5_45, %c0_46] : memref<2x8x64xf32, #tpu.memory_space<vmem>>, vector<2x1x32xf32>
    %173 = vector.shape_cast %172 : vector<2x1x32xf32> to vector<2x32xf32>
    %174 = vector.shape_cast %171 : vector<2x32xf32> to vector<2x1x32xf32>
    tpu.vector_store %arg14[%c0_44, %c5_45, %c0_46], %174 {strides = array<i32>} : memref<2x8x64xf32, #tpu.memory_space<vmem>>, vector<2x1x32xf32>,
    %175 = vector.extract_strided_slice %170 {offsets = [0, 32], sizes = [2, 32], strides = [1, 1]} : vector<2x64xf32> to vector<2x32xf32>
    %c0_47 = arith.constant 0 : index
    %c2_48 = arith.constant 2 : index
    %c32_49 = arith.constant 32 : index
    %176 = vector.load %arg14[%c0_47, %c2_48, %c32_49] : memref<2x8x64xf32, #tpu.memory_space<vmem>>, vector<2x1x32xf32>
    %177 = vector.shape_cast %176 : vector<2x1x32xf32> to vector<2x32xf32>
    %178 = vector.shape_cast %175 : vector<2x32xf32> to vector<2x1x32xf32>
    tpu.vector_store %arg14[%c0_47, %c2_48, %c32_49], %178 {strides = array<i32>} : memref<2x8x64xf32, #tpu.memory_space<vmem>>, vector<2x1x32xf32>,
    %179 = vector.extract_strided_slice %7 {offsets = [0, 6, 0], sizes = [2, 1, 256], strides = [1, 1, 1]} : vector<2x8x256xf32> to vector<2x1x256xf32>
    %180 = vector.shape_cast %179 : vector<2x1x256xf32> to vector<2x256xf32>
    %cst_50 = arith.constant dense<0.000000e+00> : vector<2x256xf32>
    %181 = tpu.matmul %170, %8, %cst_50 {dimension_numbers = #tpu.dot_dimension_numbers<[1], [0], [0], [1], [0, 0, 1, 1], [], []>} : vector<2x64xf32>, vector<64x256xf32>, vector<2x256xf32> -> vector<2x256xf32>
    %182 = arith.addf %180, %181 : vector<2x256xf32>
    %183 = vector.extract_strided_slice %182 {offsets = [0, 0], sizes = [2, 192], strides = [1, 1]} : vector<2x256xf32> to vector<2x192xf32>
    %184 = arith.negf %183 : vector<2x192xf32>
    %185 = math.exp %184 : vector<2x192xf32>
    %cst_51 = arith.constant 1.000000e+00 : f32
    %186 = vector.broadcast %cst_51 : f32 to vector<2x192xf32>
    %187 = arith.addf %186, %185 : vector<2x192xf32>
    %188 = arith.divf %186, %187 : vector<2x192xf32>
    %189 = vector.extract_strided_slice %182 {offsets = [0, 192], sizes = [2, 64], strides = [1, 1]} : vector<2x256xf32> to vector<2x64xf32>
    %190 = math.tanh %189 : vector<2x64xf32>
    %191 = vector.extract_strided_slice %188 {offsets = [0, 0], sizes = [2, 64], strides = [1, 1]} : vector<2x192xf32> to vector<2x64xf32>
    %192 = vector.extract_strided_slice %188 {offsets = [0, 64], sizes = [2, 64], strides = [1, 1]} : vector<2x192xf32> to vector<2x64xf32>
    %193 = vector.extract_strided_slice %188 {offsets = [0, 128], sizes = [2, 64], strides = [1, 1]} : vector<2x192xf32> to vector<2x64xf32>
    %194 = arith.mulf %192, %168 : vector<2x64xf32>
    %195 = arith.mulf %191, %190 : vector<2x64xf32>
    %196 = arith.addf %194, %195 : vector<2x64xf32>
    %197 = math.tanh %196 : vector<2x64xf32>
    %198 = arith.mulf %193, %197 : vector<2x64xf32>
    %199 = vector.extract_strided_slice %198 {offsets = [0, 0], sizes = [2, 32], strides = [1, 1]} : vector<2x64xf32> to vector<2x32xf32>
    %c0_52 = arith.constant 0 : index
    %c6_53 = arith.constant 6 : index
    %c0_54 = arith.constant 0 : index
    %200 = vector.load %arg14[%c0_52, %c6_53, %c0_54] : memref<2x8x64xf32, #tpu.memory_space<vmem>>, vector<2x1x32xf32>
    %201 = vector.shape_cast %200 : vector<2x1x32xf32> to vector<2x32xf32>
    %202 = vector.shape_cast %199 : vector<2x32xf32> to vector<2x1x32xf32>
    tpu.vector_store %arg14[%c0_52, %c6_53, %c0_54], %202 {strides = array<i32>} : memref<2x8x64xf32, #tpu.memory_space<vmem>>, vector<2x1x32xf32>,
    %203 = vector.extract_strided_slice %198 {offsets = [0, 32], sizes = [2, 32], strides = [1, 1]} : vector<2x64xf32> to vector<2x32xf32>
    %c0_55 = arith.constant 0 : index
    %c1_56 = arith.constant 1 : index
    %c32_57 = arith.constant 32 : index
    %204 = vector.load %arg14[%c0_55, %c1_56, %c32_57] : memref<2x8x64xf32, #tpu.memory_space<vmem>>, vector<2x1x32xf32>
    %205 = vector.shape_cast %204 : vector<2x1x32xf32> to vector<2x32xf32>
    %206 = vector.shape_cast %203 : vector<2x32xf32> to vector<2x1x32xf32>
    tpu.vector_store %arg14[%c0_55, %c1_56, %c32_57], %206 {strides = array<i32>} : memref<2x8x64xf32, #tpu.memory_space<vmem>>, vector<2x1x32xf32>,
    %207 = vector.extract_strided_slice %7 {offsets = [0, 7, 0], sizes = [2, 1, 256], strides = [1, 1, 1]} : vector<2x8x256xf32> to vector<2x1x256xf32>
    %208 = vector.shape_cast %207 : vector<2x1x256xf32> to vector<2x256xf32>
    %cst_58 = arith.constant dense<0.000000e+00> : vector<2x256xf32>
    %209 = tpu.matmul %198, %8, %cst_58 {dimension_numbers = #tpu.dot_dimension_numbers<[1], [0], [0], [1], [0, 0, 1, 1], [], []>} : vector<2x64xf32>, vector<64x256xf32>, vector<2x256xf32> -> vector<2x256xf32>
    %210 = arith.addf %208, %209 : vector<2x256xf32>
    %211 = vector.extract_strided_slice %210 {offsets = [0, 0], sizes = [2, 192], strides = [1, 1]} : vector<2x256xf32> to vector<2x192xf32>
    %212 = arith.negf %211 : vector<2x192xf32>
    %213 = math.exp %212 : vector<2x192xf32>
    %cst_59 = arith.constant 1.000000e+00 : f32
    %214 = vector.broadcast %cst_59 : f32 to vector<2x192xf32>
    %215 = arith.addf %214, %213 : vector<2x192xf32>
    %216 = arith.divf %214, %215 : vector<2x192xf32>
    %217 = vector.extract_strided_slice %210 {offsets = [0, 192], sizes = [2, 64], strides = [1, 1]} : vector<2x256xf32> to vector<2x64xf32>
    %218 = math.tanh %217 : vector<2x64xf32>
    %219 = vector.extract_strided_slice %216 {offsets = [0, 0], sizes = [2, 64], strides = [1, 1]} : vector<2x192xf32> to vector<2x64xf32>
    %220 = vector.extract_strided_slice %216 {offsets = [0, 64], sizes = [2, 64], strides = [1, 1]} : vector<2x192xf32> to vector<2x64xf32>
    %221 = vector.extract_strided_slice %216 {offsets = [0, 128], sizes = [2, 64], strides = [1, 1]} : vector<2x192xf32> to vector<2x64xf32>
    %222 = arith.mulf %220, %196 : vector<2x64xf32>
    %223 = arith.mulf %219, %218 : vector<2x64xf32>
    %224 = arith.addf %222, %223 : vector<2x64xf32>
    %225 = math.tanh %224 : vector<2x64xf32>
    %226 = arith.mulf %221, %225 : vector<2x64xf32>
    %227 = vector.extract_strided_slice %226 {offsets = [0, 0], sizes = [2, 32], strides = [1, 1]} : vector<2x64xf32> to vector<2x32xf32>
    %c0_60 = arith.constant 0 : index
    %c7_61 = arith.constant 7 : index
    %c0_62 = arith.constant 0 : index
    %228 = vector.load %arg14[%c0_60, %c7_61, %c0_62] : memref<2x8x64xf32, #tpu.memory_space<vmem>>, vector<2x1x32xf32>
    %229 = vector.shape_cast %228 : vector<2x1x32xf32> to vector<2x32xf32>
    %230 = vector.shape_cast %227 : vector<2x32xf32> to vector<2x1x32xf32>
    tpu.vector_store %arg14[%c0_60, %c7_61, %c0_62], %230 {strides = array<i32>} : memref<2x8x64xf32, #tpu.memory_space<vmem>>, vector<2x1x32xf32>,
    %231 = vector.extract_strided_slice %226 {offsets = [0, 32], sizes = [2, 32], strides = [1, 1]} : vector<2x64xf32> to vector<2x32xf32>
    %c0_63 = arith.constant 0 : index
    %c0_64 = arith.constant 0 : index
    %c32_65 = arith.constant 32 : index
    %232 = vector.load %arg14[%c0_63, %c0_64, %c32_65] : memref<2x8x64xf32, #tpu.memory_space<vmem>>, vector<2x1x32xf32>
    %233 = vector.shape_cast %232 : vector<2x1x32xf32> to vector<2x32xf32>
    %234 = vector.shape_cast %231 : vector<2x32xf32> to vector<2x1x32xf32>
    tpu.vector_store %arg14[%c0_63, %c0_64, %c32_65], %234 {strides = array<i32>} : memref<2x8x64xf32, #tpu.memory_space<vmem>>, vector<2x1x32xf32>,
    %c0_66 = arith.constant 0 : index
    %c0_67 = arith.constant 0 : index
    %c0_68 = arith.constant 0 : index
    %235 = vector.load %arg14[%c0_66, %c0_67, %c0_68] : memref<2x8x64xf32, #tpu.memory_space<vmem>>, vector<2x8x64xf32>
    %c0_69 = arith.constant 0 : index
    %c0_70 = arith.constant 0 : index
    %c0_71 = arith.constant 0 : index
    %236 = vector.load %arg9[%c0_69, %c0_70, %c0_71] : memref<2x8x1xf32, #tpu.memory_space<vmem>>, vector<2x8x1xf32>
    "tpu.trace_start"() <{level = 10 : i32, message = "btd,bsd->bts"}> : () -> ()
    %cst_72 = arith.constant dense<0.000000e+00> : vector<2x8x8xf32>
    %237 = tpu.matmul %235, %235, %cst_72 {dimension_numbers = #tpu.dot_dimension_numbers<[2], [2], [1], [1], [0, 0, 0, 1, 1, 1], [0], [0]>} : vector<2x8x64xf32>, vector<2x8x64xf32>, vector<2x8x8xf32> -> vector<2x8x8xf32>
    "tpu.trace_stop"() : () -> ()
    %cst_73 = arith.constant dense<0xFF800000> : vector<2x8xf32>
    %238 = vector.multi_reduction <maximumf>, %237, %cst_73 [2] : vector<2x8x8xf32> to vector<2x8xf32>
    %239 = vector.shape_cast %238 : vector<2x8xf32> to vector<2x8x1xf32>
    %240 = vector.broadcast %239 : vector<2x8x1xf32> to vector<2x8x8xf32>
    %241 = arith.subf %237, %240 : vector<2x8x8xf32>
    %242 = math.exp %241 : vector<2x8x8xf32>
    %cst_74 = arith.constant dense<0.000000e+00> : vector<2x8xf32>
    %243 = vector.multi_reduction <add>, %242, %cst_74 [2] : vector<2x8x8xf32> to vector<2x8xf32>
    %244 = vector.shape_cast %243 : vector<2x8xf32> to vector<2x8x1xf32>
    %245 = vector.broadcast %244 : vector<2x8x1xf32> to vector<2x8x8xf32>
    %246 = arith.divf %242, %245 : vector<2x8x8xf32>
    %c0_75 = arith.constant 0 : index
    %c0_76 = arith.constant 0 : index
    %c0_77 = arith.constant 0 : index
    %247 = vector.load %arg13[%c0_75, %c0_76, %c0_77] : memref<2x8x8xf32, #tpu.memory_space<vmem>>, vector<2x8x8xf32>
    tpu.vector_store %arg13[%c0_75, %c0_76, %c0_77], %246 {strides = array<i32>} : memref<2x8x8xf32, #tpu.memory_space<vmem>>, vector<2x8x8xf32>,
    "tpu.trace_start"() <{level = 10 : i32, message = "bts,bsd->btd"}> : () -> ()
    %cst_78 = arith.constant dense<0.000000e+00> : vector<2x8x64xf32>
    %248 = tpu.matmul %246, %235, %cst_78 {dimension_numbers = #tpu.dot_dimension_numbers<[2], [1], [1], [2], [0, 0, 0, 1, 1, 2], [0], [0]>} : vector<2x8x8xf32>, vector<2x8x64xf32>, vector<2x8x64xf32> -> vector<2x8x64xf32>
    "tpu.trace_stop"() : () -> ()
    %249 = vector.broadcast %236 : vector<2x8x1xf32> to vector<2x8x64xf32>
    %250 = arith.mulf %248, %249 : vector<2x8x64xf32>
    %251 = vector.shape_cast %250 : vector<2x8x64xf32> to vector<16x64xf32>
    %c0_79 = arith.constant 0 : index
    %c0_80 = arith.constant 0 : index
    %252 = vector.load %arg4[%c0_79, %c0_80] : memref<64x8xf32, #tpu.memory_space<vmem>>, vector<64x8xf32>
    %cst_81 = arith.constant dense<0.000000e+00> : vector<16x8xf32>
    %253 = tpu.matmul %251, %252, %cst_81 {dimension_numbers = #tpu.dot_dimension_numbers<[1], [0], [0], [1], [0, 0, 1, 1], [], []>} : vector<16x64xf32>, vector<64x8xf32>, vector<16x8xf32> -> vector<16x8xf32>
    %c0_82 = arith.constant 0 : index
    %c0_83 = arith.constant 0 : index
    %254 = vector.load %arg5[%c0_82, %c0_83] : memref<1x8xf32, #tpu.memory_space<vmem>>, vector<1x8xf32>
    %255 = vector.broadcast %254 : vector<1x8xf32> to vector<16x8xf32>
    %256 = arith.addf %253, %255 : vector<16x8xf32>
    %257 = vector.shape_cast %256 : vector<16x8xf32> to vector<2x8x8xf32>
    %c0_84 = arith.constant 0 : index
    %c0_85 = arith.constant 0 : index
    %258 = vector.load %arg6[%c0_84, %c0_85] : memref<8x8xf32, #tpu.memory_space<vmem>>, vector<8x8xf32>
    %259 = vector.shape_cast %258 : vector<8x8xf32> to vector<1x8x8xf32>
    %c0_86 = arith.constant 0 : index
    %c0_87 = arith.constant 0 : index
    %260 = vector.load %arg7[%c0_86, %c0_87] : memref<1x8xf32, #tpu.memory_space<vmem>>, vector<1x8xf32>
    %c0_88 = arith.constant 0 : index
    %c0_89 = arith.constant 0 : index
    %261 = vector.load %arg8[%c0_88, %c0_89] : memref<1x8xf32, #tpu.memory_space<vmem>>, vector<1x8xf32>
    %262 = vector.extract_strided_slice %257 {offsets = [0, 0, 0], sizes = [2, 1, 8], strides = [1, 1, 1]} : vector<2x8x8xf32> to vector<2x1x8xf32>
    %263 = vector.shape_cast %262 : vector<2x1x8xf32> to vector<2x8xf32>
    %264 = vector.broadcast %260 : vector<1x8xf32> to vector<2x8xf32>
    %265 = arith.addf %264, %263 : vector<2x8xf32>
    %266 = vector.extract_strided_slice %257 {offsets = [0, 1, 0], sizes = [2, 1, 8], strides = [1, 1, 1]} : vector<2x8x8xf32> to vector<2x1x8xf32>
    %267 = vector.shape_cast %266 : vector<2x1x8xf32> to vector<2x8xf32>
    %268 = vector.shape_cast %265 : vector<2x8xf32> to vector<2x8x1xf32>
    %269 = vector.broadcast %268 : vector<2x8x1xf32> to vector<2x8x8xf32>
    %270 = vector.broadcast %259 : vector<1x8x8xf32> to vector<2x8x8xf32>
    %271 = arith.addf %269, %270 : vector<2x8x8xf32>
    %272 = vector.shape_cast %267 : vector<2x8xf32> to vector<2x1x8xf32>
    %273 = vector.broadcast %272 : vector<2x1x8xf32> to vector<2x8x8xf32>
    %274 = arith.addf %271, %273 : vector<2x8x8xf32>
    %cst_90 = arith.constant dense<0xFF800000> : vector<2x8xf32>
    %275 = vector.multi_reduction <maximumf>, %274, %cst_90 [1] : vector<2x8x8xf32> to vector<2x8xf32>
    %276 = vector.shape_cast %275 : vector<2x8xf32> to vector<2x1x8xf32>
    %277 = vector.broadcast %276 : vector<2x1x8xf32> to vector<2x8x8xf32>
    %278 = arith.subf %274, %277 : vector<2x8x8xf32>
    %279 = math.exp %278 : vector<2x8x8xf32>
    %cst_91 = arith.constant dense<0.000000e+00> : vector<2x8xf32>
    %280 = vector.multi_reduction <add>, %279, %cst_91 [1] : vector<2x8x8xf32> to vector<2x8xf32>
    %281 = math.log %280 : vector<2x8xf32>
    %282 = vector.shape_cast %276 : vector<2x1x8xf32> to vector<2x8xf32>
    %283 = arith.addf %281, %282 : vector<2x8xf32>
    %284 = vector.extract_strided_slice %236 {offsets = [0, 1, 0], sizes = [2, 1, 1], strides = [1, 1, 1]} : vector<2x8x1xf32> to vector<2x1x1xf32>
    %285 = vector.shape_cast %284 : vector<2x1x1xf32> to vector<2x1xf32>
    %cst_92 = arith.constant 0.000000e+00 : f32
    %286 = vector.broadcast %cst_92 : f32 to vector<2x1xf32>
    %287 = arith.cmpf ogt, %285, %286 : vector<2x1xf32>
    %288 = vector.shape_cast %287 : vector<2x1xi1> to vector<2x1xi1>
    %289 = vector.broadcast %288 : vector<2x1xi1> to vector<2x8xi1>
    %290 = arith.select %289, %283, %265 : vector<2x8xi1>, vector<2x8xf32>
    %291 = vector.extract_strided_slice %257 {offsets = [0, 2, 0], sizes = [2, 1, 8], strides = [1, 1, 1]} : vector<2x8x8xf32> to vector<2x1x8xf32>
    %292 = vector.shape_cast %291 : vector<2x1x8xf32> to vector<2x8xf32>
    %293 = vector.shape_cast %290 : vector<2x8xf32> to vector<2x8x1xf32>
    %294 = vector.broadcast %293 : vector<2x8x1xf32> to vector<2x8x8xf32>
    %295 = vector.broadcast %259 : vector<1x8x8xf32> to vector<2x8x8xf32>
    %296 = arith.addf %294, %295 : vector<2x8x8xf32>
    %297 = vector.shape_cast %292 : vector<2x8xf32> to vector<2x1x8xf32>
    %298 = vector.broadcast %297 : vector<2x1x8xf32> to vector<2x8x8xf32>
    %299 = arith.addf %296, %298 : vector<2x8x8xf32>
    %cst_93 = arith.constant dense<0xFF800000> : vector<2x8xf32>
    %300 = vector.multi_reduction <maximumf>, %299, %cst_93 [1] : vector<2x8x8xf32> to vector<2x8xf32>
    %301 = vector.shape_cast %300 : vector<2x8xf32> to vector<2x1x8xf32>
    %302 = vector.broadcast %301 : vector<2x1x8xf32> to vector<2x8x8xf32>
    %303 = arith.subf %299, %302 : vector<2x8x8xf32>
    %304 = math.exp %303 : vector<2x8x8xf32>
    %cst_94 = arith.constant dense<0.000000e+00> : vector<2x8xf32>
    %305 = vector.multi_reduction <add>, %304, %cst_94 [1] : vector<2x8x8xf32> to vector<2x8xf32>
    %306 = math.log %305 : vector<2x8xf32>
    %307 = vector.shape_cast %301 : vector<2x1x8xf32> to vector<2x8xf32>
    %308 = arith.addf %306, %307 : vector<2x8xf32>
    %309 = vector.extract_strided_slice %236 {offsets = [0, 2, 0], sizes = [2, 1, 1], strides = [1, 1, 1]} : vector<2x8x1xf32> to vector<2x1x1xf32>
    %310 = vector.shape_cast %309 : vector<2x1x1xf32> to vector<2x1xf32>
    %cst_95 = arith.constant 0.000000e+00 : f32
    %311 = vector.broadcast %cst_95 : f32 to vector<2x1xf32>
    %312 = arith.cmpf ogt, %310, %311 : vector<2x1xf32>
    %313 = vector.shape_cast %312 : vector<2x1xi1> to vector<2x1xi1>
    %314 = vector.broadcast %313 : vector<2x1xi1> to vector<2x8xi1>
    %315 = arith.select %314, %308, %290 : vector<2x8xi1>, vector<2x8xf32>
    %316 = vector.extract_strided_slice %257 {offsets = [0, 3, 0], sizes = [2, 1, 8], strides = [1, 1, 1]} : vector<2x8x8xf32> to vector<2x1x8xf32>
    %317 = vector.shape_cast %316 : vector<2x1x8xf32> to vector<2x8xf32>
    %318 = vector.shape_cast %315 : vector<2x8xf32> to vector<2x8x1xf32>
    %319 = vector.broadcast %318 : vector<2x8x1xf32> to vector<2x8x8xf32>
    %320 = vector.broadcast %259 : vector<1x8x8xf32> to vector<2x8x8xf32>
    %321 = arith.addf %319, %320 : vector<2x8x8xf32>
    %322 = vector.shape_cast %317 : vector<2x8xf32> to vector<2x1x8xf32>
    %323 = vector.broadcast %322 : vector<2x1x8xf32> to vector<2x8x8xf32>
    %324 = arith.addf %321, %323 : vector<2x8x8xf32>
    %cst_96 = arith.constant dense<0xFF800000> : vector<2x8xf32>
    %325 = vector.multi_reduction <maximumf>, %324, %cst_96 [1] : vector<2x8x8xf32> to vector<2x8xf32>
    %326 = vector.shape_cast %325 : vector<2x8xf32> to vector<2x1x8xf32>
    %327 = vector.broadcast %326 : vector<2x1x8xf32> to vector<2x8x8xf32>
    %328 = arith.subf %324, %327 : vector<2x8x8xf32>
    %329 = math.exp %328 : vector<2x8x8xf32>
    %cst_97 = arith.constant dense<0.000000e+00> : vector<2x8xf32>
    %330 = vector.multi_reduction <add>, %329, %cst_97 [1] : vector<2x8x8xf32> to vector<2x8xf32>
    %331 = math.log %330 : vector<2x8xf32>
    %332 = vector.shape_cast %326 : vector<2x1x8xf32> to vector<2x8xf32>
    %333 = arith.addf %331, %332 : vector<2x8xf32>
    %334 = vector.extract_strided_slice %236 {offsets = [0, 3, 0], sizes = [2, 1, 1], strides = [1, 1, 1]} : vector<2x8x1xf32> to vector<2x1x1xf32>
    %335 = vector.shape_cast %334 : vector<2x1x1xf32> to vector<2x1xf32>
    %cst_98 = arith.constant 0.000000e+00 : f32
    %336 = vector.broadcast %cst_98 : f32 to vector<2x1xf32>
    %337 = arith.cmpf ogt, %335, %336 : vector<2x1xf32>
    %338 = vector.shape_cast %337 : vector<2x1xi1> to vector<2x1xi1>
    %339 = vector.broadcast %338 : vector<2x1xi1> to vector<2x8xi1>
    %340 = arith.select %339, %333, %315 : vector<2x8xi1>, vector<2x8xf32>
    %341 = vector.extract_strided_slice %257 {offsets = [0, 4, 0], sizes = [2, 1, 8], strides = [1, 1, 1]} : vector<2x8x8xf32> to vector<2x1x8xf32>
    %342 = vector.shape_cast %341 : vector<2x1x8xf32> to vector<2x8xf32>
    %343 = vector.shape_cast %340 : vector<2x8xf32> to vector<2x8x1xf32>
    %344 = vector.broadcast %343 : vector<2x8x1xf32> to vector<2x8x8xf32>
    %345 = vector.broadcast %259 : vector<1x8x8xf32> to vector<2x8x8xf32>
    %346 = arith.addf %344, %345 : vector<2x8x8xf32>
    %347 = vector.shape_cast %342 : vector<2x8xf32> to vector<2x1x8xf32>
    %348 = vector.broadcast %347 : vector<2x1x8xf32> to vector<2x8x8xf32>
    %349 = arith.addf %346, %348 : vector<2x8x8xf32>
    %cst_99 = arith.constant dense<0xFF800000> : vector<2x8xf32>
    %350 = vector.multi_reduction <maximumf>, %349, %cst_99 [1] : vector<2x8x8xf32> to vector<2x8xf32>
    %351 = vector.shape_cast %350 : vector<2x8xf32> to vector<2x1x8xf32>
    %352 = vector.broadcast %351 : vector<2x1x8xf32> to vector<2x8x8xf32>
    %353 = arith.subf %349, %352 : vector<2x8x8xf32>
    %354 = math.exp %353 : vector<2x8x8xf32>
    %cst_100 = arith.constant dense<0.000000e+00> : vector<2x8xf32>
    %355 = vector.multi_reduction <add>, %354, %cst_100 [1] : vector<2x8x8xf32> to vector<2x8xf32>
    %356 = math.log %355 : vector<2x8xf32>
    %357 = vector.shape_cast %351 : vector<2x1x8xf32> to vector<2x8xf32>
    %358 = arith.addf %356, %357 : vector<2x8xf32>
    %359 = vector.extract_strided_slice %236 {offsets = [0, 4, 0], sizes = [2, 1, 1], strides = [1, 1, 1]} : vector<2x8x1xf32> to vector<2x1x1xf32>
    %360 = vector.shape_cast %359 : vector<2x1x1xf32> to vector<2x1xf32>
    %cst_101 = arith.constant 0.000000e+00 : f32
    %361 = vector.broadcast %cst_101 : f32 to vector<2x1xf32>
    %362 = arith.cmpf ogt, %360, %361 : vector<2x1xf32>
    %363 = vector.shape_cast %362 : vector<2x1xi1> to vector<2x1xi1>
    %364 = vector.broadcast %363 : vector<2x1xi1> to vector<2x8xi1>
    %365 = arith.select %364, %358, %340 : vector<2x8xi1>, vector<2x8xf32>
    %366 = vector.extract_strided_slice %257 {offsets = [0, 5, 0], sizes = [2, 1, 8], strides = [1, 1, 1]} : vector<2x8x8xf32> to vector<2x1x8xf32>
    %367 = vector.shape_cast %366 : vector<2x1x8xf32> to vector<2x8xf32>
    %368 = vector.shape_cast %365 : vector<2x8xf32> to vector<2x8x1xf32>
    %369 = vector.broadcast %368 : vector<2x8x1xf32> to vector<2x8x8xf32>
    %370 = vector.broadcast %259 : vector<1x8x8xf32> to vector<2x8x8xf32>
    %371 = arith.addf %369, %370 : vector<2x8x8xf32>
    %372 = vector.shape_cast %367 : vector<2x8xf32> to vector<2x1x8xf32>
    %373 = vector.broadcast %372 : vector<2x1x8xf32> to vector<2x8x8xf32>
    %374 = arith.addf %371, %373 : vector<2x8x8xf32>
    %cst_102 = arith.constant dense<0xFF800000> : vector<2x8xf32>
    %375 = vector.multi_reduction <maximumf>, %374, %cst_102 [1] : vector<2x8x8xf32> to vector<2x8xf32>
    %376 = vector.shape_cast %375 : vector<2x8xf32> to vector<2x1x8xf32>
    %377 = vector.broadcast %376 : vector<2x1x8xf32> to vector<2x8x8xf32>
    %378 = arith.subf %374, %377 : vector<2x8x8xf32>
    %379 = math.exp %378 : vector<2x8x8xf32>
    %cst_103 = arith.constant dense<0.000000e+00> : vector<2x8xf32>
    %380 = vector.multi_reduction <add>, %379, %cst_103 [1] : vector<2x8x8xf32> to vector<2x8xf32>
    %381 = math.log %380 : vector<2x8xf32>
    %382 = vector.shape_cast %376 : vector<2x1x8xf32> to vector<2x8xf32>
    %383 = arith.addf %381, %382 : vector<2x8xf32>
    %384 = vector.extract_strided_slice %236 {offsets = [0, 5, 0], sizes = [2, 1, 1], strides = [1, 1, 1]} : vector<2x8x1xf32> to vector<2x1x1xf32>
    %385 = vector.shape_cast %384 : vector<2x1x1xf32> to vector<2x1xf32>
    %cst_104 = arith.constant 0.000000e+00 : f32
    %386 = vector.broadcast %cst_104 : f32 to vector<2x1xf32>
    %387 = arith.cmpf ogt, %385, %386 : vector<2x1xf32>
    %388 = vector.shape_cast %387 : vector<2x1xi1> to vector<2x1xi1>
    %389 = vector.broadcast %388 : vector<2x1xi1> to vector<2x8xi1>
    %390 = arith.select %389, %383, %365 : vector<2x8xi1>, vector<2x8xf32>
    %391 = vector.extract_strided_slice %257 {offsets = [0, 6, 0], sizes = [2, 1, 8], strides = [1, 1, 1]} : vector<2x8x8xf32> to vector<2x1x8xf32>
    %392 = vector.shape_cast %391 : vector<2x1x8xf32> to vector<2x8xf32>
    %393 = vector.shape_cast %390 : vector<2x8xf32> to vector<2x8x1xf32>
    %394 = vector.broadcast %393 : vector<2x8x1xf32> to vector<2x8x8xf32>
    %395 = vector.broadcast %259 : vector<1x8x8xf32> to vector<2x8x8xf32>
    %396 = arith.addf %394, %395 : vector<2x8x8xf32>
    %397 = vector.shape_cast %392 : vector<2x8xf32> to vector<2x1x8xf32>
    %398 = vector.broadcast %397 : vector<2x1x8xf32> to vector<2x8x8xf32>
    %399 = arith.addf %396, %398 : vector<2x8x8xf32>
    %cst_105 = arith.constant dense<0xFF800000> : vector<2x8xf32>
    %400 = vector.multi_reduction <maximumf>, %399, %cst_105 [1] : vector<2x8x8xf32> to vector<2x8xf32>
    %401 = vector.shape_cast %400 : vector<2x8xf32> to vector<2x1x8xf32>
    %402 = vector.broadcast %401 : vector<2x1x8xf32> to vector<2x8x8xf32>
    %403 = arith.subf %399, %402 : vector<2x8x8xf32>
    %404 = math.exp %403 : vector<2x8x8xf32>
    %cst_106 = arith.constant dense<0.000000e+00> : vector<2x8xf32>
    %405 = vector.multi_reduction <add>, %404, %cst_106 [1] : vector<2x8x8xf32> to vector<2x8xf32>
    %406 = math.log %405 : vector<2x8xf32>
    %407 = vector.shape_cast %401 : vector<2x1x8xf32> to vector<2x8xf32>
    %408 = arith.addf %406, %407 : vector<2x8xf32>
    %409 = vector.extract_strided_slice %236 {offsets = [0, 6, 0], sizes = [2, 1, 1], strides = [1, 1, 1]} : vector<2x8x1xf32> to vector<2x1x1xf32>
    %410 = vector.shape_cast %409 : vector<2x1x1xf32> to vector<2x1xf32>
    %cst_107 = arith.constant 0.000000e+00 : f32
    %411 = vector.broadcast %cst_107 : f32 to vector<2x1xf32>
    %412 = arith.cmpf ogt, %410, %411 : vector<2x1xf32>
    %413 = vector.shape_cast %412 : vector<2x1xi1> to vector<2x1xi1>
    %414 = vector.broadcast %413 : vector<2x1xi1> to vector<2x8xi1>
    %415 = arith.select %414, %408, %390 : vector<2x8xi1>, vector<2x8xf32>
    %416 = vector.extract_strided_slice %257 {offsets = [0, 7, 0], sizes = [2, 1, 8], strides = [1, 1, 1]} : vector<2x8x8xf32> to vector<2x1x8xf32>
    %417 = vector.shape_cast %416 : vector<2x1x8xf32> to vector<2x8xf32>
    %418 = vector.shape_cast %415 : vector<2x8xf32> to vector<2x8x1xf32>
    %419 = vector.broadcast %418 : vector<2x8x1xf32> to vector<2x8x8xf32>
    %420 = vector.broadcast %259 : vector<1x8x8xf32> to vector<2x8x8xf32>
    %421 = arith.addf %419, %420 : vector<2x8x8xf32>
    %422 = vector.shape_cast %417 : vector<2x8xf32> to vector<2x1x8xf32>
    %423 = vector.broadcast %422 : vector<2x1x8xf32> to vector<2x8x8xf32>
    %424 = arith.addf %421, %423 : vector<2x8x8xf32>
    %cst_108 = arith.constant dense<0xFF800000> : vector<2x8xf32>
    %425 = vector.multi_reduction <maximumf>, %424, %cst_108 [1] : vector<2x8x8xf32> to vector<2x8xf32>
    %426 = vector.shape_cast %425 : vector<2x8xf32> to vector<2x1x8xf32>
    %427 = vector.broadcast %426 : vector<2x1x8xf32> to vector<2x8x8xf32>
    %428 = arith.subf %424, %427 : vector<2x8x8xf32>
    %429 = math.exp %428 : vector<2x8x8xf32>
    %cst_109 = arith.constant dense<0.000000e+00> : vector<2x8xf32>
    %430 = vector.multi_reduction <add>, %429, %cst_109 [1] : vector<2x8x8xf32> to vector<2x8xf32>
    %431 = math.log %430 : vector<2x8xf32>
    %432 = vector.shape_cast %426 : vector<2x1x8xf32> to vector<2x8xf32>
    %433 = arith.addf %431, %432 : vector<2x8xf32>
    %434 = vector.extract_strided_slice %236 {offsets = [0, 7, 0], sizes = [2, 1, 1], strides = [1, 1, 1]} : vector<2x8x1xf32> to vector<2x1x1xf32>
    %435 = vector.shape_cast %434 : vector<2x1x1xf32> to vector<2x1xf32>
    %cst_110 = arith.constant 0.000000e+00 : f32
    %436 = vector.broadcast %cst_110 : f32 to vector<2x1xf32>
    %437 = arith.cmpf ogt, %435, %436 : vector<2x1xf32>
    %438 = vector.shape_cast %437 : vector<2x1xi1> to vector<2x1xi1>
    %439 = vector.broadcast %438 : vector<2x1xi1> to vector<2x8xi1>
    %440 = arith.select %439, %433, %415 : vector<2x8xi1>, vector<2x8xf32>
    %441 = vector.broadcast %261 : vector<1x8xf32> to vector<2x8xf32>
    %442 = arith.addf %440, %441 : vector<2x8xf32>
    %cst_111 = arith.constant dense<0xFF800000> : vector<2xf32>
    %443 = vector.multi_reduction <maximumf>, %442, %cst_111 [1] : vector<2x8xf32> to vector<2xf32>
    %444 = vector.shape_cast %443 : vector<2xf32> to vector<2x1xf32>
    %445 = vector.broadcast %444 : vector<2x1xf32> to vector<2x8xf32>
    %446 = arith.subf %442, %445 : vector<2x8xf32>
    %447 = math.exp %446 : vector<2x8xf32>
    %cst_112 = arith.constant dense<0.000000e+00> : vector<2xf32>
    %448 = vector.multi_reduction <add>, %447, %cst_112 [1] : vector<2x8xf32> to vector<2xf32>
    %449 = vector.shape_cast %448 : vector<2xf32> to vector<2x1xf32>
    %450 = math.log %449 : vector<2x1xf32>
    %451 = arith.addf %450, %444 : vector<2x1xf32>
    %c0_113 = arith.constant 0 : index
    %c0_114 = arith.constant 0 : index
    %c0_115 = arith.constant 0 : index
    %452 = vector.load %arg10[%c0_113, %c0_114, %c0_115] : memref<2x8x8xf32, #tpu.memory_space<vmem>>, vector<2x8x8xf32>
    %453 = arith.mulf %452, %257 : vector<2x8x8xf32>
    %cst_116 = arith.constant dense<0.000000e+00> : vector<2x8xf32>
    %454 = vector.multi_reduction <add>, %453, %cst_116 [2] : vector<2x8x8xf32> to vector<2x8xf32>
    %cst_117 = arith.constant dense<0.000000e+00> : vector<2xf32>
    %455 = vector.multi_reduction <add>, %454, %cst_117 [1] : vector<2x8xf32> to vector<2xf32>
    %456 = vector.shape_cast %455 : vector<2xf32> to vector<2x1xf32>
    %c0_118 = arith.constant 0 : index
    %c0_119 = arith.constant 0 : index
    %457 = vector.load %arg11[%c0_118, %c0_119] : memref<2x1xf32, #tpu.memory_space<vmem>>, vector<2x1xf32>
    %458 = arith.addf %457, %456 : vector<2x1xf32>
    %459 = arith.subf %451, %458 : vector<2x1xf32>
    %460 = vector.shape_cast %459 : vector<2x1xf32> to vector<1x2x1xf32>
    %cst_120 = arith.constant dense<0.000000e+00> : vector<1xf32>
    %461 = vector.multi_reduction <add>, %460, %cst_120 [1, 2] : vector<1x2x1xf32> to vector<1xf32>
    %462 = vector.shape_cast %461 : vector<1xf32> to vector<1x1x1xf32>
    %463 = vector.extract %462[0, 0, 0] : f32 from vector<1x1x1xf32>
    %cst_121 = arith.constant 2.000000e+00 : f32
    %464 = arith.divf %463, %cst_121 : f32
    %465 = vector.broadcast %464 : f32 to vector<1x1xf32>
    %c0_122 = arith.constant 0 : index
    %c0_123 = arith.constant 0 : index
    %466 = vector.load %arg12[%c0_122, %c0_123] : memref<1x1xf32, #tpu.memory_space<vmem>>, vector<1x1xf32>
    tpu.vector_store %arg12[%c0_122, %c0_123], %465 {strides = array<i32>} : memref<1x1xf32, #tpu.memory_space<vmem>>, vector<1x1xf32>,
    return
  }
}

</mosaic_0001>

<llo_original>
// kernel: bilstm_crf_forward.1
$region0: #{bilstm_crf_forward.1}
  #allocation0 [shape = 'u32[]', space=smem, size = 0x4, offset = 0x4, fixed_abs, tag = 'smem constant byte address 0x4 - core index']
  #allocation1 [shape = 'u32[144,128]{1,0:T(1,128)}', space=vmem, size = 0x12000, scoped, tag = 'internal scratch']
  #allocation2 [shape = 'f32[2,8,64]{2,1,0:T(8,128)}', space=vmem, size = 0x2000, scoped, tag = 'scratch operand']
  %s0 = inlined_call_operand.vmem [shape: f32[2,8,64], index: 0, kind: input, shape index: {}]
  %s1 = inlined_call_operand.vmem [shape: f32[64,256], index: 1, kind: input, shape index: {}]
  %s2 = inlined_call_operand.vmem [shape: f32[64,256], index: 2, kind: input, shape index: {}]
  %s3 = inlined_call_operand.vmem [shape: f32[1,256], index: 3, kind: input, shape index: {}]
  %s4 = inlined_call_operand.vmem [shape: f32[64,8], index: 4, kind: input, shape index: {}]
  %s5 = inlined_call_operand.vmem [shape: f32[1,8], index: 5, kind: input, shape index: {}]
  %s6 = inlined_call_operand.vmem [shape: f32[8,8], index: 6, kind: input, shape index: {}]
  %s7 = inlined_call_operand.vmem [shape: f32[1,8], index: 7, kind: input, shape index: {}]
  %s8 = inlined_call_operand.vmem [shape: f32[1,8], index: 8, kind: input, shape index: {}]
  %s9 = inlined_call_operand.vmem [shape: f32[2,8,1], index: 9, kind: input, shape index: {}]
  %s10 = inlined_call_operand.vmem [shape: f32[2,8,8], index: 10, kind: input, shape index: {}]
  %s11 = inlined_call_operand.vmem [shape: f32[2,1], index: 11, kind: input, shape index: {}]
  %s12 = inlined_call_operand.hbm [shape: f32[1,1], index: 12, kind: output, shape index: {0}]
  %s13 = inlined_call_operand.hbm [shape: f32[2,8,8], index: 13, kind: output, shape index: {1}]
  %14 = xla_tuple %s12, %s13
  %s15 = sld [smem:[#allocation0]]
  $region66: #{bilstm_crf_forward.1} parent=0
    _
  %s17 = ssub.s32 1, %s15
  %s18 = scalar_select 0, %s17, %s15
  $region1: #{bilstm_crf_forward.1} parent=0
    #allocation3 [shape = 'u8[512]{0}', space=vmem, size = 0x400, scoped, tag = 'output window, operand 0, single buffered']
    #allocation4 [shape = 's32[1]{0}', space=sflag, size = 0x4, scoped, tag = 'scoped memory for bilstm_crf_forward.1']
    #allocation5 [shape = 'u8[8192]{0}', space=vmem, size = 0x2000, scoped, tag = 'output window, operand 1, single buffered']
    #allocation6 [shape = 's32[1]{0}', space=sflag, size = 0x4, scoped, tag = 'scoped memory for bilstm_crf_forward.1']
    %19 = vsyncpa [#allocation4], 0
    %20 = vsyncpa [#allocation6], 0
    // Predicated region
    $region2: #{bilstm_crf_forward.1} parent=1 // pred_check
      _
    $region3: #{bilstm_crf_forward.1} parent=1 // pred_check_branch
      %22 = sbr.rel (0) target = $region5
    $region4: #{bilstm_crf_forward.1} parent=1 // pred_region
      _
    $region5: #{bilstm_crf_forward.1} parent=1 // pred_fallthru
      _
    // Predicated region
    $region6: #{bilstm_crf_forward.1} parent=1 // pred_check
      _
    $region7: #{bilstm_crf_forward.1} parent=1 // pred_check_branch
      %24 = sbr.rel (0) target = $region9
    $region8: #{bilstm_crf_forward.1} parent=1 // pred_region
      _
    $region9: #{bilstm_crf_forward.1} parent=1 // pred_fallthru
      _
    // Predicated region
    $region10: #{bilstm_crf_forward.1} parent=1 // pred_check
      _
    $region11: #{bilstm_crf_forward.1} parent=1 // pred_check_branch
      %26 = sbr.rel (0) target = $region13
    $region12: #{bilstm_crf_forward.1} parent=1 // pred_region
      _
    $region13: #{bilstm_crf_forward.1} parent=1 // pred_fallthru
      _
    // Predicated region
    $region14: #{bilstm_crf_forward.1} parent=1 // pred_check
      _
    $region15: #{bilstm_crf_forward.1} parent=1 // pred_check_branch
      %28 = sbr.rel (0) target = $region17
    $region16: #{bilstm_crf_forward.1} parent=1 // pred_region
      _
    $region17: #{bilstm_crf_forward.1} parent=1 // pred_fallthru
      _
    // Predicated region
    $region18: #{bilstm_crf_forward.1} parent=1 // pred_check
      _
    $region19: #{bilstm_crf_forward.1} parent=1 // pred_check_branch
      %30 = sbr.rel (0) target = $region21
    $region20: #{bilstm_crf_forward.1} parent=1 // pred_region
      _
    $region21: #{bilstm_crf_forward.1} parent=1 // pred_fallthru
      _
    // Predicated region
    $region22: #{bilstm_crf_forward.1} parent=1 // pred_check
      _
    $region23: #{bilstm_crf_forward.1} parent=1 // pred_check_branch
      %32 = sbr.rel (0) target = $region25
    $region24: #{bilstm_crf_forward.1} parent=1 // pred_region
      _
    $region25: #{bilstm_crf_forward.1} parent=1 // pred_fallthru
      _
    // Predicated region
    $region26: #{bilstm_crf_forward.1} parent=1 // pred_check
      _
    $region27: #{bilstm_crf_forward.1} parent=1 // pred_check_branch
      %34 = sbr.rel (0) target = $region29
    $region28: #{bilstm_crf_forward.1} parent=1 // pred_region
      _
    $region29: #{bilstm_crf_forward.1} parent=1 // pred_fallthru
      _
    // Predicated region
    $region30: #{bilstm_crf_forward.1} parent=1 // pred_check
      _
    $region31: #{bilstm_crf_forward.1} parent=1 // pred_check_branch
      %36 = sbr.rel (0) target = $region33
    $region32: #{bilstm_crf_forward.1} parent=1 // pred_region
      _
    $region33: #{bilstm_crf_forward.1} parent=1 // pred_fallthru
      _
    // Predicated region
    $region34: #{bilstm_crf_forward.1} parent=1 // pred_check
      _
    $region35: #{bilstm_crf_forward.1} parent=1 // pred_check_branch
      %38 = sbr.rel (0) target = $region37
    $region36: #{bilstm_crf_forward.1} parent=1 // pred_region
      _
    $region37: #{bilstm_crf_forward.1} parent=1 // pred_fallthru
      _
    // Predicated region
    $region38: #{bilstm_crf_forward.1} parent=1 // pred_check
      _
    $region39: #{bilstm_crf_forward.1} parent=1 // pred_check_branch
      %40 = sbr.rel (0) target = $region41
    $region40: #{bilstm_crf_forward.1} parent=1 // pred_region
      _
    $region41: #{bilstm_crf_forward.1} parent=1 // pred_fallthru
      _
    // Predicated region
    $region42: #{bilstm_crf_forward.1} parent=1 // pred_check
      _
    $region43: #{bilstm_crf_forward.1} parent=1 // pred_check_branch
      %42 = sbr.rel (0) target = $region45
    $region44: #{bilstm_crf_forward.1} parent=1 // pred_region
      _
    $region45: #{bilstm_crf_forward.1} parent=1 // pred_fallthru
      _
    // Predicated region
    $region46: #{bilstm_crf_forward.1} parent=1 // pred_check
      _
    $region47: #{bilstm_crf_forward.1} parent=1 // pred_check_branch
      %44 = sbr.rel (0) target = $region49
    $region48: #{bilstm_crf_forward.1} parent=1 // pred_region
      _
    $region49: #{bilstm_crf_forward.1} parent=1 // pred_fallthru
      _
    %v45 = vld [vmem:[%s0] sm:$0xff]
    %v46 = vld [vmem:[%s0 + $0x8] sm:$0xff]
    %v47 = vld [vmem:[%s1] sm:$0xff]
    %v48 = vld [vmem:[%s1 + $0x8] sm:$0xff]
    %v49 = vld [vmem:[%s1 + $0x10] sm:$0xff]
    %v50 = vld [vmem:[%s1 + $0x18] sm:$0xff]
    %v51 = vld [vmem:[%s1 + $0x20] sm:$0xff]
    %v52 = vld [vmem:[%s1 + $0x28] sm:$0xff]
    %v53 = vld [vmem:[%s1 + $0x30] sm:$0xff]
    %v54 = vld [vmem:[%s1 + $0x38] sm:$0xff]
    %v55 = vld [vmem:[%s1 + $0x40] sm:$0xff]
    %v56 = vld [vmem:[%s1 + $0x48] sm:$0xff]
    %v57 = vld [vmem:[%s1 + $0x50] sm:$0xff]
    %v58 = vld [vmem:[%s1 + $0x58] sm:$0xff]
    %v59 = vld [vmem:[%s1 + $0x60] sm:$0xff]
    %v60 = vld [vmem:[%s1 + $0x68] sm:$0xff]
    %v61 = vld [vmem:[%s1 + $0x70] sm:$0xff]
    %v62 = vld [vmem:[%s1 + $0x78] sm:$0xff]
    %v63 = vld [vmem:[%s3] sm:$0x3]
    %v65 = vlaneseq
    %v66 = vshrl.u32 %v65, 7
    %v67 = vsub.s32 0, %v66
    %v68 = vrot.slane %v63, %v67
    %v69 = vlaneseq
    %v70 = vshrl.u32 %v69, 7
    %v71 = vsub.s32 1, %v70
    %v72 = vrot.slane %v63, %v71
    %vm75 = vcmask 523264
    %v77 = vsel %vm75, %v45, 0
    %v80 = vsel %vm75, %v46, 0
    %82 = vmatprep.subr.mxu0 0.0
    %83 = vmatpush1.msra.mxu0 0.0
    %84 = vmatprep.subr.mxu0 0.0
    %85 = vmatpush1.msra.mxu0 0.0
    %86 = vmatprep.subr.mxu0 0.0
    %87 = vmatpush1.msra.mxu0 0.0
    %88 = vmatprep.subr.mxu0 0.0
    %89 = vmatpush1.msra.mxu0 0.0
    %90 = vmatprep.subr.mxu0 0.0
    %91 = vmatpush1.msra.mxu0 0.0
    %92 = vmatprep.subr.mxu0 0.0
    %93 = vmatpush1.msra.mxu0 0.0
    %94 = vmatprep.subr.mxu0 0.0
    %95 = vmatpush1.msra.mxu0 0.0
    %96 = vmatprep.subr.mxu0 0.0
    %97 = vmatpush1.msra.mxu0 0.0
    %98 = vmatprep.subr.mxu0 %v62
    %99 = vmatpush1.msra.mxu0 %v61
    %100 = vmatprep.subr.mxu0 %v60
    %101 = vmatpush1.msra.mxu0 %v59
    %102 = vmatprep.subr.mxu0 %v58
    %103 = vmatpush1.msra.mxu0 %v57
    %104 = vmatprep.subr.mxu0 %v56
    %105 = vmatpush1.msra.mxu0 %v55
    %106 = vmatprep.subr.mxu0 %v54
    %107 = vmatpush1.msra.mxu0 %v53
    %108 = vmatprep.subr.mxu0 %v52
    %109 = vmatpush1.msra.mxu0 %v51
    %110 = vmatprep.subr.mxu0 %v50
    %111 = vmatpush1.msra.mxu0 %v49
    %112 = vmatprep.subr.mxu0 %v48
    %113 = vmatpush1.msra.mxu0 %v47
    %114 = vmatprep.subr.mxu0 0.0
    %115 = vmatpush2.msra.mxu0 0.0
    %116 = vmatprep.subr.mxu0 0.0
    %117 = vmatpush2.msra.mxu0 0.0
    %118 = vmatprep.subr.mxu0 0.0
    %119 = vmatpush2.msra.mxu0 0.0
    %120 = vmatprep.subr.mxu0 0.0
    %121 = vmatpush2.msra.mxu0 0.0
    %122 = vmatprep.subr.mxu0 0.0
    %123 = vmatpush2.msra.mxu0 0.0
    %124 = vmatprep.subr.mxu0 0.0
    %125 = vmatpush2.msra.mxu0 0.0
    %126 = vmatprep.subr.mxu0 0.0
    %127 = vmatpush2.msra.mxu0 0.0
    %128 = vmatprep.subr.mxu0 0.0
    %129 = vmatpush2.msra.mxu0 0.0
    %130 = vmatprep.subr.mxu0 0.0
    %131 = vmatpush2.msra.mxu0 0.0
    %132 = vmatprep.subr.mxu0 0.0
    %133 = vmatpush2.msra.mxu0 0.0
    %134 = vmatprep.subr.mxu0 0.0
    %135 = vmatpush2.msra.mxu0 0.0
    %136 = vmatprep.subr.mxu0 0.0
    %137 = vmatpush2.msra.mxu0 0.0
    %138 = vmatprep.subr.mxu0 0.0
    %139 = vmatpush2.msra.mxu0 0.0
    %140 = vmatprep.subr.mxu0 0.0
    %141 = vmatpush2.msra.mxu0 0.0
    %142 = vmatprep.subr.mxu0 0.0
    %143 = vmatpush2.msra.mxu0 0.0
    %144 = vmatprep.subr.mxu0 0.0
    %145 = vmatpush2.msra.mxu0 0.0
    %146 = vmatprep.mubr.f32.mxu0 0.0
    %147 = vmatmul.mubr.f32.gmra.mxu0 %v77
    %v148 = vpop.f32.mrf.mxu0
    %v149 = vadd.f32 %v68, %v148
    %v150 = vpop.f32.mrf.mxu0
    %v151 = vadd.f32 %v72, %v150
    %152 = vmatprep.mubr.f32.mxu0 0.0
    %153 = vmatmul.mubr.f32.gmra.mxu0 %v80
    %v154 = vpop.f32.mrf.mxu0
    %v155 = vadd.f32 %v68, %v154
    %v156 = vpop.f32.mrf.mxu0
    %v157 = vadd.f32 %v72, %v156
    %158 = vdwg.mxu0
    %v159 = vld [vmem:[%s2] sm:$0xff]
    %v160 = vld [vmem:[%s2 + $0x8] sm:$0xff]
    %v161 = vld [vmem:[%s2 + $0x10] sm:$0xff]
    %v162 = vld [vmem:[%s2 + $0x18] sm:$0xff]
    %v163 = vld [vmem:[%s2 + $0x20] sm:$0xff]
    %v164 = vld [vmem:[%s2 + $0x28] sm:$0xff]
    %v165 = vld [vmem:[%s2 + $0x30] sm:$0xff]
    %v166 = vld [vmem:[%s2 + $0x38] sm:$0xff]
    %v167 = vld [vmem:[%s2 + $0x40] sm:$0xff]
    %v168 = vld [vmem:[%s2 + $0x48] sm:$0xff]
    %v169 = vld [vmem:[%s2 + $0x50] sm:$0xff]
    %v170 = vld [vmem:[%s2 + $0x58] sm:$0xff]
    %v171 = vld [vmem:[%s2 + $0x60] sm:$0xff]
    %v172 = vld [vmem:[%s2 + $0x68] sm:$0xff]
    %v173 = vld [vmem:[%s2 + $0x70] sm:$0xff]
    %v174 = vld [vmem:[%s2 + $0x78] sm:$0xff]
    %v176 = vsel %vm75, 0.0, 0
    %178 = vmatprep.subr.mxu0 0.0
    %179 = vmatpush1.msra.mxu0 0.0
    %180 = vmatprep.subr.mxu0 0.0
    %181 = vmatpush1.msra.mxu0 0.0
    %182 = vmatprep.subr.mxu0 0.0
    %183 = vmatpush1.msra.mxu0 0.0
    %184 = vmatprep.subr.mxu0 0.0
    %185 = vmatpush1.msra.mxu0 0.0
    %186 = vmatprep.subr.mxu0 0.0
    %187 = vmatpush1.msra.mxu0 0.0
    %188 = vmatprep.subr.mxu0 0.0
    %189 = vmatpush1.msra.mxu0 0.0
    %190 = vmatprep.subr.mxu0 0.0
    %191 = vmatpush1.msra.mxu0 0.0
    %192 = vmatprep.subr.mxu0 0.0
    %193 = vmatpush1.msra.mxu0 0.0
    %194 = vmatprep.subr.mxu0 %v174
    %195 = vmatpush1.msra.mxu0 %v173
    %196 = vmatprep.subr.mxu0 %v172
    %197 = vmatpush1.msra.mxu0 %v171
    %198 = vmatprep.subr.mxu0 %v170
    %199 = vmatpush1.msra.mxu0 %v169
    %200 = vmatprep.subr.mxu0 %v168
    %201 = vmatpush1.msra.mxu0 %v167
    %202 = vmatprep.subr.mxu0 %v166
    %203 = vmatpush1.msra.mxu0 %v165
    %204 = vmatprep.subr.mxu0 %v164
    %205 = vmatpush1.msra.mxu0 %v163
    %206 = vmatprep.subr.mxu0 %v162
    %207 = vmatpush1.msra.mxu0 %v161
    %208 = vmatprep.subr.mxu0 %v160
    %209 = vmatpush1.msra.mxu0 %v159
    %210 = vmatprep.subr.mxu0 0.0
    %211 = vmatpush2.msra.mxu0 0.0
    %212 = vmatprep.subr.mxu0 0.0
    %213 = vmatpush2.msra.mxu0 0.0
    %214 = vmatprep.subr.mxu0 0.0
    %215 = vmatpush2.msra.mxu0 0.0
    %216 = vmatprep.subr.mxu0 0.0
    %217 = vmatpush2.msra.mxu0 0.0
    %218 = vmatprep.subr.mxu0 0.0
    %219 = vmatpush2.msra.mxu0 0.0
    %220 = vmatprep.subr.mxu0 0.0
    %221 = vmatpush2.msra.mxu0 0.0
    %222 = vmatprep.subr.mxu0 0.0
    %223 = vmatpush2.msra.mxu0 0.0
    %224 = vmatprep.subr.mxu0 0.0
    %225 = vmatpush2.msra.mxu0 0.0
    %226 = vmatprep.subr.mxu0 0.0
    %227 = vmatpush2.msra.mxu0 0.0
    %228 = vmatprep.subr.mxu0 0.0
    %229 = vmatpush2.msra.mxu0 0.0
    %230 = vmatprep.subr.mxu0 0.0
    %231 = vmatpush2.msra.mxu0 0.0
    %232 = vmatprep.subr.mxu0 0.0
    %233 = vmatpush2.msra.mxu0 0.0
    %234 = vmatprep.subr.mxu0 0.0
    %235 = vmatpush2.msra.mxu0 0.0
    %236 = vmatprep.subr.mxu0 0.0
    %237 = vmatpush2.msra.mxu0 0.0
    %238 = vmatprep.subr.mxu0 0.0
    %239 = vmatpush2.msra.mxu0 0.0
    %240 = vmatprep.subr.mxu0 0.0
    %241 = vmatpush2.msra.mxu0 0.0
    %242 = vmatprep.mubr.f32.mxu0 0.0
    %243 = vmatmul.mubr.f32.gmra.mxu0 %v176
    %v244 = vpop.f32.mrf.mxu0
    %v245 = vadd.f32 0.0, %v244
    %v246 = vpop.f32.mrf.mxu0
    %v247 = vadd.f32 0.0, %v246
    %248 = vdwg.mxu0
    %v251 = vrot.slane %v245, 1
    %v252 = vrot.slane %v247, 1
    %v257 = vadd.f32 %v149, %v245
    %v258 = vadd.f32 %v151, %v247
    %v259 = vadd.f32 %v155, %v251
    %v260 = vadd.f32 %v157, %v252
    %v261 = vxor.u32 %v257, 2147483648
    %v262 = vxor.u32 %v258, 2147483648
    %v263 = vxor.u32 %v259, 2147483648
    %v264 = vxor.u32 %v260, 2147483648
    %v265 = vmul.f32 %v261, 1.442695
    %v266 = vpow.pop %v265
    %v267 = vmul.f32 %v262, 1.442695
    %v268 = vpow.pop %v267
    %v269 = vmul.f32 %v263, 1.442695
    %v270 = vpow.pop %v269
    %v271 = vmul.f32 %v264, 1.442695
    %v272 = vpow.pop %v271
    %v273 = vadd.f32 %v266, 1.0
    %v274 = vadd.f32 %v268, 1.0
    %v275 = vadd.f32 %v270, 1.0
    %v276 = vadd.f32 %v272, 1.0
    %v277 = vrcp.pop %v273
    %v278 = vmul.f32 1.0, %v277
    %v279 = vrcp.pop %v274
    %v280 = vmul.f32 1.0, %v279
    %v281 = vrcp.pop %v275
    %v282 = vmul.f32 1.0, %v281
    %v283 = vrcp.pop %v276
    %v284 = vmul.f32 1.0, %v283
    %v285 = vtanh.pop %v258
    %v286 = vtanh.pop %v260
    %v287 = vmul.f32 %v278, 0.0
    %v288 = vmul.f32 %v282, 0.0
    %291 = vrot.lane.b32.xlu0 %v285, 64
    %v292 = vpop.permute.xlu0 %291
    %293 = vrot.lane.b32.xlu0 %v286, 64
    %v294 = vpop.permute.xlu0 %293
    %v297 = vmul.f32 %v278, %v292
    %v298 = vmul.f32 %v282, %v294
    %301 = vrot.lane.b32.xlu0 %v297, 64
    %v302 = vpop.permute.xlu0 %301
    %303 = vrot.lane.b32.xlu0 %v298, 64
    %v304 = vpop.permute.xlu0 %303
    %v307 = vadd.f32 %v287, %v302
    %v308 = vadd.f32 %v288, %v304
    %v309 = vtanh.pop %v307
    %v310 = vtanh.pop %v308
    %313 = vrot.lane.b32.xlu0 %v309, 64
    %v314 = vpop.permute.xlu0 %313
    %315 = vrot.lane.b32.xlu0 %v310, 64
    %v316 = vpop.permute.xlu0 %315
    %v319 = vmul.f32 %v280, %v314
    %v320 = vmul.f32 %v284, %v316
    %vm321 = vcmask 253952
    %322 = vst.msk [vmem:[#allocation2] sm:$0x1] %vm321, %v319
    %323 = vst.msk [vmem:[#allocation2 + $0x8] sm:$0x1] %vm321, %v320
    %vm324 = vcmask 516352
    %325 = vst.msk [vmem:[#allocation2 + $0x7] sm:$0x1] %vm324, %v319
    %326 = vst.msk [vmem:[#allocation2 + $0xf] sm:$0x1] %vm324, %v320
    %v329 = vrot.slane %v320, 7
    %vm330 = vcmask 1041409
    %v331 = vsel %vm330, %v329, %v319
    %v332 = vsel %vm75, %v331, 0
    %334 = vmatprep.subr.mxu0 0.0
    %335 = vmatpush1.msra.mxu0 0.0
    %336 = vmatprep.subr.mxu0 0.0
    %337 = vmatpush1.msra.mxu0 0.0
    %338 = vmatprep.subr.mxu0 0.0
    %339 = vmatpush1.msra.mxu0 0.0
    %340 = vmatprep.subr.mxu0 0.0
    %341 = vmatpush1.msra.mxu0 0.0
    %342 = vmatprep.subr.mxu0 0.0
    %343 = vmatpush1.msra.mxu0 0.0
    %344 = vmatprep.subr.mxu0 0.0
    %345 = vmatpush1.msra.mxu0 0.0
    %346 = vmatprep.subr.mxu0 0.0
    %347 = vmatpush1.msra.mxu0 0.0
    %348 = vmatprep.subr.mxu0 0.0
    %349 = vmatpush1.msra.mxu0 0.0
    %350 = vmatprep.subr.mxu0 %v174
    %351 = vmatpush1.msra.mxu0 %v173
    %352 = vmatprep.subr.mxu0 %v172
    %353 = vmatpush1.msra.mxu0 %v171
    %354 = vmatprep.subr.mxu0 %v170
    %355 = vmatpush1.msra.mxu0 %v169
    %356 = vmatprep.subr.mxu0 %v168
    %357 = vmatpush1.msra.mxu0 %v167
    %358 = vmatprep.subr.mxu0 %v166
    %359 = vmatpush1.msra.mxu0 %v165
    %360 = vmatprep.subr.mxu0 %v164
    %361 = vmatpush1.msra.mxu0 %v163
    %362 = vmatprep.subr.mxu0 %v162
    %363 = vmatpush1.msra.mxu0 %v161
    %364 = vmatprep.subr.mxu0 %v160
    %365 = vmatpush1.msra.mxu0 %v159
    %366 = vmatprep.subr.mxu0 0.0
    %367 = vmatpush2.msra.mxu0 0.0
    %368 = vmatprep.subr.mxu0 0.0
    %369 = vmatpush2.msra.mxu0 0.0
    %370 = vmatprep.subr.mxu0 0.0
    %371 = vmatpush2.msra.mxu0 0.0
    %372 = vmatprep.subr.mxu0 0.0
    %373 = vmatpush2.msra.mxu0 0.0
    %374 = vmatprep.subr.mxu0 0.0
    %375 = vmatpush2.msra.mxu0 0.0
    %376 = vmatprep.subr.mxu0 0.0
    %377 = vmatpush2.msra.mxu0 0.0
    %378 = vmatprep.subr.mxu0 0.0
    %379 = vmatpush2.msra.mxu0 0.0
    %380 = vmatprep.subr.mxu0 0.0
    %381 = vmatpush2.msra.mxu0 0.0
    %382 = vmatprep.subr.mxu0 0.0
    %383 = vmatpush2.msra.mxu0 0.0
    %384 = vmatprep.subr.mxu0 0.0
    %385 = vmatpush2.msra.mxu0 0.0
    %386 = vmatprep.subr.mxu0 0.0
    %387 = vmatpush2.msra.mxu0 0.0
    %388 = vmatprep.subr.mxu0 0.0
    %389 = vmatpush2.msra.mxu0 0.0
    %390 = vmatprep.subr.mxu0 0.0
    %391 = vmatpush2.msra.mxu0 0.0
    %392 = vmatprep.subr.mxu0 0.0
    %393 = vmatpush2.msra.mxu0 0.0
    %394 = vmatprep.subr.mxu0 0.0
    %395 = vmatpush2.msra.mxu0 0.0
    %396 = vmatprep.subr.mxu0 0.0
    %397 = vmatpush2.msra.mxu0 0.0
    %398 = vmatprep.mubr.f32.mxu0 0.0
    %399 = vmatmul.mubr.f32.gmra.mxu0 %v332
    %v400 = vpop.f32.mrf.mxu0
    %v401 = vadd.f32 0.0, %v400
    %v402 = vpop.f32.mrf.mxu0
    %v403 = vadd.f32 0.0, %v402
    %404 = vdwg.mxu0
    %v407 = vrot.slane %v401, 7
    %v408 = vrot.slane %v403, 7
    %v413 = vadd.f32 %v149, %v407
    %v414 = vadd.f32 %v151, %v408
    %v415 = vadd.f32 %v155, %v401
    %v416 = vadd.f32 %v157, %v403
    %v417 = vxor.u32 %v413, 2147483648
    %v418 = vxor.u32 %v414, 2147483648
    %v419 = vxor.u32 %v415, 2147483648
    %v420 = vxor.u32 %v416, 2147483648
    %v421 = vmul.f32 %v417, 1.442695
    %v422 = vpow.pop %v421
    %v423 = vmul.f32 %v418, 1.442695
    %v424 = vpow.pop %v423
    %v425 = vmul.f32 %v419, 1.442695
    %v426 = vpow.pop %v425
    %v427 = vmul.f32 %v420, 1.442695
    %v428 = vpow.pop %v427
    %v429 = vadd.f32 %v422, 1.0
    %v430 = vadd.f32 %v424, 1.0
    %v431 = vadd.f32 %v426, 1.0
    %v432 = vadd.f32 %v428, 1.0
    %v433 = vrcp.pop %v429
    %v434 = vmul.f32 1.0, %v433
    %v435 = vrcp.pop %v430
    %v436 = vmul.f32 1.0, %v435
    %v437 = vrcp.pop %v431
    %v438 = vmul.f32 1.0, %v437
    %v439 = vrcp.pop %v432
    %v440 = vmul.f32 1.0, %v439
    %v441 = vtanh.pop %v414
    %v442 = vtanh.pop %v416
    %v445 = vrot.slane %v307, 7
    %v446 = vrot.slane %v308, 7
    %v449 = vmul.f32 %v434, %v445
    %v450 = vmul.f32 %v438, %v446
    %453 = vrot.lane.b32.xlu0 %v441, 64
    %v454 = vpop.permute.xlu0 %453
    %455 = vrot.lane.b32.xlu0 %v442, 64
    %v456 = vpop.permute.xlu0 %455
    %v459 = vmul.f32 %v434, %v454
    %v460 = vmul.f32 %v438, %v456
    %463 = vrot.lane.b32.xlu0 %v459, 64
    %v464 = vpop.permute.xlu0 %463
    %465 = vrot.lane.b32.xlu0 %v460, 64
    %v466 = vpop.permute.xlu0 %465
    %v469 = vadd.f32 %v449, %v464
    %v470 = vadd.f32 %v450, %v466
    %v471 = vtanh.pop %v469
    %v472 = vtanh.pop %v470
    %475 = vrot.lane.b32.xlu0 %v471, 64
    %v476 = vpop.permute.xlu0 %475
    %477 = vrot.lane.b32.xlu0 %v472, 64
    %v478 = vpop.permute.xlu0 %477
    %v481 = vmul.f32 %v436, %v476
    %v482 = vmul.f32 %v440, %v478
    %vm483 = vcmask 254977
    %484 = vst.msk [vmem:[#allocation2] sm:$0x2] %vm483, %v481
    %485 = vst.msk [vmem:[#allocation2 + $0x8] sm:$0x2] %vm483, %v482
    %vm486 = vcmask 517377
    %487 = vst.msk [vmem:[#allocation2 + $0x5] sm:$0x2] %vm486, %v481
    %488 = vst.msk [vmem:[#allocation2 + $0xd] sm:$0x2] %vm486, %v482
    %v491 = vrot.slane %v481, 1
    %v492 = vsel %vm330, %v482, %v491
    %v493 = vsel %vm75, %v492, 0
    %495 = vmatprep.subr.mxu0 0.0
    %496 = vmatpush1.msra.mxu0 0.0
    %497 = vmatprep.subr.mxu0 0.0
    %498 = vmatpush1.msra.mxu0 0.0
    %499 = vmatprep.subr.mxu0 0.0
    %500 = vmatpush1.msra.mxu0 0.0
    %501 = vmatprep.subr.mxu0 0.0
    %502 = vmatpush1.msra.mxu0 0.0
    %503 = vmatprep.subr.mxu0 0.0
    %504 = vmatpush1.msra.mxu0 0.0
    %505 = vmatprep.subr.mxu0 0.0
    %506 = vmatpush1.msra.mxu0 0.0
    %507 = vmatprep.subr.mxu0 0.0
    %508 = vmatpush1.msra.mxu0 0.0
    %509 = vmatprep.subr.mxu0 0.0
    %510 = vmatpush1.msra.mxu0 0.0
    %511 = vmatprep.subr.mxu0 %v174
    %512 = vmatpush1.msra.mxu0 %v173
    %513 = vmatprep.subr.mxu0 %v172
    %514 = vmatpush1.msra.mxu0 %v171
    %515 = vmatprep.subr.mxu0 %v170
    %516 = vmatpush1.msra.mxu0 %v169
    %517 = vmatprep.subr.mxu0 %v168
    %518 = vmatpush1.msra.mxu0 %v167
    %519 = vmatprep.subr.mxu0 %v166
    %520 = vmatpush1.msra.mxu0 %v165
    %521 = vmatprep.subr.mxu0 %v164
    %522 = vmatpush1.msra.mxu0 %v163
    %523 = vmatprep.subr.mxu0 %v162
    %524 = vmatpush1.msra.mxu0 %v161
    %525 = vmatprep.subr.mxu0 %v160
    %526 = vmatpush1.msra.mxu0 %v159
    %527 = vmatprep.subr.mxu0 0.0
    %528 = vmatpush2.msra.mxu0 0.0
    %529 = vmatprep.subr.mxu0 0.0
    %530 = vmatpush2.msra.mxu0 0.0
    %531 = vmatprep.subr.mxu0 0.0
    %532 = vmatpush2.msra.mxu0 0.0
    %533 = vmatprep.subr.mxu0 0.0
    %534 = vmatpush2.msra.mxu0 0.0
    %535 = vmatprep.subr.mxu0 0.0
    %536 = vmatpush2.msra.mxu0 0.0
    %537 = vmatprep.subr.mxu0 0.0
    %538 = vmatpush2.msra.mxu0 0.0
    %539 = vmatprep.subr.mxu0 0.0
    %540 = vmatpush2.msra.mxu0 0.0
    %541 = vmatprep.subr.mxu0 0.0
    %542 = vmatpush2.msra.mxu0 0.0
    %543 = vmatprep.subr.mxu0 0.0
    %544 = vmatpush2.msra.mxu0 0.0
    %545 = vmatprep.subr.mxu0 0.0
    %546 = vmatpush2.msra.mxu0 0.0
    %547 = vmatprep.subr.mxu0 0.0
    %548 = vmatpush2.msra.mxu0 0.0
    %549 = vmatprep.subr.mxu0 0.0
    %550 = vmatpush2.msra.mxu0 0.0
    %551 = vmatprep.subr.mxu0 0.0
    %552 = vmatpush2.msra.mxu0 0.0
    %553 = vmatprep.subr.mxu0 0.0
    %554 = vmatpush2.msra.mxu0 0.0
    %555 = vmatprep.subr.mxu0 0.0
    %556 = vmatpush2.msra.mxu0 0.0
    %557 = vmatprep.subr.mxu0 0.0
    %558 = vmatpush2.msra.mxu0 0.0
    %559 = vmatprep.mubr.f32.mxu0 0.0
    %560 = vmatmul.mubr.f32.gmra.mxu0 %v493
    %v561 = vpop.f32.mrf.mxu0
    %v562 = vadd.f32 0.0, %v561
    %v563 = vpop.f32.mrf.mxu0
    %v564 = vadd.f32 0.0, %v563
    %565 = vdwg.mxu0
    %v568 = vrot.slane %v562, 6
    %v569 = vrot.slane %v564, 6
    %v570 = vrot.slane %v562, 7
    %v571 = vrot.slane %v564, 7
    %v576 = vadd.f32 %v149, %v568
    %v577 = vadd.f32 %v151, %v569
    %v578 = vadd.f32 %v155, %v570
    %v579 = vadd.f32 %v157, %v571
    %v580 = vxor.u32 %v576, 2147483648
    %v581 = vxor.u32 %v577, 2147483648
    %v582 = vxor.u32 %v578, 2147483648
    %v583 = vxor.u32 %v579, 2147483648
    %v584 = vmul.f32 %v580, 1.442695
    %v585 = vpow.pop %v584
    %v586 = vmul.f32 %v581, 1.442695
    %v587 = vpow.pop %v586
    %v588 = vmul.f32 %v582, 1.442695
    %v589 = vpow.pop %v588
    %v590 = vmul.f32 %v583, 1.442695
    %v591 = vpow.pop %v590
    %v592 = vadd.f32 %v585, 1.0
    %v593 = vadd.f32 %v587, 1.0
    %v594 = vadd.f32 %v589, 1.0
    %v595 = vadd.f32 %v591, 1.0
    %v596 = vrcp.pop %v592
    %v597 = vmul.f32 1.0, %v596
    %v598 = vrcp.pop %v593
    %v599 = vmul.f32 1.0, %v598
    %v600 = vrcp.pop %v594
    %v601 = vmul.f32 1.0, %v600
    %v602 = vrcp.pop %v595
    %v603 = vmul.f32 1.0, %v602
    %v604 = vtanh.pop %v577
    %v605 = vtanh.pop %v579
    %v608 = vrot.slane %v469, 7
    %v609 = vrot.slane %v470, 7
    %v612 = vmul.f32 %v597, %v608
    %v613 = vmul.f32 %v601, %v609
    %616 = vrot.lane.b32.xlu0 %v604, 64
    %v617 = vpop.permute.xlu0 %616
    %618 = vrot.lane.b32.xlu0 %v605, 64
    %v619 = vpop.permute.xlu0 %618
    %v622 = vmul.f32 %v597, %v617
    %v623 = vmul.f32 %v601, %v619
    %626 = vrot.lane.b32.xlu0 %v622, 64
    %v627 = vpop.permute.xlu0 %626
    %628 = vrot.lane.b32.xlu0 %v623, 64
    %v629 = vpop.permute.xlu0 %628
    %v632 = vadd.f32 %v612, %v627
    %v633 = vadd.f32 %v613, %v629
    %v634 = vtanh.pop %v632
    %v635 = vtanh.pop %v633
    %638 = vrot.lane.b32.xlu0 %v634, 64
    %v639 = vpop.permute.xlu0 %638
    %640 = vrot.lane.b32.xlu0 %v635, 64
    %v641 = vpop.permute.xlu0 %640
    %v644 = vmul.f32 %v599, %v639
    %v645 = vmul.f32 %v603, %v641
    %vm646 = vcmask 256002
    %647 = vst.msk [vmem:[#allocation2] sm:$0x4] %vm646, %v644
    %648 = vst.msk [vmem:[#allocation2 + $0x8] sm:$0x4] %vm646, %v645
    %vm649 = vcmask 518402
    %650 = vst.msk [vmem:[#allocation2 + $0x3] sm:$0x4] %vm649, %v644
    %651 = vst.msk [vmem:[#allocation2 + $0xb] sm:$0x4] %vm649, %v645
    %v654 = vrot.slane %v644, 2
    %v655 = vrot.slane %v645, 1
    %v656 = vsel %vm330, %v655, %v654
    %v657 = vsel %vm75, %v656, 0
    %659 = vmatprep.subr.mxu0 0.0
    %660 = vmatpush1.msra.mxu0 0.0
    %661 = vmatprep.subr.mxu0 0.0
    %662 = vmatpush1.msra.mxu0 0.0
    %663 = vmatprep.subr.mxu0 0.0
    %664 = vmatpush1.msra.mxu0 0.0
    %665 = vmatprep.subr.mxu0 0.0
    %666 = vmatpush1.msra.mxu0 0.0
    %667 = vmatprep.subr.mxu0 0.0
    %668 = vmatpush1.msra.mxu0 0.0
    %669 = vmatprep.subr.mxu0 0.0
    %670 = vmatpush1.msra.mxu0 0.0
    %671 = vmatprep.subr.mxu0 0.0
    %672 = vmatpush1.msra.mxu0 0.0
    %673 = vmatprep.subr.mxu0 0.0
    %674 = vmatpush1.msra.mxu0 0.0
    %675 = vmatprep.subr.mxu0 %v174
    %676 = vmatpush1.msra.mxu0 %v173
    %677 = vmatprep.subr.mxu0 %v172
    %678 = vmatpush1.msra.mxu0 %v171
    %679 = vmatprep.subr.mxu0 %v170
    %680 = vmatpush1.msra.mxu0 %v169
    %681 = vmatprep.subr.mxu0 %v168
    %682 = vmatpush1.msra.mxu0 %v167
    %683 = vmatprep.subr.mxu0 %v166
    %684 = vmatpush1.msra.mxu0 %v165
    %685 = vmatprep.subr.mxu0 %v164
    %686 = vmatpush1.msra.mxu0 %v163
    %687 = vmatprep.subr.mxu0 %v162
    %688 = vmatpush1.msra.mxu0 %v161
    %689 = vmatprep.subr.mxu0 %v160
    %690 = vmatpush1.msra.mxu0 %v159
    %691 = vmatprep.subr.mxu0 0.0
    %692 = vmatpush2.msra.mxu0 0.0
    %693 = vmatprep.subr.mxu0 0.0
    %694 = vmatpush2.msra.mxu0 0.0
    %695 = vmatprep.subr.mxu0 0.0
    %696 = vmatpush2.msra.mxu0 0.0
    %697 = vmatprep.subr.mxu0 0.0
    %698 = vmatpush2.msra.mxu0 0.0
    %699 = vmatprep.subr.mxu0 0.0
    %700 = vmatpush2.msra.mxu0 0.0
    %701 = vmatprep.subr.mxu0 0.0
    %702 = vmatpush2.msra.mxu0 0.0
    %703 = vmatprep.subr.mxu0 0.0
    %704 = vmatpush2.msra.mxu0 0.0
    %705 = vmatprep.subr.mxu0 0.0
    %706 = vmatpush2.msra.mxu0 0.0
    %707 = vmatprep.subr.mxu0 0.0
    %708 = vmatpush2.msra.mxu0 0.0
    %709 = vmatprep.subr.mxu0 0.0
    %710 = vmatpush2.msra.mxu0 0.0
    %711 = vmatprep.subr.mxu0 0.0
    %712 = vmatpush2.msra.mxu0 0.0
    %713 = vmatprep.subr.mxu0 0.0
    %714 = vmatpush2.msra.mxu0 0.0
    %715 = vmatprep.subr.mxu0 0.0
    %716 = vmatpush2.msra.mxu0 0.0
    %717 = vmatprep.subr.mxu0 0.0
    %718 = vmatpush2.msra.mxu0 0.0
    %719 = vmatprep.subr.mxu0 0.0
    %720 = vmatpush2.msra.mxu0 0.0
    %721 = vmatprep.subr.mxu0 0.0
    %722 = vmatpush2.msra.mxu0 0.0
    %723 = vmatprep.mubr.f32.mxu0 0.0
    %724 = vmatmul.mubr.f32.gmra.mxu0 %v657
    %v725 = vpop.f32.mrf.mxu0
    %v726 = vadd.f32 0.0, %v725
    %v727 = vpop.f32.mrf.mxu0
    %v728 = vadd.f32 0.0, %v727
    %729 = vdwg.mxu0
    %v732 = vrot.slane %v726, 5
    %v733 = vrot.slane %v728, 5
    %v734 = vrot.slane %v726, 6
    %v735 = vrot.slane %v728, 6
    %v740 = vadd.f32 %v149, %v732
    %v741 = vadd.f32 %v151, %v733
    %v742 = vadd.f32 %v155, %v734
    %v743 = vadd.f32 %v157, %v735
    %v744 = vxor.u32 %v740, 2147483648
    %v745 = vxor.u32 %v741, 2147483648
    %v746 = vxor.u32 %v742, 2147483648
    %v747 = vxor.u32 %v743, 2147483648
    %v748 = vmul.f32 %v744, 1.442695
    %v749 = vpow.pop %v748
    %v750 = vmul.f32 %v745, 1.442695
    %v751 = vpow.pop %v750
    %v752 = vmul.f32 %v746, 1.442695
    %v753 = vpow.pop %v752
    %v754 = vmul.f32 %v747, 1.442695
    %v755 = vpow.pop %v754
    %v756 = vadd.f32 %v749, 1.0
    %v757 = vadd.f32 %v751, 1.0
    %v758 = vadd.f32 %v753, 1.0
    %v759 = vadd.f32 %v755, 1.0
    %v760 = vrcp.pop %v756
    %v761 = vmul.f32 1.0, %v760
    %v762 = vrcp.pop %v757
    %v763 = vmul.f32 1.0, %v762
    %v764 = vrcp.pop %v758
    %v765 = vmul.f32 1.0, %v764
    %v766 = vrcp.pop %v759
    %v767 = vmul.f32 1.0, %v766
    %v768 = vtanh.pop %v741
    %v769 = vtanh.pop %v743
    %v772 = vrot.slane %v632, 7
    %v773 = vrot.slane %v633, 7
    %v776 = vmul.f32 %v761, %v772
    %v777 = vmul.f32 %v765, %v773
    %780 = vrot.lane.b32.xlu0 %v768, 64
    %v781 = vpop.permute.xlu0 %780
    %782 = vrot.lane.b32.xlu0 %v769, 64
    %v783 = vpop.permute.xlu0 %782
    %v786 = vmul.f32 %v761, %v781
    %v787 = vmul.f32 %v765, %v783
    %790 = vrot.lane.b32.xlu0 %v786, 64
    %v791 = vpop.permute.xlu0 %790
    %792 = vrot.lane.b32.xlu0 %v787, 64
    %v793 = vpop.permute.xlu0 %792
    %v796 = vadd.f32 %v776, %v791
    %v797 = vadd.f32 %v777, %v793
    %v798 = vtanh.pop %v796
    %v799 = vtanh.pop %v797
    %802 = vrot.lane.b32.xlu0 %v798, 64
    %v803 = vpop.permute.xlu0 %802
    %804 = vrot.lane.b32.xlu0 %v799, 64
    %v805 = vpop.permute.xlu0 %804
    %v808 = vmul.f32 %v763, %v803
    %v809 = vmul.f32 %v767, %v805
    %vm810 = vcmask 257027
    %811 = vst.msk [vmem:[#allocation2] sm:$0x8] %vm810, %v808
    %812 = vst.msk [vmem:[#allocation2 + $0x8] sm:$0x8] %vm810, %v809
    %vm813 = vcmask 519427
    %814 = vst.msk [vmem:[#allocation2 + $0x1] sm:$0x8] %vm813, %v808
    %815 = vst.msk [vmem:[#allocation2 + $0x9] sm:$0x8] %vm813, %v809
    %v818 = vrot.slane %v808, 3
    %v819 = vrot.slane %v809, 2
    %v820 = vsel %vm330, %v819, %v818
    %v821 = vsel %vm75, %v820, 0
    %823 = vmatprep.subr.mxu0 0.0
    %824 = vmatpush1.msra.mxu0 0.0
    %825 = vmatprep.subr.mxu0 0.0
    %826 = vmatpush1.msra.mxu0 0.0
    %827 = vmatprep.subr.mxu0 0.0
    %828 = vmatpush1.msra.mxu0 0.0
    %829 = vmatprep.subr.mxu0 0.0
    %830 = vmatpush1.msra.mxu0 0.0
    %831 = vmatprep.subr.mxu0 0.0
    %832 = vmatpush1.msra.mxu0 0.0
    %833 = vmatprep.subr.mxu0 0.0
    %834 = vmatpush1.msra.mxu0 0.0
    %835 = vmatprep.subr.mxu0 0.0
    %836 = vmatpush1.msra.mxu0 0.0
    %837 = vmatprep.subr.mxu0 0.0
    %838 = vmatpush1.msra.mxu0 0.0
    %839 = vmatprep.subr.mxu0 %v174
    %840 = vmatpush1.msra.mxu0 %v173
    %841 = vmatprep.subr.mxu0 %v172
    %842 = vmatpush1.msra.mxu0 %v171
    %843 = vmatprep.subr.mxu0 %v170
    %844 = vmatpush1.msra.mxu0 %v169
    %845 = vmatprep.subr.mxu0 %v168
    %846 = vmatpush1.msra.mxu0 %v167
    %847 = vmatprep.subr.mxu0 %v166
    %848 = vmatpush1.msra.mxu0 %v165
    %849 = vmatprep.subr.mxu0 %v164
    %850 = vmatpush1.msra.mxu0 %v163
    %851 = vmatprep.subr.mxu0 %v162
    %852 = vmatpush1.msra.mxu0 %v161
    %853 = vmatprep.subr.mxu0 %v160
    %854 = vmatpush1.msra.mxu0 %v159
    %855 = vmatprep.subr.mxu0 0.0
    %856 = vmatpush2.msra.mxu0 0.0
    %857 = vmatprep.subr.mxu0 0.0
    %858 = vmatpush2.msra.mxu0 0.0
    %859 = vmatprep.subr.mxu0 0.0
    %860 = vmatpush2.msra.mxu0 0.0
    %861 = vmatprep.subr.mxu0 0.0
    %862 = vmatpush2.msra.mxu0 0.0
    %863 = vmatprep.subr.mxu0 0.0
    %864 = vmatpush2.msra.mxu0 0.0
    %865 = vmatprep.subr.mxu0 0.0
    %866 = vmatpush2.msra.mxu0 0.0
    %867 = vmatprep.subr.mxu0 0.0
    %868 = vmatpush2.msra.mxu0 0.0
    %869 = vmatprep.subr.mxu0 0.0
    %870 = vmatpush2.msra.mxu0 0.0
    %871 = vmatprep.subr.mxu0 0.0
    %872 = vmatpush2.msra.mxu0 0.0
    %873 = vmatprep.subr.mxu0 0.0
    %874 = vmatpush2.msra.mxu0 0.0
    %875 = vmatprep.subr.mxu0 0.0
    %876 = vmatpush2.msra.mxu0 0.0
    %877 = vmatprep.subr.mxu0 0.0
    %878 = vmatpush2.msra.mxu0 0.0
    %879 = vmatprep.subr.mxu0 0.0
    %880 = vmatpush2.msra.mxu0 0.0
    %881 = vmatprep.subr.mxu0 0.0
    %882 = vmatpush2.msra.mxu0 0.0
    %883 = vmatprep.subr.mxu0 0.0
    %884 = vmatpush2.msra.mxu0 0.0
    %885 = vmatprep.subr.mxu0 0.0
    %886 = vmatpush2.msra.mxu0 0.0
    %887 = vmatprep.mubr.f32.mxu0 0.0
    %888 = vmatmul.mubr.f32.gmra.mxu0 %v821
    %v889 = vpop.f32.mrf.mxu0
    %v890 = vadd.f32 0.0, %v889
    %v891 = vpop.f32.mrf.mxu0
    %v892 = vadd.f32 0.0, %v891
    %893 = vdwg.mxu0
    %v896 = vrot.slane %v890, 4
    %v897 = vrot.slane %v892, 4
    %v898 = vrot.slane %v890, 5
    %v899 = vrot.slane %v892, 5
    %v904 = vadd.f32 %v149, %v896
    %v905 = vadd.f32 %v151, %v897
    %v906 = vadd.f32 %v155, %v898
    %v907 = vadd.f32 %v157, %v899
    %v908 = vxor.u32 %v904, 2147483648
    %v909 = vxor.u32 %v905, 2147483648
    %v910 = vxor.u32 %v906, 2147483648
    %v911 = vxor.u32 %v907, 2147483648
    %v912 = vmul.f32 %v908, 1.442695
    %v913 = vpow.pop %v912
    %v914 = vmul.f32 %v909, 1.442695
    %v915 = vpow.pop %v914
    %v916 = vmul.f32 %v910, 1.442695
    %v917 = vpow.pop %v916
    %v918 = vmul.f32 %v911, 1.442695
    %v919 = vpow.pop %v918
    %v920 = vadd.f32 %v913, 1.0
    %v921 = vadd.f32 %v915, 1.0
    %v922 = vadd.f32 %v917, 1.0
    %v923 = vadd.f32 %v919, 1.0
    %v924 = vrcp.pop %v920
    %v925 = vmul.f32 1.0, %v924
    %v926 = vrcp.pop %v921
    %v927 = vmul.f32 1.0, %v926
    %v928 = vrcp.pop %v922
    %v929 = vmul.f32 1.0, %v928
    %v930 = vrcp.pop %v923
    %v931 = vmul.f32 1.0, %v930
    %v932 = vtanh.pop %v905
    %v933 = vtanh.pop %v907
    %v936 = vrot.slane %v796, 7
    %v937 = vrot.slane %v797, 7
    %v940 = vmul.f32 %v925, %v936
    %v941 = vmul.f32 %v929, %v937
    %944 = vrot.lane.b32.xlu0 %v932, 64
    %v945 = vpop.permute.xlu0 %944
    %946 = vrot.lane.b32.xlu0 %v933, 64
    %v947 = vpop.permute.xlu0 %946
    %v950 = vmul.f32 %v925, %v945
    %v951 = vmul.f32 %v929, %v947
    %954 = vrot.lane.b32.xlu0 %v950, 64
    %v955 = vpop.permute.xlu0 %954
    %956 = vrot.lane.b32.xlu0 %v951, 64
    %v957 = vpop.permute.xlu0 %956
    %v960 = vadd.f32 %v940, %v955
    %v961 = vadd.f32 %v941, %v957
    %v962 = vtanh.pop %v960
    %v963 = vtanh.pop %v961
    %966 = vrot.lane.b32.xlu0 %v962, 64
    %v967 = vpop.permute.xlu0 %966
    %968 = vrot.lane.b32.xlu0 %v963, 64
    %v969 = vpop.permute.xlu0 %968
    %v972 = vmul.f32 %v927, %v967
    %v973 = vmul.f32 %v931, %v969
    %vm974 = vcmask 258052
    %975 = vst.msk [vmem:[#allocation2] sm:$0x10] %vm974, %v972
    %976 = vst.msk [vmem:[#allocation2 + $0x8] sm:$0x10] %vm974, %v973
    %vm977 = vcmask 520452
    %978 = vst.msk [vmem:[#allocation2 - $0x1] sm:$0x10] %vm977, %v972
    %979 = vst.msk [vmem:[#allocation2 + $0x7] sm:$0x10] %vm977, %v973
    %v982 = vrot.slane %v972, 4
    %v983 = vrot.slane %v973, 3
    %v984 = vsel %vm330, %v983, %v982
    %v985 = vsel %vm75, %v984, 0
    %987 = vmatprep.subr.mxu0 0.0
    %988 = vmatpush1.msra.mxu0 0.0
    %989 = vmatprep.subr.mxu0 0.0
    %990 = vmatpush1.msra.mxu0 0.0
    %991 = vmatprep.subr.mxu0 0.0
    %992 = vmatpush1.msra.mxu0 0.0
    %993 = vmatprep.subr.mxu0 0.0
    %994 = vmatpush1.msra.mxu0 0.0
    %995 = vmatprep.subr.mxu0 0.0
    %996 = vmatpush1.msra.mxu0 0.0
    %997 = vmatprep.subr.mxu0 0.0
    %998 = vmatpush1.msra.mxu0 0.0
    %999 = vmatprep.subr.mxu0 0.0
    %1000 = vmatpush1.msra.mxu0 0.0
    %1001 = vmatprep.subr.mxu0 0.0
    %1002 = vmatpush1.msra.mxu0 0.0
    %1003 = vmatprep.subr.mxu0 %v174
    %1004 = vmatpush1.msra.mxu0 %v173
    %1005 = vmatprep.subr.mxu0 %v172
    %1006 = vmatpush1.msra.mxu0 %v171
    %1007 = vmatprep.subr.mxu0 %v170
    %1008 = vmatpush1.msra.mxu0 %v169
    %1009 = vmatprep.subr.mxu0 %v168
    %1010 = vmatpush1.msra.mxu0 %v167
    %1011 = vmatprep.subr.mxu0 %v166
    %1012 = vmatpush1.msra.mxu0 %v165
    %1013 = vmatprep.subr.mxu0 %v164
    %1014 = vmatpush1.msra.mxu0 %v163
    %1015 = vmatprep.subr.mxu0 %v162
    %1016 = vmatpush1.msra.mxu0 %v161
    %1017 = vmatprep.subr.mxu0 %v160
    %1018 = vmatpush1.msra.mxu0 %v159
    %1019 = vmatprep.subr.mxu0 0.0
    %1020 = vmatpush2.msra.mxu0 0.0
    %1021 = vmatprep.subr.mxu0 0.0
    %1022 = vmatpush2.msra.mxu0 0.0
    %1023 = vmatprep.subr.mxu0 0.0
    %1024 = vmatpush2.msra.mxu0 0.0
    %1025 = vmatprep.subr.mxu0 0.0
    %1026 = vmatpush2.msra.mxu0 0.0
    %1027 = vmatprep.subr.mxu0 0.0
    %1028 = vmatpush2.msra.mxu0 0.0
    %1029 = vmatprep.subr.mxu0 0.0
    %1030 = vmatpush2.msra.mxu0 0.0
    %1031 = vmatprep.subr.mxu0 0.0
    %1032 = vmatpush2.msra.mxu0 0.0
    %1033 = vmatprep.subr.mxu0 0.0
    %1034 = vmatpush2.msra.mxu0 0.0
    %1035 = vmatprep.subr.mxu0 0.0
    %1036 = vmatpush2.msra.mxu0 0.0
    %1037 = vmatprep.subr.mxu0 0.0
    %1038 = vmatpush2.msra.mxu0 0.0
    %1039 = vmatprep.subr.mxu0 0.0
    %1040 = vmatpush2.msra.mxu0 0.0
    %1041 = vmatprep.subr.mxu0 0.0
    %1042 = vmatpush2.msra.mxu0 0.0
    %1043 = vmatprep.subr.mxu0 0.0
    %1044 = vmatpush2.msra.mxu0 0.0
    %1045 = vmatprep.subr.mxu0 0.0
    %1046 = vmatpush2.msra.mxu0 0.0
    %1047 = vmatprep.subr.mxu0 0.0
    %1048 = vmatpush2.msra.mxu0 0.0
    %1049 = vmatprep.subr.mxu0 0.0
    %1050 = vmatpush2.msra.mxu0 0.0
    %1051 = vmatprep.mubr.f32.mxu0 0.0
    %1052 = vmatmul.mubr.f32.gmra.mxu0 %v985
    %v1053 = vpop.f32.mrf.mxu0
    %v1054 = vadd.f32 0.0, %v1053
    %v1055 = vpop.f32.mrf.mxu0
    %v1056 = vadd.f32 0.0, %v1055
    %1057 = vdwg.mxu0
    %v1060 = vrot.slane %v1054, 3
    %v1061 = vrot.slane %v1056, 3
    %v1062 = vrot.slane %v1054, 4
    %v1063 = vrot.slane %v1056, 4
    %v1068 = vadd.f32 %v149, %v1060
    %v1069 = vadd.f32 %v151, %v1061
    %v1070 = vadd.f32 %v155, %v1062
    %v1071 = vadd.f32 %v157, %v1063
    %v1072 = vxor.u32 %v1068, 2147483648
    %v1073 = vxor.u32 %v1069, 2147483648
    %v1074 = vxor.u32 %v1070, 2147483648
    %v1075 = vxor.u32 %v1071, 2147483648
    %v1076 = vmul.f32 %v1072, 1.442695
    %v1077 = vpow.pop %v1076
    %v1078 = vmul.f32 %v1073, 1.442695
    %v1079 = vpow.pop %v1078
    %v1080 = vmul.f32 %v1074, 1.442695
    %v1081 = vpow.pop %v1080
    %v1082 = vmul.f32 %v1075, 1.442695
    %v1083 = vpow.pop %v1082
    %v1084 = vadd.f32 %v1077, 1.0
    %v1085 = vadd.f32 %v1079, 1.0
    %v1086 = vadd.f32 %v1081, 1.0
    %v1087 = vadd.f32 %v1083, 1.0
    %v1088 = vrcp.pop %v1084
    %v1089 = vmul.f32 1.0, %v1088
    %v1090 = vrcp.pop %v1085
    %v1091 = vmul.f32 1.0, %v1090
    %v1092 = vrcp.pop %v1086
    %v1093 = vmul.f32 1.0, %v1092
    %v1094 = vrcp.pop %v1087
    %v1095 = vmul.f32 1.0, %v1094
    %v1096 = vtanh.pop %v1069
    %v1097 = vtanh.pop %v1071
    %v1100 = vrot.slane %v960, 7
    %v1101 = vrot.slane %v961, 7
    %v1104 = vmul.f32 %v1089, %v1100
    %v1105 = vmul.f32 %v1093, %v1101
    %1108 = vrot.lane.b32.xlu0 %v1096, 64
    %v1109 = vpop.permute.xlu0 %1108
    %1110 = vrot.lane.b32.xlu0 %v1097, 64
    %v1111 = vpop.permute.xlu0 %1110
    %v1114 = vmul.f32 %v1089, %v1109
    %v1115 = vmul.f32 %v1093, %v1111
    %1118 = vrot.lane.b32.xlu0 %v1114, 64
    %v1119 = vpop.permute.xlu0 %1118
    %1120 = vrot.lane.b32.xlu0 %v1115, 64
    %v1121 = vpop.permute.xlu0 %1120
    %v1124 = vadd.f32 %v1104, %v1119
    %v1125 = vadd.f32 %v1105, %v1121
    %v1126 = vtanh.pop %v1124
    %v1127 = vtanh.pop %v1125
    %1130 = vrot.lane.b32.xlu0 %v1126, 64
    %v1131 = vpop.permute.xlu0 %1130
    %1132 = vrot.lane.b32.xlu0 %v1127, 64
    %v1133 = vpop.permute.xlu0 %1132
    %v1136 = vmul.f32 %v1091, %v1131
    %v1137 = vmul.f32 %v1095, %v1133
    %vm1138 = vcmask 259077
    %1139 = vst.msk [vmem:[#allocation2] sm:$0x20] %vm1138, %v1136
    %1140 = vst.msk [vmem:[#allocation2 + $0x8] sm:$0x20] %vm1138, %v1137
    %vm1141 = vcmask 521477
    %1142 = vst.msk [vmem:[#allocation2 - $0x3] sm:$0x20] %vm1141, %v1136
    %1143 = vst.msk [vmem:[#allocation2 + $0x5] sm:$0x20] %vm1141, %v1137
    %v1146 = vrot.slane %v1136, 5
    %v1147 = vrot.slane %v1137, 4
    %v1148 = vsel %vm330, %v1147, %v1146
    %v1149 = vsel %vm75, %v1148, 0
    %1151 = vmatprep.subr.mxu0 0.0
    %1152 = vmatpush1.msra.mxu0 0.0
    %1153 = vmatprep.subr.mxu0 0.0
    %1154 = vmatpush1.msra.mxu0 0.0
    %1155 = vmatprep.subr.mxu0 0.0
    %1156 = vmatpush1.msra.mxu0 0.0
    %1157 = vmatprep.subr.mxu0 0.0
    %1158 = vmatpush1.msra.mxu0 0.0
    %1159 = vmatprep.subr.mxu0 0.0
    %1160 = vmatpush1.msra.mxu0 0.0
    %1161 = vmatprep.subr.mxu0 0.0
    %1162 = vmatpush1.msra.mxu0 0.0
    %1163 = vmatprep.subr.mxu0 0.0
    %1164 = vmatpush1.msra.mxu0 0.0
    %1165 = vmatprep.subr.mxu0 0.0
    %1166 = vmatpush1.msra.mxu0 0.0
    %1167 = vmatprep.subr.mxu0 %v174
    %1168 = vmatpush1.msra.mxu0 %v173
    %1169 = vmatprep.subr.mxu0 %v172
    %1170 = vmatpush1.msra.mxu0 %v171
    %1171 = vmatprep.subr.mxu0 %v170
    %1172 = vmatpush1.msra.mxu0 %v169
    %1173 = vmatprep.subr.mxu0 %v168
    %1174 = vmatpush1.msra.mxu0 %v167
    %1175 = vmatprep.subr.mxu0 %v166
    %1176 = vmatpush1.msra.mxu0 %v165
    %1177 = vmatprep.subr.mxu0 %v164
    %1178 = vmatpush1.msra.mxu0 %v163
    %1179 = vmatprep.subr.mxu0 %v162
    %1180 = vmatpush1.msra.mxu0 %v161
    %1181 = vmatprep.subr.mxu0 %v160
    %1182 = vmatpush1.msra.mxu0 %v159
    %1183 = vmatprep.subr.mxu0 0.0
    %1184 = vmatpush2.msra.mxu0 0.0
    %1185 = vmatprep.subr.mxu0 0.0
    %1186 = vmatpush2.msra.mxu0 0.0
    %1187 = vmatprep.subr.mxu0 0.0
    %1188 = vmatpush2.msra.mxu0 0.0
    %1189 = vmatprep.subr.mxu0 0.0
    %1190 = vmatpush2.msra.mxu0 0.0
    %1191 = vmatprep.subr.mxu0 0.0
    %1192 = vmatpush2.msra.mxu0 0.0
    %1193 = vmatprep.subr.mxu0 0.0
    %1194 = vmatpush2.msra.mxu0 0.0
    %1195 = vmatprep.subr.mxu0 0.0
    %1196 = vmatpush2.msra.mxu0 0.0
    %1197 = vmatprep.subr.mxu0 0.0
    %1198 = vmatpush2.msra.mxu0 0.0
    %1199 = vmatprep.subr.mxu0 0.0
    %1200 = vmatpush2.msra.mxu0 0.0
    %1201 = vmatprep.subr.mxu0 0.0
    %1202 = vmatpush2.msra.mxu0 0.0
    %1203 = vmatprep.subr.mxu0 0.0
    %1204 = vmatpush2.msra.mxu0 0.0
    %1205 = vmatprep.subr.mxu0 0.0
    %1206 = vmatpush2.msra.mxu0 0.0
    %1207 = vmatprep.subr.mxu0 0.0
    %1208 = vmatpush2.msra.mxu0 0.0
    %1209 = vmatprep.subr.mxu0 0.0
    %1210 = vmatpush2.msra.mxu0 0.0
    %1211 = vmatprep.subr.mxu0 0.0
    %1212 = vmatpush2.msra.mxu0 0.0
    %1213 = vmatprep.subr.mxu0 0.0
    %1214 = vmatpush2.msra.mxu0 0.0
    %1215 = vmatprep.mubr.f32.mxu0 0.0
    %1216 = vmatmul.mubr.f32.gmra.mxu0 %v1149
    %v1217 = vpop.f32.mrf.mxu0
    %v1218 = vadd.f32 0.0, %v1217
    %v1219 = vpop.f32.mrf.mxu0
    %v1220 = vadd.f32 0.0, %v1219
    %1221 = vdwg.mxu0
    %v1224 = vrot.slane %v1218, 2
    %v1225 = vrot.slane %v1220, 2
    %v1226 = vrot.slane %v1218, 3
    %v1227 = vrot.slane %v1220, 3
    %v1232 = vadd.f32 %v149, %v1224
    %v1233 = vadd.f32 %v151, %v1225
    %v1234 = vadd.f32 %v155, %v1226
    %v1235 = vadd.f32 %v157, %v1227
    %v1236 = vxor.u32 %v1232, 2147483648
    %v1237 = vxor.u32 %v1233, 2147483648
    %v1238 = vxor.u32 %v1234, 2147483648
    %v1239 = vxor.u32 %v1235, 2147483648
    %v1240 = vmul.f32 %v1236, 1.442695
    %v1241 = vpow.pop %v1240
    %v1242 = vmul.f32 %v1237, 1.442695
    %v1243 = vpow.pop %v1242
    %v1244 = vmul.f32 %v1238, 1.442695
    %v1245 = vpow.pop %v1244
    %v1246 = vmul.f32 %v1239, 1.442695
    %v1247 = vpow.pop %v1246
    %v1248 = vadd.f32 %v1241, 1.0
    %v1249 = vadd.f32 %v1243, 1.0
    %v1250 = vadd.f32 %v1245, 1.0
    %v1251 = vadd.f32 %v1247, 1.0
    %v1252 = vrcp.pop %v1248
    %v1253 = vmul.f32 1.0, %v1252
    %v1254 = vrcp.pop %v1249
    %v1255 = vmul.f32 1.0, %v1254
    %v1256 = vrcp.pop %v1250
    %v1257 = vmul.f32 1.0, %v1256
    %v1258 = vrcp.pop %v1251
    %v1259 = vmul.f32 1.0, %v1258
    %v1260 = vtanh.pop %v1233
    %v1261 = vtanh.pop %v1235
    %v1264 = vrot.slane %v1124, 7
    %v1265 = vrot.slane %v1125, 7
    %v1268 = vmul.f32 %v1253, %v1264
    %v1269 = vmul.f32 %v1257, %v1265
    %1272 = vrot.lane.b32.xlu0 %v1260, 64
    %v1273 = vpop.permute.xlu0 %1272
    %1274 = vrot.lane.b32.xlu0 %v1261, 64
    %v1275 = vpop.permute.xlu0 %1274
    %v1278 = vmul.f32 %v1253, %v1273
    %v1279 = vmul.f32 %v1257, %v1275
    %1282 = vrot.lane.b32.xlu0 %v1278, 64
    %v1283 = vpop.permute.xlu0 %1282
    %1284 = vrot.lane.b32.xlu0 %v1279, 64
    %v1285 = vpop.permute.xlu0 %1284
    %v1288 = vadd.f32 %v1268, %v1283
    %v1289 = vadd.f32 %v1269, %v1285
    %v1290 = vtanh.pop %v1288
    %v1291 = vtanh.pop %v1289
    %1294 = vrot.lane.b32.xlu0 %v1290, 64
    %v1295 = vpop.permute.xlu0 %1294
    %1296 = vrot.lane.b32.xlu0 %v1291, 64
    %v1297 = vpop.permute.xlu0 %1296
    %v1300 = vmul.f32 %v1255, %v1295
    %v1301 = vmul.f32 %v1259, %v1297
    %vm1302 = vcmask 260102
    %1303 = vst.msk [vmem:[#allocation2] sm:$0x40] %vm1302, %v1300
    %1304 = vst.msk [vmem:[#allocation2 + $0x8] sm:$0x40] %vm1302, %v1301
    %vm1305 = vcmask 522502
    %1306 = vst.msk [vmem:[#allocation2 - $0x5] sm:$0x40] %vm1305, %v1300
    %1307 = vst.msk [vmem:[#allocation2 + $0x3] sm:$0x40] %vm1305, %v1301
    %v1310 = vrot.slane %v1300, 6
    %v1311 = vrot.slane %v1301, 5
    %v1312 = vsel %vm330, %v1311, %v1310
    %v1313 = vsel %vm75, %v1312, 0
    %1315 = vmatprep.subr.mxu0 0.0
    %1316 = vmatpush1.msra.mxu0 0.0
    %1317 = vmatprep.subr.mxu0 0.0
    %1318 = vmatpush1.msra.mxu0 0.0
    %1319 = vmatprep.subr.mxu0 0.0
    %1320 = vmatpush1.msra.mxu0 0.0
    %1321 = vmatprep.subr.mxu0 0.0
    %1322 = vmatpush1.msra.mxu0 0.0
    %1323 = vmatprep.subr.mxu0 0.0
    %1324 = vmatpush1.msra.mxu0 0.0
    %1325 = vmatprep.subr.mxu0 0.0
    %1326 = vmatpush1.msra.mxu0 0.0
    %1327 = vmatprep.subr.mxu0 0.0
    %1328 = vmatpush1.msra.mxu0 0.0
    %1329 = vmatprep.subr.mxu0 0.0
    %1330 = vmatpush1.msra.mxu0 0.0
    %1331 = vmatprep.subr.mxu0 %v174
    %1332 = vmatpush1.msra.mxu0 %v173
    %1333 = vmatprep.subr.mxu0 %v172
    %1334 = vmatpush1.msra.mxu0 %v171
    %1335 = vmatprep.subr.mxu0 %v170
    %1336 = vmatpush1.msra.mxu0 %v169
    %1337 = vmatprep.subr.mxu0 %v168
    %1338 = vmatpush1.msra.mxu0 %v167
    %1339 = vmatprep.subr.mxu0 %v166
    %1340 = vmatpush1.msra.mxu0 %v165
    %1341 = vmatprep.subr.mxu0 %v164
    %1342 = vmatpush1.msra.mxu0 %v163
    %1343 = vmatprep.subr.mxu0 %v162
    %1344 = vmatpush1.msra.mxu0 %v161
    %1345 = vmatprep.subr.mxu0 %v160
    %1346 = vmatpush1.msra.mxu0 %v159
    %1347 = vmatprep.subr.mxu0 0.0
    %1348 = vmatpush2.msra.mxu0 0.0
    %1349 = vmatprep.subr.mxu0 0.0
    %1350 = vmatpush2.msra.mxu0 0.0
    %1351 = vmatprep.subr.mxu0 0.0
    %1352 = vmatpush2.msra.mxu0 0.0
    %1353 = vmatprep.subr.mxu0 0.0
    %1354 = vmatpush2.msra.mxu0 0.0
    %1355 = vmatprep.subr.mxu0 0.0
    %1356 = vmatpush2.msra.mxu0 0.0
    %1357 = vmatprep.subr.mxu0 0.0
    %1358 = vmatpush2.msra.mxu0 0.0
    %1359 = vmatprep.subr.mxu0 0.0
    %1360 = vmatpush2.msra.mxu0 0.0
    %1361 = vmatprep.subr.mxu0 0.0
    %1362 = vmatpush2.msra.mxu0 0.0
    %1363 = vmatprep.subr.mxu0 0.0
    %1364 = vmatpush2.msra.mxu0 0.0
    %1365 = vmatprep.subr.mxu0 0.0
    %1366 = vmatpush2.msra.mxu0 0.0
    %1367 = vmatprep.subr.mxu0 0.0
    %1368 = vmatpush2.msra.mxu0 0.0
    %1369 = vmatprep.subr.mxu0 0.0
    %1370 = vmatpush2.msra.mxu0 0.0
    %1371 = vmatprep.subr.mxu0 0.0
    %1372 = vmatpush2.msra.mxu0 0.0
    %1373 = vmatprep.subr.mxu0 0.0
    %1374 = vmatpush2.msra.mxu0 0.0
    %1375 = vmatprep.subr.mxu0 0.0
    %1376 = vmatpush2.msra.mxu0 0.0
    %1377 = vmatprep.subr.mxu0 0.0
    %1378 = vmatpush2.msra.mxu0 0.0
    %1379 = vmatprep.mubr.f32.mxu0 0.0
    %1380 = vmatmul.mubr.f32.gmra.mxu0 %v1313
    %v1381 = vpop.f32.mrf.mxu0
    %v1382 = vadd.f32 0.0, %v1381
    %v1383 = vpop.f32.mrf.mxu0
    %v1384 = vadd.f32 0.0, %v1383
    %1385 = vdwg.mxu0
    %v1388 = vrot.slane %v1382, 1
    %v1389 = vrot.slane %v1384, 1
    %v1390 = vrot.slane %v1382, 2
    %v1391 = vrot.slane %v1384, 2
    %v1396 = vadd.f32 %v149, %v1388
    %v1397 = vadd.f32 %v151, %v1389
    %v1398 = vadd.f32 %v155, %v1390
    %v1399 = vadd.f32 %v157, %v1391
    %v1400 = vxor.u32 %v1396, 2147483648
    %v1401 = vxor.u32 %v1397, 2147483648
    %v1402 = vxor.u32 %v1398, 2147483648
    %v1403 = vxor.u32 %v1399, 2147483648
    %v1404 = vmul.f32 %v1400, 1.442695
    %v1405 = vpow.pop %v1404
    %v1406 = vmul.f32 %v1401, 1.442695
    %v1407 = vpow.pop %v1406
    %v1408 = vmul.f32 %v1402, 1.442695
    %v1409 = vpow.pop %v1408
    %v1410 = vmul.f32 %v1403, 1.442695
    %v1411 = vpow.pop %v1410
    %v1412 = vadd.f32 %v1405, 1.0
    %v1413 = vadd.f32 %v1407, 1.0
    %v1414 = vadd.f32 %v1409, 1.0
    %v1415 = vadd.f32 %v1411, 1.0
    %v1416 = vrcp.pop %v1412
    %v1417 = vmul.f32 1.0, %v1416
    %v1418 = vrcp.pop %v1413
    %v1419 = vmul.f32 1.0, %v1418
    %v1420 = vrcp.pop %v1414
    %v1421 = vmul.f32 1.0, %v1420
    %v1422 = vrcp.pop %v1415
    %v1423 = vmul.f32 1.0, %v1422
    %v1424 = vtanh.pop %v1397
    %v1425 = vtanh.pop %v1399
    %v1428 = vrot.slane %v1288, 7
    %v1429 = vrot.slane %v1289, 7
    %v1432 = vmul.f32 %v1417, %v1428
    %v1433 = vmul.f32 %v1421, %v1429
    %1436 = vrot.lane.b32.xlu0 %v1424, 64
    %v1437 = vpop.permute.xlu0 %1436
    %1438 = vrot.lane.b32.xlu0 %v1425, 64
    %v1439 = vpop.permute.xlu0 %1438
    %v1442 = vmul.f32 %v1417, %v1437
    %v1443 = vmul.f32 %v1421, %v1439
    %1446 = vrot.lane.b32.xlu0 %v1442, 64
    %v1447 = vpop.permute.xlu0 %1446
    %1448 = vrot.lane.b32.xlu0 %v1443, 64
    %v1449 = vpop.permute.xlu0 %1448
    %v1452 = vadd.f32 %v1432, %v1447
    %v1453 = vadd.f32 %v1433, %v1449
    %v1454 = vtanh.pop %v1452
    %v1455 = vtanh.pop %v1453
    %1458 = vrot.lane.b32.xlu0 %v1454, 64
    %v1459 = vpop.permute.xlu0 %1458
    %1460 = vrot.lane.b32.xlu0 %v1455, 64
    %v1461 = vpop.permute.xlu0 %1460
    %v1464 = vmul.f32 %v1419, %v1459
    %v1465 = vmul.f32 %v1423, %v1461
    %vm1466 = vcmask 261127
    %1467 = vst.msk [vmem:[#allocation2] sm:$0x80] %vm1466, %v1464
    %1468 = vst.msk [vmem:[#allocation2 + $0x8] sm:$0x80] %vm1466, %v1465
    %vm1469 = vcmask 523527
    %1470 = vst.msk [vmem:[#allocation2 - $0x7] sm:$0x80] %vm1469, %v1464
    %1471 = vst.msk [vmem:[#allocation2 + $0x1] sm:$0x80] %vm1469, %v1465
    %v1472 = vld [vmem:[#allocation2] sm:$0xff]
    %v1473 = vld [vmem:[#allocation2 + $0x8] sm:$0xff]
    %v1474 = vld [vmem:[%s9] sm:$0xff]
    %v1475 = vld [vmem:[%s9 + $0x8] sm:$0xff]
    %v1477 = vsel %vm75, %v1472, 0
    %1479 = vmatprep.subr.mxu0 0.0
    %1480 = vmatpush1.xpose.msra.mxu0 0.0
    %1481 = vmatprep.subr.mxu0 0.0
    %1482 = vmatpush1.xpose.msra.mxu0 0.0
    %1483 = vmatprep.subr.mxu0 0.0
    %1484 = vmatpush1.xpose.msra.mxu0 0.0
    %1485 = vmatprep.subr.mxu0 0.0
    %1486 = vmatpush1.xpose.msra.mxu0 0.0
    %1487 = vmatprep.subr.mxu0 0.0
    %1488 = vmatpush1.xpose.msra.mxu0 0.0
    %1489 = vmatprep.subr.mxu0 0.0
    %1490 = vmatpush1.xpose.msra.mxu0 0.0
    %1491 = vmatprep.subr.mxu0 0.0
    %1492 = vmatpush1.xpose.msra.mxu0 0.0
    %1493 = vmatprep.subr.mxu0 0.0
    %1494 = vmatpush1.xpose.msra.mxu0 0.0
    %1495 = vmatprep.subr.mxu0 0.0
    %1496 = vmatpush1.xpose.msra.mxu0 0.0
    %1497 = vmatprep.subr.mxu0 0.0
    %1498 = vmatpush1.xpose.msra.mxu0 0.0
    %1499 = vmatprep.subr.mxu0 0.0
    %1500 = vmatpush1.xpose.msra.mxu0 0.0
    %1501 = vmatprep.subr.mxu0 0.0
    %1502 = vmatpush1.xpose.msra.mxu0 0.0
    %1503 = vmatprep.subr.mxu0 0.0
    %1504 = vmatpush1.xpose.msra.mxu0 0.0
    %1505 = vmatprep.subr.mxu0 0.0
    %1506 = vmatpush1.xpose.msra.mxu0 0.0
    %1507 = vmatprep.subr.mxu0 0.0
    %1508 = vmatpush1.xpose.msra.mxu0 0.0
    %1509 = vmatprep.subr.mxu0 0.0
    %1510 = vmatpush1.xpose.msra.mxu0 %v1477
    %1511 = vmatprep.subr.mxu0 0.0
    %1512 = vmatpush2.xpose.msra.mxu0 0.0
    %1513 = vmatprep.subr.mxu0 0.0
    %1514 = vmatpush2.xpose.msra.mxu0 0.0
    %1515 = vmatprep.subr.mxu0 0.0
    %1516 = vmatpush2.xpose.msra.mxu0 0.0
    %1517 = vmatprep.subr.mxu0 0.0
    %1518 = vmatpush2.xpose.msra.mxu0 0.0
    %1519 = vmatprep.subr.mxu0 0.0
    %1520 = vmatpush2.xpose.msra.mxu0 0.0
    %1521 = vmatprep.subr.mxu0 0.0
    %1522 = vmatpush2.xpose.msra.mxu0 0.0
    %1523 = vmatprep.subr.mxu0 0.0
    %1524 = vmatpush2.xpose.msra.mxu0 0.0
    %1525 = vmatprep.subr.mxu0 0.0
    %1526 = vmatpush2.xpose.msra.mxu0 0.0
    %1527 = vmatprep.subr.mxu0 0.0
    %1528 = vmatpush2.xpose.msra.mxu0 0.0
    %1529 = vmatprep.subr.mxu0 0.0
    %1530 = vmatpush2.xpose.msra.mxu0 0.0
    %1531 = vmatprep.subr.mxu0 0.0
    %1532 = vmatpush2.xpose.msra.mxu0 0.0
    %1533 = vmatprep.subr.mxu0 0.0
    %1534 = vmatpush2.xpose.msra.mxu0 0.0
    %1535 = vmatprep.subr.mxu0 0.0
    %1536 = vmatpush2.xpose.msra.mxu0 0.0
    %1537 = vmatprep.subr.mxu0 0.0
    %1538 = vmatpush2.xpose.msra.mxu0 0.0
    %1539 = vmatprep.subr.mxu0 0.0
    %1540 = vmatpush2.xpose.msra.mxu0 0.0
    %1541 = vmatprep.subr.mxu0 0.0
    %1542 = vmatpush2.xpose.msra.mxu0 0.0
    %1543 = vmatprep.mubr.f32.mxu0 0.0
    %1544 = vmatmul.mubr.f32.gmra.mxu0 %v1477
    %v1545 = vpop.f32.mrf.mxu0
    %v1546 = vadd.f32 0.0, %v1545
    %v1547 = vpop.f32.mrf.mxu0
    %1548 = vdwg.mxu0
    %v1550 = vsel %vm75, %v1473, 0
    %1552 = vmatprep.subr.mxu0 0.0
    %1553 = vmatpush1.xpose.msra.mxu0 0.0
    %1554 = vmatprep.subr.mxu0 0.0
    %1555 = vmatpush1.xpose.msra.mxu0 0.0
    %1556 = vmatprep.subr.mxu0 0.0
    %1557 = vmatpush1.xpose.msra.mxu0 0.0
    %1558 = vmatprep.subr.mxu0 0.0
    %1559 = vmatpush1.xpose.msra.mxu0 0.0
    %1560 = vmatprep.subr.mxu0 0.0
    %1561 = vmatpush1.xpose.msra.mxu0 0.0
    %1562 = vmatprep.subr.mxu0 0.0
    %1563 = vmatpush1.xpose.msra.mxu0 0.0
    %1564 = vmatprep.subr.mxu0 0.0
    %1565 = vmatpush1.xpose.msra.mxu0 0.0
    %1566 = vmatprep.subr.mxu0 0.0
    %1567 = vmatpush1.xpose.msra.mxu0 0.0
    %1568 = vmatprep.subr.mxu0 0.0
    %1569 = vmatpush1.xpose.msra.mxu0 0.0
    %1570 = vmatprep.subr.mxu0 0.0
    %1571 = vmatpush1.xpose.msra.mxu0 0.0
    %1572 = vmatprep.subr.mxu0 0.0
    %1573 = vmatpush1.xpose.msra.mxu0 0.0
    %1574 = vmatprep.subr.mxu0 0.0
    %1575 = vmatpush1.xpose.msra.mxu0 0.0
    %1576 = vmatprep.subr.mxu0 0.0
    %1577 = vmatpush1.xpose.msra.mxu0 0.0
    %1578 = vmatprep.subr.mxu0 0.0
    %1579 = vmatpush1.xpose.msra.mxu0 0.0
    %1580 = vmatprep.subr.mxu0 0.0
    %1581 = vmatpush1.xpose.msra.mxu0 0.0
    %1582 = vmatprep.subr.mxu0 0.0
    %1583 = vmatpush1.xpose.msra.mxu0 %v1550
    %1584 = vmatprep.subr.mxu0 0.0
    %1585 = vmatpush2.xpose.msra.mxu0 0.0
    %1586 = vmatprep.subr.mxu0 0.0
    %1587 = vmatpush2.xpose.msra.mxu0 0.0
    %1588 = vmatprep.subr.mxu0 0.0
    %1589 = vmatpush2.xpose.msra.mxu0 0.0
    %1590 = vmatprep.subr.mxu0 0.0
    %1591 = vmatpush2.xpose.msra.mxu0 0.0
    %1592 = vmatprep.subr.mxu0 0.0
    %1593 = vmatpush2.xpose.msra.mxu0 0.0
    %1594 = vmatprep.subr.mxu0 0.0
    %1595 = vmatpush2.xpose.msra.mxu0 0.0
    %1596 = vmatprep.subr.mxu0 0.0
    %1597 = vmatpush2.xpose.msra.mxu0 0.0
    %1598 = vmatprep.subr.mxu0 0.0
    %1599 = vmatpush2.xpose.msra.mxu0 0.0
    %1600 = vmatprep.subr.mxu0 0.0
    %1601 = vmatpush2.xpose.msra.mxu0 0.0
    %1602 = vmatprep.subr.mxu0 0.0
    %1603 = vmatpush2.xpose.msra.mxu0 0.0
    %1604 = vmatprep.subr.mxu0 0.0
    %1605 = vmatpush2.xpose.msra.mxu0 0.0
    %1606 = vmatprep.subr.mxu0 0.0
    %1607 = vmatpush2.xpose.msra.mxu0 0.0
    %1608 = vmatprep.subr.mxu0 0.0
    %1609 = vmatpush2.xpose.msra.mxu0 0.0
    %1610 = vmatprep.subr.mxu0 0.0
    %1611 = vmatpush2.xpose.msra.mxu0 0.0
    %1612 = vmatprep.subr.mxu0 0.0
    %1613 = vmatpush2.xpose.msra.mxu0 0.0
    %1614 = vmatprep.subr.mxu0 0.0
    %1615 = vmatpush2.xpose.msra.mxu0 0.0
    %1616 = vmatprep.mubr.f32.mxu0 0.0
    %1617 = vmatmul.mubr.f32.gmra.mxu0 %v1550
    %v1618 = vpop.f32.mrf.mxu0
    %v1619 = vadd.f32 0.0, %v1618
    %v1620 = vpop.f32.mrf.mxu0
    %1621 = vdwg.mxu0
    %vm1622 = vcmask 64512
    %v1623 = vsel %vm1622, %v1546, -inf
    %1624 = vmax.xlane.f32.xlu0 %v1623
    %v1625 = vpop.xlane.xlu0 %1624
    %v1626 = vsel %vm1622, %v1619, -inf
    %1627 = vmax.xlane.f32.xlu0 %v1626
    %v1628 = vpop.xlane.xlu0 %1627
    %v1629 = vsub.f32 %v1546, %v1625
    %v1630 = vsub.f32 %v1619, %v1628
    %v1631 = vmul.f32 %v1629, 1.442695
    %v1632 = vpow.pop %v1631
    %v1633 = vmul.f32 %v1630, 1.442695
    %v1634 = vpow.pop %v1633
    %v1635 = vsel %vm1622, %v1632, 0.0
    %1636 = vadd.xlane.f32.xlu0 %v1635
    %v1637 = vpop.xlane.xlu0 %1636
    %v1638 = vsel %vm1622, %v1634, 0.0
    %1639 = vadd.xlane.f32.xlu0 %v1638
    %v1640 = vpop.xlane.xlu0 %1639
    %v1641 = vrcp.pop %v1637
    %v1642 = vmul.f32 %v1632, %v1641
    %v1643 = vrcp.pop %v1640
    %v1644 = vmul.f32 %v1634, %v1643
    %1645 = vst.msk [vmem:[#allocation5] sm:$0xff] %vm1622, %v1642
    %1646 = vst.msk [vmem:[#allocation5 + $0x8] sm:$0xff] %vm1622, %v1644
    %v1648 = vsel %vm1622, %v1642, 0
    %1650 = vmatprep.subr.mxu0 0.0
    %1651 = vmatpush1.msra.mxu0 0.0
    %1652 = vmatprep.subr.mxu0 0.0
    %1653 = vmatpush1.msra.mxu0 0.0
    %1654 = vmatprep.subr.mxu0 0.0
    %1655 = vmatpush1.msra.mxu0 0.0
    %1656 = vmatprep.subr.mxu0 0.0
    %1657 = vmatpush1.msra.mxu0 0.0
    %1658 = vmatprep.subr.mxu0 0.0
    %1659 = vmatpush1.msra.mxu0 0.0
    %1660 = vmatprep.subr.mxu0 0.0
    %1661 = vmatpush1.msra.mxu0 0.0
    %1662 = vmatprep.subr.mxu0 0.0
    %1663 = vmatpush1.msra.mxu0 0.0
    %1664 = vmatprep.subr.mxu0 0.0
    %1665 = vmatpush1.msra.mxu0 0.0
    %1666 = vmatprep.subr.mxu0 0.0
    %1667 = vmatpush1.msra.mxu0 0.0
    %1668 = vmatprep.subr.mxu0 0.0
    %1669 = vmatpush1.msra.mxu0 0.0
    %1670 = vmatprep.subr.mxu0 0.0
    %1671 = vmatpush1.msra.mxu0 0.0
    %1672 = vmatprep.subr.mxu0 0.0
    %1673 = vmatpush1.msra.mxu0 0.0
    %1674 = vmatprep.subr.mxu0 0.0
    %1675 = vmatpush1.msra.mxu0 0.0
    %1676 = vmatprep.subr.mxu0 0.0
    %1677 = vmatpush1.msra.mxu0 0.0
    %1678 = vmatprep.subr.mxu0 0.0
    %1679 = vmatpush1.msra.mxu0 0.0
    %1680 = vmatprep.subr.mxu0 0.0
    %1681 = vmatpush1.msra.mxu0 %v1472
    %1682 = vmatprep.subr.mxu0 0.0
    %1683 = vmatpush2.msra.mxu0 0.0
    %1684 = vmatprep.subr.mxu0 0.0
    %1685 = vmatpush2.msra.mxu0 0.0
    %1686 = vmatprep.subr.mxu0 0.0
    %1687 = vmatpush2.msra.mxu0 0.0
    %1688 = vmatprep.subr.mxu0 0.0
    %1689 = vmatpush2.msra.mxu0 0.0
    %1690 = vmatprep.subr.mxu0 0.0
    %1691 = vmatpush2.msra.mxu0 0.0
    %1692 = vmatprep.subr.mxu0 0.0
    %1693 = vmatpush2.msra.mxu0 0.0
    %1694 = vmatprep.subr.mxu0 0.0
    %1695 = vmatpush2.msra.mxu0 0.0
    %1696 = vmatprep.subr.mxu0 0.0
    %1697 = vmatpush2.msra.mxu0 0.0
    %1698 = vmatprep.subr.mxu0 0.0
    %1699 = vmatpush2.msra.mxu0 0.0
    %1700 = vmatprep.subr.mxu0 0.0
    %1701 = vmatpush2.msra.mxu0 0.0
    %1702 = vmatprep.subr.mxu0 0.0
    %1703 = vmatpush2.msra.mxu0 0.0
    %1704 = vmatprep.subr.mxu0 0.0
    %1705 = vmatpush2.msra.mxu0 0.0
    %1706 = vmatprep.subr.mxu0 0.0
    %1707 = vmatpush2.msra.mxu0 0.0
    %1708 = vmatprep.subr.mxu0 0.0
    %1709 = vmatpush2.msra.mxu0 0.0
    %1710 = vmatprep.subr.mxu0 0.0
    %1711 = vmatpush2.msra.mxu0 0.0
    %1712 = vmatprep.subr.mxu0 0.0
    %1713 = vmatpush2.msra.mxu0 0.0
    %1714 = vmatprep.mubr.f32.mxu0 0.0
    %1715 = vmatmul.mubr.f32.gmra.mxu0 %v1648
    %v1716 = vpop.f32.mrf.mxu0
    %v1717 = vadd.f32 0.0, %v1716
    %v1718 = vpop.f32.mrf.mxu0
    %1719 = vdwg.mxu0
    %v1721 = vsel %vm1622, %v1644, 0
    %1723 = vmatprep.subr.mxu0 0.0
    %1724 = vmatpush1.msra.mxu0 0.0
    %1725 = vmatprep.subr.mxu0 0.0
    %1726 = vmatpush1.msra.mxu0 0.0
    %1727 = vmatprep.subr.mxu0 0.0
    %1728 = vmatpush1.msra.mxu0 0.0
    %1729 = vmatprep.subr.mxu0 0.0
    %1730 = vmatpush1.msra.mxu0 0.0
    %1731 = vmatprep.subr.mxu0 0.0
    %1732 = vmatpush1.msra.mxu0 0.0
    %1733 = vmatprep.subr.mxu0 0.0
    %1734 = vmatpush1.msra.mxu0 0.0
    %1735 = vmatprep.subr.mxu0 0.0
    %1736 = vmatpush1.msra.mxu0 0.0
    %1737 = vmatprep.subr.mxu0 0.0
    %1738 = vmatpush1.msra.mxu0 0.0
    %1739 = vmatprep.subr.mxu0 0.0
    %1740 = vmatpush1.msra.mxu0 0.0
    %1741 = vmatprep.subr.mxu0 0.0
    %1742 = vmatpush1.msra.mxu0 0.0
    %1743 = vmatprep.subr.mxu0 0.0
    %1744 = vmatpush1.msra.mxu0 0.0
    %1745 = vmatprep.subr.mxu0 0.0
    %1746 = vmatpush1.msra.mxu0 0.0
    %1747 = vmatprep.subr.mxu0 0.0
    %1748 = vmatpush1.msra.mxu0 0.0
    %1749 = vmatprep.subr.mxu0 0.0
    %1750 = vmatpush1.msra.mxu0 0.0
    %1751 = vmatprep.subr.mxu0 0.0
    %1752 = vmatpush1.msra.mxu0 0.0
    %1753 = vmatprep.subr.mxu0 0.0
    %1754 = vmatpush1.msra.mxu0 %v1473
    %1755 = vmatprep.subr.mxu0 0.0
    %1756 = vmatpush2.msra.mxu0 0.0
    %1757 = vmatprep.subr.mxu0 0.0
    %1758 = vmatpush2.msra.mxu0 0.0
    %1759 = vmatprep.subr.mxu0 0.0
    %1760 = vmatpush2.msra.mxu0 0.0
    %1761 = vmatprep.subr.mxu0 0.0
    %1762 = vmatpush2.msra.mxu0 0.0
    %1763 = vmatprep.subr.mxu0 0.0
    %1764 = vmatpush2.msra.mxu0 0.0
    %1765 = vmatprep.subr.mxu0 0.0
    %1766 = vmatpush2.msra.mxu0 0.0
    %1767 = vmatprep.subr.mxu0 0.0
    %1768 = vmatpush2.msra.mxu0 0.0
    %1769 = vmatprep.subr.mxu0 0.0
    %1770 = vmatpush2.msra.mxu0 0.0
    %1771 = vmatprep.subr.mxu0 0.0
    %1772 = vmatpush2.msra.mxu0 0.0
    %1773 = vmatprep.subr.mxu0 0.0
    %1774 = vmatpush2.msra.mxu0 0.0
    %1775 = vmatprep.subr.mxu0 0.0
    %1776 = vmatpush2.msra.mxu0 0.0
    %1777 = vmatprep.subr.mxu0 0.0
    %1778 = vmatpush2.msra.mxu0 0.0
    %1779 = vmatprep.subr.mxu0 0.0
    %1780 = vmatpush2.msra.mxu0 0.0
    %1781 = vmatprep.subr.mxu0 0.0
    %1782 = vmatpush2.msra.mxu0 0.0
    %1783 = vmatprep.subr.mxu0 0.0
    %1784 = vmatpush2.msra.mxu0 0.0
    %1785 = vmatprep.subr.mxu0 0.0
    %1786 = vmatpush2.msra.mxu0 0.0
    %1787 = vmatprep.mubr.f32.mxu0 0.0
    %1788 = vmatmul.mubr.f32.gmra.mxu0 %v1721
    %v1789 = vpop.f32.mrf.mxu0
    %v1790 = vadd.f32 0.0, %v1789
    %v1791 = vpop.f32.mrf.mxu0
    %1792 = vdwg.mxu0
    %1794 = vset.pattern.permute.xlu0 0
    %1795 = vperm.xlu0 %1794, %v1474
    %v1796 = vpop.permute.xlu0 %1795
    %1799 = vset.pattern.permute.xlu0 0
    %1800 = vperm.xlu0 %1799, %v1475
    %v1801 = vpop.permute.xlu0 %1800
    %v1803 = vmul.f32 %v1717, %v1796
    %v1804 = vmul.f32 %v1790, %v1801
    %v1805 = vld [vmem:[%s4] sm:$0xff]
    %v1806 = vld [vmem:[%s4 + $0x8] sm:$0xff]
    %v1807 = vld [vmem:[%s4 + $0x10] sm:$0xff]
    %v1808 = vld [vmem:[%s4 + $0x18] sm:$0xff]
    %v1809 = vld [vmem:[%s4 + $0x20] sm:$0xff]
    %v1810 = vld [vmem:[%s4 + $0x28] sm:$0xff]
    %v1811 = vld [vmem:[%s4 + $0x30] sm:$0xff]
    %v1812 = vld [vmem:[%s4 + $0x38] sm:$0xff]
    %v1813 = vld [vmem:[%s5] sm:$0x1]
    %v1815 = vlaneseq
    %v1816 = vshrl.u32 %v1815, 7
    %v1817 = vsub.s32 0, %v1816
    %v1818 = vrot.slane %v1813, %v1817
    %v1821 = vsel %vm75, %v1803, 0
    %v1824 = vsel %vm75, %v1804, 0
    %1826 = vmatprep.subr.mxu0 0.0
    %1827 = vmatpush1.msra.mxu0 0.0
    %1828 = vmatprep.subr.mxu0 0.0
    %1829 = vmatpush1.msra.mxu0 0.0
    %1830 = vmatprep.subr.mxu0 0.0
    %1831 = vmatpush1.msra.mxu0 0.0
    %1832 = vmatprep.subr.mxu0 0.0
    %1833 = vmatpush1.msra.mxu0 0.0
    %1834 = vmatprep.subr.mxu0 0.0
    %1835 = vmatpush1.msra.mxu0 0.0
    %1836 = vmatprep.subr.mxu0 0.0
    %1837 = vmatpush1.msra.mxu0 0.0
    %1838 = vmatprep.subr.mxu0 0.0
    %1839 = vmatpush1.msra.mxu0 0.0
    %1840 = vmatprep.subr.mxu0 0.0
    %1841 = vmatpush1.msra.mxu0 0.0
    %1842 = vmatprep.subr.mxu0 0.0
    %1843 = vmatpush1.msra.mxu0 %v1812
    %1844 = vmatprep.subr.mxu0 0.0
    %1845 = vmatpush1.msra.mxu0 %v1811
    %1846 = vmatprep.subr.mxu0 0.0
    %1847 = vmatpush1.msra.mxu0 %v1810
    %1848 = vmatprep.subr.mxu0 0.0
    %1849 = vmatpush1.msra.mxu0 %v1809
    %1850 = vmatprep.subr.mxu0 0.0
    %1851 = vmatpush1.msra.mxu0 %v1808
    %1852 = vmatprep.subr.mxu0 0.0
    %1853 = vmatpush1.msra.mxu0 %v1807
    %1854 = vmatprep.subr.mxu0 0.0
    %1855 = vmatpush1.msra.mxu0 %v1806
    %1856 = vmatprep.subr.mxu0 0.0
    %1857 = vmatpush1.msra.mxu0 %v1805
    %1858 = vmatprep.subr.mxu0 0.0
    %1859 = vmatpush2.msra.mxu0 0.0
    %1860 = vmatprep.subr.mxu0 0.0
    %1861 = vmatpush2.msra.mxu0 0.0
    %1862 = vmatprep.subr.mxu0 0.0
    %1863 = vmatpush2.msra.mxu0 0.0
    %1864 = vmatprep.subr.mxu0 0.0
    %1865 = vmatpush2.msra.mxu0 0.0
    %1866 = vmatprep.subr.mxu0 0.0
    %1867 = vmatpush2.msra.mxu0 0.0
    %1868 = vmatprep.subr.mxu0 0.0
    %1869 = vmatpush2.msra.mxu0 0.0
    %1870 = vmatprep.subr.mxu0 0.0
    %1871 = vmatpush2.msra.mxu0 0.0
    %1872 = vmatprep.subr.mxu0 0.0
    %1873 = vmatpush2.msra.mxu0 0.0
    %1874 = vmatprep.subr.mxu0 0.0
    %1875 = vmatpush2.msra.mxu0 0.0
    %1876 = vmatprep.subr.mxu0 0.0
    %1877 = vmatpush2.msra.mxu0 0.0
    %1878 = vmatprep.subr.mxu0 0.0
    %1879 = vmatpush2.msra.mxu0 0.0
    %1880 = vmatprep.subr.mxu0 0.0
    %1881 = vmatpush2.msra.mxu0 0.0
    %1882 = vmatprep.subr.mxu0 0.0
    %1883 = vmatpush2.msra.mxu0 0.0
    %1884 = vmatprep.subr.mxu0 0.0
    %1885 = vmatpush2.msra.mxu0 0.0
    %1886 = vmatprep.subr.mxu0 0.0
    %1887 = vmatpush2.msra.mxu0 0.0
    %1888 = vmatprep.subr.mxu0 0.0
    %1889 = vmatpush2.msra.mxu0 0.0
    %1890 = vmatprep.mubr.f32.mxu0 0.0
    %1891 = vmatmul.mubr.f32.gmra.mxu0 %v1821
    %v1892 = vpop.f32.mrf.mxu0
    %v1893 = vadd.f32 %v1818, %v1892
    %v1894 = vpop.f32.mrf.mxu0
    %1895 = vmatprep.mubr.f32.mxu0 0.0
    %1896 = vmatmul.mubr.f32.gmra.mxu0 %v1824
    %v1897 = vpop.f32.mrf.mxu0
    %v1898 = vadd.f32 %v1818, %v1897
    %v1899 = vpop.f32.mrf.mxu0
    %1900 = vdwg.mxu0
    %v1901 = vld [vmem:[%s6] sm:$0xff]
    %v1902 = vld [vmem:[%s7] sm:$0x1]
    %v1903 = vld [vmem:[%s8] sm:$0x1]
    %v1905 = vlaneseq
    %v1906 = vshrl.u32 %v1905, 7
    %v1907 = vsub.s32 0, %v1906
    %v1908 = vrot.slane %v1902, %v1907
    %v1912 = vrot.slane %v1898, 7
    %v1913 = vsel %vm330, %v1912, %v1893
    %v1915 = vadd.f32 %v1908, %v1913
    %v1916 = vlaneseq
    %v1917 = vshrl.u32 %v1916, 7
    %v1918 = vsub.s32 0, %v1917
    %v1919 = vrot.slane %v1915, %v1918
    %1921 = vbcast.lane.b32.xlu0 %v1919, 256
    %v1922 = vpop.permute.xlu0 %1921
    %v1923 = vlaneseq
    %v1924 = vshrl.u32 %v1923, 7
    %v1925 = vsub.s32 1, %v1924
    %v1926 = vrot.slane %v1915, %v1925
    %1928 = vbcast.lane.b32.xlu0 %v1926, 256
    %v1929 = vpop.permute.xlu0 %1928
    %v1930 = vadd.f32 %v1922, %v1901
    %v1931 = vadd.f32 %v1929, %v1901
    %v1932 = vlaneseq
    %v1933 = vshrl.u32 %v1932, 7
    %v1934 = vsub.s32 1, %v1933
    %v1935 = vrot.slane %v1893, %v1934
    %v1936 = vlaneseq
    %v1937 = vshrl.u32 %v1936, 7
    %v1938 = vsub.s32 1, %v1937
    %v1939 = vrot.slane %v1898, %v1938
    %v1940 = vadd.f32 %v1930, %v1935
    %v1941 = vadd.f32 %v1931, %v1939
    %v1942 = vsel %vm1622, %v1940, -inf
    %v1943 = vrot.slane %v1942, 4
    %v1944 = vmax.f32 %v1942, %v1943
    %v1945 = vrot.slane %v1944, 2
    %v1946 = vmax.f32 %v1944, %v1945
    %v1947 = vrot.slane %v1946, 1
    %v1948 = vmax.f32 %v1946, %v1947
    %v1949 = vsel %vm1622, %v1941, -inf
    %v1950 = vrot.slane %v1949, 4
    %v1951 = vmax.f32 %v1949, %v1950
    %v1952 = vrot.slane %v1951, 2
    %v1953 = vmax.f32 %v1951, %v1952
    %v1954 = vrot.slane %v1953, 1
    %v1955 = vmax.f32 %v1953, %v1954
    %v1956 = vsub.f32 %v1940, %v1948
    %v1957 = vsub.f32 %v1941, %v1955
    %v1958 = vmul.f32 %v1956, 1.442695
    %v1959 = vpow.pop %v1958
    %v1960 = vmul.f32 %v1957, 1.442695
    %v1961 = vpow.pop %v1960
    %v1962 = vsel %vm1622, %v1959, 0.0
    %v1963 = vrot.slane %v1962, 4
    %v1964 = vadd.f32 %v1962, %v1963
    %v1965 = vrot.slane %v1964, 2
    %v1966 = vadd.f32 %v1964, %v1965
    %v1967 = vrot.slane %v1966, 1
    %v1968 = vadd.f32 %v1966, %v1967
    %v1969 = vsel %vm1622, %v1961, 0.0
    %v1970 = vrot.slane %v1969, 4
    %v1971 = vadd.f32 %v1969, %v1970
    %v1972 = vrot.slane %v1971, 2
    %v1973 = vadd.f32 %v1971, %v1972
    %v1974 = vrot.slane %v1973, 1
    %v1975 = vadd.f32 %v1973, %v1974
    %v1976 = vlog2.pop %v1968
    %v1977 = vmul.f32 %v1976, 0.6931472
    %v1978 = vlog2.pop %v1975
    %v1979 = vmul.f32 %v1978, 0.6931472
    %v1980 = vadd.f32 %v1977, %v1948
    %v1981 = vadd.f32 %v1979, %v1955
    %vm1982 = vcmp.gt.f32.partialorder %v1474, 0.0
    %vm1983 = vcmp.gt.f32.partialorder %v1475, 0.0
    %v1984 = vsel %vm1982, 1, 0
    %v1985 = vsel %vm1983, 1, 0
    %1986 = vset.pattern.permute.xlu0 0
    %1987 = vperm.xlu0 %1986, %v1984
    %v1988 = vpop.permute.xlu0 %1987
    %1989 = vset.pattern.permute.xlu0 0
    %1990 = vperm.xlu0 %1989, %v1985
    %v1991 = vpop.permute.xlu0 %1990
    %vm1992 = vcmp.eq.s32.totalorder %v1988, 1
    %vm1993 = vcmp.eq.s32.totalorder %v1991, 1
    %v1995 = vrot.slane %v1915, 7
    %v1998 = vsel %vm1992, %v1980, %v1995
    %v1999 = vsel %vm1993, %v1981, %v1915
    %v2000 = vlaneseq
    %v2001 = vshrl.u32 %v2000, 7
    %v2002 = vsub.s32 1, %v2001
    %v2003 = vrot.slane %v1998, %v2002
    %2005 = vbcast.lane.b32.xlu0 %v2003, 256
    %v2006 = vpop.permute.xlu0 %2005
    %v2007 = vlaneseq
    %v2008 = vshrl.u32 %v2007, 7
    %v2009 = vsub.s32 1, %v2008
    %v2010 = vrot.slane %v1999, %v2009
    %2012 = vbcast.lane.b32.xlu0 %v2010, 256
    %v2013 = vpop.permute.xlu0 %2012
    %v2014 = vadd.f32 %v2006, %v1901
    %v2015 = vadd.f32 %v2013, %v1901
    %v2016 = vlaneseq
    %v2017 = vshrl.u32 %v2016, 7
    %v2018 = vsub.s32 2, %v2017
    %v2019 = vrot.slane %v1893, %v2018
    %v2020 = vlaneseq
    %v2021 = vshrl.u32 %v2020, 7
    %v2022 = vsub.s32 2, %v2021
    %v2023 = vrot.slane %v1898, %v2022
    %v2024 = vadd.f32 %v2014, %v2019
    %v2025 = vadd.f32 %v2015, %v2023
    %v2026 = vsel %vm1622, %v2024, -inf
    %v2027 = vrot.slane %v2026, 4
    %v2028 = vmax.f32 %v2026, %v2027
    %v2029 = vrot.slane %v2028, 2
    %v2030 = vmax.f32 %v2028, %v2029
    %v2031 = vrot.slane %v2030, 1
    %v2032 = vmax.f32 %v2030, %v2031
    %v2033 = vsel %vm1622, %v2025, -inf
    %v2034 = vrot.slane %v2033, 4
    %v2035 = vmax.f32 %v2033, %v2034
    %v2036 = vrot.slane %v2035, 2
    %v2037 = vmax.f32 %v2035, %v2036
    %v2038 = vrot.slane %v2037, 1
    %v2039 = vmax.f32 %v2037, %v2038
    %v2040 = vsub.f32 %v2024, %v2032
    %v2041 = vsub.f32 %v2025, %v2039
    %v2042 = vmul.f32 %v2040, 1.442695
    %v2043 = vpow.pop %v2042
    %v2044 = vmul.f32 %v2041, 1.442695
    %v2045 = vpow.pop %v2044
    %v2046 = vsel %vm1622, %v2043, 0.0
    %v2047 = vrot.slane %v2046, 4
    %v2048 = vadd.f32 %v2046, %v2047
    %v2049 = vrot.slane %v2048, 2
    %v2050 = vadd.f32 %v2048, %v2049
    %v2051 = vrot.slane %v2050, 1
    %v2052 = vadd.f32 %v2050, %v2051
    %v2053 = vsel %vm1622, %v2045, 0.0
    %v2054 = vrot.slane %v2053, 4
    %v2055 = vadd.f32 %v2053, %v2054
    %v2056 = vrot.slane %v2055, 2
    %v2057 = vadd.f32 %v2055, %v2056
    %v2058 = vrot.slane %v2057, 1
    %v2059 = vadd.f32 %v2057, %v2058
    %v2060 = vlog2.pop %v2052
    %v2061 = vmul.f32 %v2060, 0.6931472
    %v2062 = vlog2.pop %v2059
    %v2063 = vmul.f32 %v2062, 0.6931472
    %v2064 = vadd.f32 %v2061, %v2032
    %v2065 = vadd.f32 %v2063, %v2039
    %v2068 = vrot.slane %v1998, 7
    %v2069 = vrot.slane %v1999, 7
    %v2072 = vsel %vm1992, %v2064, %v2068
    %v2073 = vsel %vm1993, %v2065, %v2069
    %v2074 = vlaneseq
    %v2075 = vshrl.u32 %v2074, 7
    %v2076 = vsub.s32 2, %v2075
    %v2077 = vrot.slane %v2072, %v2076
    %2079 = vbcast.lane.b32.xlu0 %v2077, 256
    %v2080 = vpop.permute.xlu0 %2079
    %v2081 = vlaneseq
    %v2082 = vshrl.u32 %v2081, 7
    %v2083 = vsub.s32 2, %v2082
    %v2084 = vrot.slane %v2073, %v2083
    %2086 = vbcast.lane.b32.xlu0 %v2084, 256
    %v2087 = vpop.permute.xlu0 %2086
    %v2088 = vadd.f32 %v2080, %v1901
    %v2089 = vadd.f32 %v2087, %v1901
    %v2090 = vlaneseq
    %v2091 = vshrl.u32 %v2090, 7
    %v2092 = vsub.s32 3, %v2091
    %v2093 = vrot.slane %v1893, %v2092
    %v2094 = vlaneseq
    %v2095 = vshrl.u32 %v2094, 7
    %v2096 = vsub.s32 3, %v2095
    %v2097 = vrot.slane %v1898, %v2096
    %v2098 = vadd.f32 %v2088, %v2093
    %v2099 = vadd.f32 %v2089, %v2097
    %v2100 = vsel %vm1622, %v2098, -inf
    %v2101 = vrot.slane %v2100, 4
    %v2102 = vmax.f32 %v2100, %v2101
    %v2103 = vrot.slane %v2102, 2
    %v2104 = vmax.f32 %v2102, %v2103
    %v2105 = vrot.slane %v2104, 1
    %v2106 = vmax.f32 %v2104, %v2105
    %v2107 = vsel %vm1622, %v2099, -inf
    %v2108 = vrot.slane %v2107, 4
    %v2109 = vmax.f32 %v2107, %v2108
    %v2110 = vrot.slane %v2109, 2
    %v2111 = vmax.f32 %v2109, %v2110
    %v2112 = vrot.slane %v2111, 1
    %v2113 = vmax.f32 %v2111, %v2112
    %v2114 = vsub.f32 %v2098, %v2106
    %v2115 = vsub.f32 %v2099, %v2113
    %v2116 = vmul.f32 %v2114, 1.442695
    %v2117 = vpow.pop %v2116
    %v2118 = vmul.f32 %v2115, 1.442695
    %v2119 = vpow.pop %v2118
    %v2120 = vsel %vm1622, %v2117, 0.0
    %v2121 = vrot.slane %v2120, 4
    %v2122 = vadd.f32 %v2120, %v2121
    %v2123 = vrot.slane %v2122, 2
    %v2124 = vadd.f32 %v2122, %v2123
    %v2125 = vrot.slane %v2124, 1
    %v2126 = vadd.f32 %v2124, %v2125
    %v2127 = vsel %vm1622, %v2119, 0.0
    %v2128 = vrot.slane %v2127, 4
    %v2129 = vadd.f32 %v2127, %v2128
    %v2130 = vrot.slane %v2129, 2
    %v2131 = vadd.f32 %v2129, %v2130
    %v2132 = vrot.slane %v2131, 1
    %v2133 = vadd.f32 %v2131, %v2132
    %v2134 = vlog2.pop %v2126
    %v2135 = vmul.f32 %v2134, 0.6931472
    %v2136 = vlog2.pop %v2133
    %v2137 = vmul.f32 %v2136, 0.6931472
    %v2138 = vadd.f32 %v2135, %v2106
    %v2139 = vadd.f32 %v2137, %v2113
    %v2142 = vrot.slane %v2072, 7
    %v2143 = vrot.slane %v2073, 7
    %v2146 = vsel %vm1992, %v2138, %v2142
    %v2147 = vsel %vm1993, %v2139, %v2143
    %v2148 = vlaneseq
    %v2149 = vshrl.u32 %v2148, 7
    %v2150 = vsub.s32 3, %v2149
    %v2151 = vrot.slane %v2146, %v2150
    %2153 = vbcast.lane.b32.xlu0 %v2151, 256
    %v2154 = vpop.permute.xlu0 %2153
    %v2155 = vlaneseq
    %v2156 = vshrl.u32 %v2155, 7
    %v2157 = vsub.s32 3, %v2156
    %v2158 = vrot.slane %v2147, %v2157
    %2160 = vbcast.lane.b32.xlu0 %v2158, 256
    %v2161 = vpop.permute.xlu0 %2160
    %v2162 = vadd.f32 %v2154, %v1901
    %v2163 = vadd.f32 %v2161, %v1901
    %v2164 = vlaneseq
    %v2165 = vshrl.u32 %v2164, 7
    %v2166 = vsub.s32 4, %v2165
    %v2167 = vrot.slane %v1893, %v2166
    %v2168 = vlaneseq
    %v2169 = vshrl.u32 %v2168, 7
    %v2170 = vsub.s32 4, %v2169
    %v2171 = vrot.slane %v1898, %v2170
    %v2172 = vadd.f32 %v2162, %v2167
    %v2173 = vadd.f32 %v2163, %v2171
    %v2174 = vsel %vm1622, %v2172, -inf
    %v2175 = vrot.slane %v2174, 4
    %v2176 = vmax.f32 %v2174, %v2175
    %v2177 = vrot.slane %v2176, 2
    %v2178 = vmax.f32 %v2176, %v2177
    %v2179 = vrot.slane %v2178, 1
    %v2180 = vmax.f32 %v2178, %v2179
    %v2181 = vsel %vm1622, %v2173, -inf
    %v2182 = vrot.slane %v2181, 4
    %v2183 = vmax.f32 %v2181, %v2182
    %v2184 = vrot.slane %v2183, 2
    %v2185 = vmax.f32 %v2183, %v2184
    %v2186 = vrot.slane %v2185, 1
    %v2187 = vmax.f32 %v2185, %v2186
    %v2188 = vsub.f32 %v2172, %v2180
    %v2189 = vsub.f32 %v2173, %v2187
    %v2190 = vmul.f32 %v2188, 1.442695
    %v2191 = vpow.pop %v2190
    %v2192 = vmul.f32 %v2189, 1.442695
    %v2193 = vpow.pop %v2192
    %v2194 = vsel %vm1622, %v2191, 0.0
    %v2195 = vrot.slane %v2194, 4
    %v2196 = vadd.f32 %v2194, %v2195
    %v2197 = vrot.slane %v2196, 2
    %v2198 = vadd.f32 %v2196, %v2197
    %v2199 = vrot.slane %v2198, 1
    %v2200 = vadd.f32 %v2198, %v2199
    %v2201 = vsel %vm1622, %v2193, 0.0
    %v2202 = vrot.slane %v2201, 4
    %v2203 = vadd.f32 %v2201, %v2202
    %v2204 = vrot.slane %v2203, 2
    %v2205 = vadd.f32 %v2203, %v2204
    %v2206 = vrot.slane %v2205, 1
    %v2207 = vadd.f32 %v2205, %v2206
    %v2208 = vlog2.pop %v2200
    %v2209 = vmul.f32 %v2208, 0.6931472
    %v2210 = vlog2.pop %v2207
    %v2211 = vmul.f32 %v2210, 0.6931472
    %v2212 = vadd.f32 %v2209, %v2180
    %v2213 = vadd.f32 %v2211, %v2187
    %v2216 = vrot.slane %v2146, 7
    %v2217 = vrot.slane %v2147, 7
    %v2220 = vsel %vm1992, %v2212, %v2216
    %v2221 = vsel %vm1993, %v2213, %v2217
    %v2222 = vlaneseq
    %v2223 = vshrl.u32 %v2222, 7
    %v2224 = vsub.s32 4, %v2223
    %v2225 = vrot.slane %v2220, %v2224
    %2227 = vbcast.lane.b32.xlu0 %v2225, 256
    %v2228 = vpop.permute.xlu0 %2227
    %v2229 = vlaneseq
    %v2230 = vshrl.u32 %v2229, 7
    %v2231 = vsub.s32 4, %v2230
    %v2232 = vrot.slane %v2221, %v2231
    %2234 = vbcast.lane.b32.xlu0 %v2232, 256
    %v2235 = vpop.permute.xlu0 %2234
    %v2236 = vadd.f32 %v2228, %v1901
    %v2237 = vadd.f32 %v2235, %v1901
    %v2238 = vlaneseq
    %v2239 = vshrl.u32 %v2238, 7
    %v2240 = vsub.s32 5, %v2239
    %v2241 = vrot.slane %v1893, %v2240
    %v2242 = vlaneseq
    %v2243 = vshrl.u32 %v2242, 7
    %v2244 = vsub.s32 5, %v2243
    %v2245 = vrot.slane %v1898, %v2244
    %v2246 = vadd.f32 %v2236, %v2241
    %v2247 = vadd.f32 %v2237, %v2245
    %v2248 = vsel %vm1622, %v2246, -inf
    %v2249 = vrot.slane %v2248, 4
    %v2250 = vmax.f32 %v2248, %v2249
    %v2251 = vrot.slane %v2250, 2
    %v2252 = vmax.f32 %v2250, %v2251
    %v2253 = vrot.slane %v2252, 1
    %v2254 = vmax.f32 %v2252, %v2253
    %v2255 = vsel %vm1622, %v2247, -inf
    %v2256 = vrot.slane %v2255, 4
    %v2257 = vmax.f32 %v2255, %v2256
    %v2258 = vrot.slane %v2257, 2
    %v2259 = vmax.f32 %v2257, %v2258
    %v2260 = vrot.slane %v2259, 1
    %v2261 = vmax.f32 %v2259, %v2260
    %v2262 = vsub.f32 %v2246, %v2254
    %v2263 = vsub.f32 %v2247, %v2261
    %v2264 = vmul.f32 %v2262, 1.442695
    %v2265 = vpow.pop %v2264
    %v2266 = vmul.f32 %v2263, 1.442695
    %v2267 = vpow.pop %v2266
    %v2268 = vsel %vm1622, %v2265, 0.0
    %v2269 = vrot.slane %v2268, 4
    %v2270 = vadd.f32 %v2268, %v2269
    %v2271 = vrot.slane %v2270, 2
    %v2272 = vadd.f32 %v2270, %v2271
    %v2273 = vrot.slane %v2272, 1
    %v2274 = vadd.f32 %v2272, %v2273
    %v2275 = vsel %vm1622, %v2267, 0.0
    %v2276 = vrot.slane %v2275, 4
    %v2277 = vadd.f32 %v2275, %v2276
    %v2278 = vrot.slane %v2277, 2
    %v2279 = vadd.f32 %v2277, %v2278
    %v2280 = vrot.slane %v2279, 1
    %v2281 = vadd.f32 %v2279, %v2280
    %v2282 = vlog2.pop %v2274
    %v2283 = vmul.f32 %v2282, 0.6931472
    %v2284 = vlog2.pop %v2281
    %v2285 = vmul.f32 %v2284, 0.6931472
    %v2286 = vadd.f32 %v2283, %v2254
    %v2287 = vadd.f32 %v2285, %v2261
    %v2290 = vrot.slane %v2220, 7
    %v2291 = vrot.slane %v2221, 7
    %v2294 = vsel %vm1992, %v2286, %v2290
    %v2295 = vsel %vm1993, %v2287, %v2291
    %v2296 = vlaneseq
    %v2297 = vshrl.u32 %v2296, 7
    %v2298 = vsub.s32 5, %v2297
    %v2299 = vrot.slane %v2294, %v2298
    %2301 = vbcast.lane.b32.xlu0 %v2299, 256
    %v2302 = vpop.permute.xlu0 %2301
    %v2303 = vlaneseq
    %v2304 = vshrl.u32 %v2303, 7
    %v2305 = vsub.s32 5, %v2304
    %v2306 = vrot.slane %v2295, %v2305
    %2308 = vbcast.lane.b32.xlu0 %v2306, 256
    %v2309 = vpop.permute.xlu0 %2308
    %v2310 = vadd.f32 %v2302, %v1901
    %v2311 = vadd.f32 %v2309, %v1901
    %v2312 = vlaneseq
    %v2313 = vshrl.u32 %v2312, 7
    %v2314 = vsub.s32 6, %v2313
    %v2315 = vrot.slane %v1893, %v2314
    %v2316 = vlaneseq
    %v2317 = vshrl.u32 %v2316, 7
    %v2318 = vsub.s32 6, %v2317
    %v2319 = vrot.slane %v1898, %v2318
    %v2320 = vadd.f32 %v2310, %v2315
    %v2321 = vadd.f32 %v2311, %v2319
    %v2322 = vsel %vm1622, %v2320, -inf
    %v2323 = vrot.slane %v2322, 4
    %v2324 = vmax.f32 %v2322, %v2323
    %v2325 = vrot.slane %v2324, 2
    %v2326 = vmax.f32 %v2324, %v2325
    %v2327 = vrot.slane %v2326, 1
    %v2328 = vmax.f32 %v2326, %v2327
    %v2329 = vsel %vm1622, %v2321, -inf
    %v2330 = vrot.slane %v2329, 4
    %v2331 = vmax.f32 %v2329, %v2330
    %v2332 = vrot.slane %v2331, 2
    %v2333 = vmax.f32 %v2331, %v2332
    %v2334 = vrot.slane %v2333, 1
    %v2335 = vmax.f32 %v2333, %v2334
    %v2336 = vsub.f32 %v2320, %v2328
    %v2337 = vsub.f32 %v2321, %v2335
    %v2338 = vmul.f32 %v2336, 1.442695
    %v2339 = vpow.pop %v2338
    %v2340 = vmul.f32 %v2337, 1.442695
    %v2341 = vpow.pop %v2340
    %v2342 = vsel %vm1622, %v2339, 0.0
    %v2343 = vrot.slane %v2342, 4
    %v2344 = vadd.f32 %v2342, %v2343
    %v2345 = vrot.slane %v2344, 2
    %v2346 = vadd.f32 %v2344, %v2345
    %v2347 = vrot.slane %v2346, 1
    %v2348 = vadd.f32 %v2346, %v2347
    %v2349 = vsel %vm1622, %v2341, 0.0
    %v2350 = vrot.slane %v2349, 4
    %v2351 = vadd.f32 %v2349, %v2350
    %v2352 = vrot.slane %v2351, 2
    %v2353 = vadd.f32 %v2351, %v2352
    %v2354 = vrot.slane %v2353, 1
    %v2355 = vadd.f32 %v2353, %v2354
    %v2356 = vlog2.pop %v2348
    %v2357 = vmul.f32 %v2356, 0.6931472
    %v2358 = vlog2.pop %v2355
    %v2359 = vmul.f32 %v2358, 0.6931472
    %v2360 = vadd.f32 %v2357, %v2328
    %v2361 = vadd.f32 %v2359, %v2335
    %v2364 = vrot.slane %v2294, 7
    %v2365 = vrot.slane %v2295, 7
    %v2368 = vsel %vm1992, %v2360, %v2364
    %v2369 = vsel %vm1993, %v2361, %v2365
    %v2370 = vlaneseq
    %v2371 = vshrl.u32 %v2370, 7
    %v2372 = vsub.s32 6, %v2371
    %v2373 = vrot.slane %v2368, %v2372
    %2375 = vbcast.lane.b32.xlu0 %v2373, 256
    %v2376 = vpop.permute.xlu0 %2375
    %v2377 = vlaneseq
    %v2378 = vshrl.u32 %v2377, 7
    %v2379 = vsub.s32 6, %v2378
    %v2380 = vrot.slane %v2369, %v2379
    %2382 = vbcast.lane.b32.xlu0 %v2380, 256
    %v2383 = vpop.permute.xlu0 %2382
    %v2384 = vadd.f32 %v2376, %v1901
    %v2385 = vadd.f32 %v2383, %v1901
    %v2386 = vlaneseq
    %v2387 = vshrl.u32 %v2386, 7
    %v2388 = vsub.s32 7, %v2387
    %v2389 = vrot.slane %v1893, %v2388
    %v2390 = vlaneseq
    %v2391 = vshrl.u32 %v2390, 7
    %v2392 = vsub.s32 7, %v2391
    %v2393 = vrot.slane %v1898, %v2392
    %v2394 = vadd.f32 %v2384, %v2389
    %v2395 = vadd.f32 %v2385, %v2393
    %v2396 = vsel %vm1622, %v2394, -inf
    %v2397 = vrot.slane %v2396, 4
    %v2398 = vmax.f32 %v2396, %v2397
    %v2399 = vrot.slane %v2398, 2
    %v2400 = vmax.f32 %v2398, %v2399
    %v2401 = vrot.slane %v2400, 1
    %v2402 = vmax.f32 %v2400, %v2401
    %v2403 = vsel %vm1622, %v2395, -inf
    %v2404 = vrot.slane %v2403, 4
    %v2405 = vmax.f32 %v2403, %v2404
    %v2406 = vrot.slane %v2405, 2
    %v2407 = vmax.f32 %v2405, %v2406
    %v2408 = vrot.slane %v2407, 1
    %v2409 = vmax.f32 %v2407, %v2408
    %v2410 = vsub.f32 %v2394, %v2402
    %v2411 = vsub.f32 %v2395, %v2409
    %v2412 = vmul.f32 %v2410, 1.442695
    %v2413 = vpow.pop %v2412
    %v2414 = vmul.f32 %v2411, 1.442695
    %v2415 = vpow.pop %v2414
    %v2416 = vsel %vm1622, %v2413, 0.0
    %v2417 = vrot.slane %v2416, 4
    %v2418 = vadd.f32 %v2416, %v2417
    %v2419 = vrot.slane %v2418, 2
    %v2420 = vadd.f32 %v2418, %v2419
    %v2421 = vrot.slane %v2420, 1
    %v2422 = vadd.f32 %v2420, %v2421
    %v2423 = vsel %vm1622, %v2415, 0.0
    %v2424 = vrot.slane %v2423, 4
    %v2425 = vadd.f32 %v2423, %v2424
    %v2426 = vrot.slane %v2425, 2
    %v2427 = vadd.f32 %v2425, %v2426
    %v2428 = vrot.slane %v2427, 1
    %v2429 = vadd.f32 %v2427, %v2428
    %v2430 = vlog2.pop %v2422
    %v2431 = vmul.f32 %v2430, 0.6931472
    %v2432 = vlog2.pop %v2429
    %v2433 = vmul.f32 %v2432, 0.6931472
    %v2434 = vadd.f32 %v2431, %v2402
    %v2435 = vadd.f32 %v2433, %v2409
    %v2438 = vrot.slane %v2368, 7
    %v2439 = vrot.slane %v2369, 7
    %v2442 = vsel %vm1992, %v2434, %v2438
    %v2443 = vsel %vm1993, %v2435, %v2439
    %v2445 = vlaneseq
    %v2446 = vshrl.u32 %v2445, 7
    %v2447 = vsub.s32 0, %v2446
    %v2448 = vrot.slane %v1903, %v2447
    %v2450 = vadd.f32 %v2442, %v2448
    %v2451 = vadd.f32 %v2443, %v2448
    %v2454 = vrot.slane %v2451, 7
    %vm2457 = vcmask 64519
    %v2458 = vsel %vm2457, %v2450, -inf
    %2459 = vmax.xlane.f32.xlu0 %v2458
    %v2460 = vpop.xlane.xlu0 %2459
    %vm2461 = vcmask 57344
    %v2462 = vsel %vm2461, %v2454, -inf
    %2463 = vmax.xlane.f32.xlu0 %v2462
    %v2464 = vpop.xlane.xlu0 %2463
    %v2467 = vrot.slane %v2464, 1
    %v2470 = vsub.f32 %v2450, %v2460
    %v2471 = vsub.f32 %v2451, %v2467
    %v2472 = vmul.f32 %v2470, 1.442695
    %v2473 = vpow.pop %v2472
    %v2474 = vmul.f32 %v2471, 1.442695
    %v2475 = vpow.pop %v2474
    %v2478 = vrot.slane %v2475, 7
    %v2481 = vsel %vm2457, %v2473, 0.0
    %2482 = vadd.xlane.f32.xlu0 %v2481
    %v2483 = vpop.xlane.xlu0 %2482
    %v2484 = vsel %vm2461, %v2478, 0.0
    %2485 = vadd.xlane.f32.xlu0 %v2484
    %v2486 = vpop.xlane.xlu0 %2485
    %v2487 = vlog2.pop %v2483
    %v2488 = vmul.f32 %v2487, 0.6931472
    %v2489 = vlog2.pop %v2486
    %v2490 = vmul.f32 %v2489, 0.6931472
    %v2491 = vadd.f32 %v2488, %v2460
    %v2492 = vadd.f32 %v2490, %v2464
    %v2493 = vld [vmem:[%s10] sm:$0xff]
    %v2494 = vld [vmem:[%s10 + $0x8] sm:$0xff]
    %v2495 = vmul.f32 %v2493, %v1893
    %v2496 = vmul.f32 %v2494, %v1898
    %v2497 = vsel %vm1622, %v2495, 0.0
    %2498 = vadd.xlane.f32.xlu0 %v2497
    %v2499 = vpop.xlane.xlu0 %2498
    %v2500 = vsel %vm1622, %v2496, 0.0
    %2501 = vadd.xlane.f32.xlu0 %v2500
    %v2502 = vpop.xlane.xlu0 %2501
    %v2505 = vlaneseq
    %v2506 = vand.u32 %v2505, 127
    %v2507 = vlaneseq
    %v2508 = vshrl.u32 %v2507, 7
    %v2509 = vsub.s32 %v2506, %v2508
    %v2510 = vrot.slane %v2499, %v2509
    %v2511 = vlaneseq
    %v2512 = vshrl.u32 %v2511, 7
    %v2513 = vsub.s32 %v2506, %v2512
    %v2514 = vrot.slane %v2502, %v2513
    %v2515 = vsel %vm330, %v2514, %v2510
    %vm2517 = vcmask 58368
    %v2518 = vsel %vm2517, %v2515, 0.0
    %2519 = vadd.xlane.f32.xlu0 %v2518
    %v2520 = vpop.xlane.xlu0 %2519
    %v2521 = vld [vmem:[%s11] sm:$0x3]
    %v2522 = vadd.f32 %v2521, %v2520
    %v2524 = vrot.slane %v2522, 1
    %v2526 = vsub.f32 %v2491, %v2524
    %v2527 = vsub.f32 %v2492, %v2524
    %vm2530 = vcmask 1040384
    %v2531 = vrot.slane %v2526, 7
    %v2532 = vrot.slane %v2527, 7
    %v2533 = vsel %vm2530, %v2531, %v2532
    %vm2535 = vcmask 1024
    %v2536 = vsel %vm2535, %v2533, 0.0
    %2537 = vadd.xlane.f32.xlu0 %v2536
    %v2538 = vpop.xlane.xlu0 %2537
    %v2539 = vrot.slane %v2538, 4
    %v2540 = vadd.f32 %v2538, %v2539
    %v2541 = vrot.slane %v2540, 2
    %v2542 = vadd.f32 %v2540, %v2541
    %v2543 = vrot.slane %v2542, 1
    %v2544 = vadd.f32 %v2542, %v2543
    %s2545 = vtos %v2544
    %v2546 = vrcp.pop 2.0
    %s2547 = vtos %v2546
    %s2548 = smul.f32 %s2545, %s2547
    %v2549 = vstv %s2548
    %vm2550 = vcmask 0
    %2551 = vst.msk [vmem:[#allocation3] sm:$0x1] %vm2550, %v2549
    // Predicated region
    $region50: #{bilstm_crf_forward.1} parent=1 // pred_check
      _
    $region51: #{bilstm_crf_forward.1} parent=1 // pred_check_branch
      %2553 = sbr.rel (0) target = $region53
    $region52: #{bilstm_crf_forward.1} parent=1 // pred_region
      %s2555 = ssub.s32 16, 16
      %2556 = vsyncadd [#allocation4], %s2555
      %s2558 = sshll.u32 [#allocation3], 4
      %s2559 = int_to_ptr.vmem [resolvable:$true] %s2558
      %2561 = dma.vmem_to_hbm [thread:$0]  %s2559, 16, %s12, [#allocation4]
    $region53: #{bilstm_crf_forward.1} parent=1 // pred_fallthru
      _
    // Predicated region
    $region54: #{bilstm_crf_forward.1} parent=1 // pred_check
      _
    $region55: #{bilstm_crf_forward.1} parent=1 // pred_check_branch
      %2563 = sbr.rel (0) target = $region57
    $region56: #{bilstm_crf_forward.1} parent=1 // pred_region
      %s2565 = ssub.s32 256, 256
      %2566 = vsyncadd [#allocation6], %s2565
      %s2567 = sshll.u32 [#allocation5], 4
      %s2568 = int_to_ptr.vmem [resolvable:$true] %s2567
      %2573 = dma.vmem_to_hbm [thread:$0]  %s2568, 256, %s13, [#allocation6], 128, 128, 8
    $region57: #{bilstm_crf_forward.1} parent=1 // pred_fallthru
      _
    // Predicated region
    $region58: #{bilstm_crf_forward.1} parent=1 // pred_check
      _
    $region59: #{bilstm_crf_forward.1} parent=1 // pred_check_branch
      %2575 = sbr.rel (0) target = $region61
    $region60: #{bilstm_crf_forward.1} parent=1 // pred_region
      %2576 = dma.done [#allocation4], 16
    $region61: #{bilstm_crf_forward.1} parent=1 // pred_fallthru
      _
    // Predicated region
    $region62: #{bilstm_crf_forward.1} parent=1 // pred_check
      _
    $region63: #{bilstm_crf_forward.1} parent=1 // pred_check_branch
      %2578 = sbr.rel (0) target = $region65
    $region64: #{bilstm_crf_forward.1} parent=1 // pred_region
      %2579 = dma.done [#allocation6], 256
    $region65: #{bilstm_crf_forward.1} parent=1 // pred_fallthru
      _
    %2580 = vsyncpa [#allocation4], 1
    %2581 = vsyncpa [#allocation6], 1

</llo_original>
